<compile_context>
chip_gen: v7x
topology: tpu7x:2x2x1
jax: 0.10.0
libtpu: 0.0.40
codegen_flags: <defaults>
</compile_context>

<pallas_src>
import jax
import jax.numpy as jnp
from jax.experimental import pallas as pl
from jax.experimental.pallas import tpu as pltpu


_OFF = 16    # left offset of the image inside the halo scratch (aligned for bf16 (16,128) tiles)
_WEXT = 32   # extra columns in the halo scratch; image lives at cols [_OFF, _OFF + W)


# ---------------------------------------------------------------------------
# in-kernel helpers
# ---------------------------------------------------------------------------
def _fill_halo(pad_ref, img):
    """Zero the halo ring and store img (B,H,W,C) at rows 1..H, cols _OFF.._OFF+W-1.

    The border is re-zeroed every grid step: with dimension_semantics="parallel"
    each TensorCore gets its own scratch, so a "zero only at program_id==0"
    init would leave one core's border uninitialized.  All stores here are
    tile-aligned (W % 8 == 0, _OFF multiple of 16), so this is cheap VMEM work.
    """
    B, Hp2, Wp, C = pad_ref.shape
    H, W = Hp2 - 2, Wp - _WEXT
    dt = img.dtype
    zrow = jnp.zeros((B, 1, Wp, C), dt)
    pad_ref[:, 0:1, :, :] = zrow
    pad_ref[:, H + 1:H + 2, :, :] = zrow
    zcol = jnp.zeros((B, Hp2, _OFF, C), dt)            # _WEXT - _OFF == _OFF
    pad_ref[:, :, 0:_OFF, :] = zcol
    pad_ref[:, :, _OFF + W:Wp, :] = zcol
    pad_ref[:, 1:H + 1, _OFF:_OFF + W, :] = img        # aligned interior store


def _conv3x3_same(pad_ref, w):
    """3x3 "SAME" conv from the halo scratch.

    pad_ref: (B, H+2, W+_WEXT, Cin) bf16 scratch with zeroed border.
    w:       (9, Cin, Cout) bf16 value.
    Returns a flat (B*H*W, Cout) f32 accumulator: the B_TILE images are folded
    into the matmul M dimension so each of the 9 taps is one big MXU dot.
    The 3 W-shifted windows are materialized once (dx=1 is tile-aligned;
    dx=0,2 cost one sublane relayout each); the per-dy slices and the flatten
    are layout preserving because W % 8 == 0.
    """
    B, Hp2, Wp, Cin = pad_ref.shape
    H, W = Hp2 - 2, Wp - _WEXT
    xs = [pad_ref[:, :, _OFF - 1 + dx:_OFF - 1 + dx + W, :] for dx in range(3)]
    acc = None
    for dy in range(3):
        for dx in range(3):
            patch = xs[dx][:, dy:dy + H, :, :].reshape(B * H * W, Cin)
            part = jnp.dot(patch, w[dy * 3 + dx],
                           preferred_element_type=jnp.float32)
            acc = part if acc is None else acc + part   # start from 1st matmul
    return acc


def _store_stats(stats_ref, acc):
    """Lane-dense per-tile BN partials: one (1, 2*C) row = [sum | sumsq]."""
    stats_ref[...] = jnp.concatenate(
        [jnp.sum(acc, axis=0, keepdims=True),
         jnp.sum(acc * acc, axis=0, keepdims=True)], axis=-1)


# ---------------------------------------------------------------------------
# pass 1: y1 = conv1(x)  (raw, pre-BN) + per-tile BN1 partial stats
# ---------------------------------------------------------------------------
def _conv1_stats_kernel(x_ref, w_ref, y_ref, stats_ref, pad_ref):
    B, H, W, _ = x_ref.shape
    Cout = y_ref.shape[-1]
    _fill_halo(pad_ref, x_ref[...])
    acc = _conv3x3_same(pad_ref, w_ref[...])             # (B*H*W, Cout) f32
    _store_stats(stats_ref, acc)
    y_ref[...] = acc.reshape(B, H, W, Cout).astype(y_ref.dtype)


# ---------------------------------------------------------------------------
# pass 2: h = relu(bn1(y1)), y2 = conv2(h) + per-tile BN2 partial stats
# ---------------------------------------------------------------------------
def _bn_relu_conv2_stats_kernel(y1_ref, a_ref, b_ref, w_ref,
                                y2_ref, stats_ref, pad_ref):
    B, H, W, C = y1_ref.shape
    Cout = y2_ref.shape[-1]
    a = a_ref[...].reshape(1, 1, 1, C)
    b = b_ref[...].reshape(1, 1, 1, C)
    h = jnp.maximum(y1_ref[...].astype(jnp.float32) * a + b, 0.0)
    _fill_halo(pad_ref, h.astype(jnp.bfloat16))          # zero halo => SAME pad
    acc = _conv3x3_same(pad_ref, w_ref[...])
    _store_stats(stats_ref, acc)
    y2_ref[...] = acc.reshape(B, H, W, Cout).astype(y2_ref.dtype)


# ---------------------------------------------------------------------------
# pass 3: out = relu(bn2(y2) + identity)
# ---------------------------------------------------------------------------
def _bn_add_relu_kernel(y2_ref, x_ref, a_ref, b_ref, out_ref):
    C = out_ref.shape[-1]
    a = a_ref[...].reshape(1, 1, 1, C)
    b = b_ref[...].reshape(1, 1, 1, C)
    out_ref[...] = jnp.maximum(
        y2_ref[...].astype(jnp.float32) * a + b + x_ref[...].astype(jnp.float32),
        0.0).astype(out_ref.dtype)


# ---------------------------------------------------------------------------
# wrapper
# ---------------------------------------------------------------------------
def _fold_bn(stats, gamma, beta, count, eps):
    """(T, 1, 2C) per-tile [sum | sumsq] -> per-channel scale / shift (f32)."""
    # TODO(synk): E[x^2]-E[x]^2 can cancel when |mean| >> std at huge batch;
    # a Welford-style combine would be more robust.
    tot = jnp.sum(stats[:, 0, :], axis=0)
    C = gamma.shape[0]
    mean = tot[:C] / count
    var = tot[C:] / count - mean * mean      # biased batch variance (training)
    a = gamma * jax.lax.rsqrt(var + eps)
    b = beta - mean * a
    return (a.reshape(1, C).astype(jnp.float32),
            b.reshape(1, C).astype(jnp.float32))


def resblock_pallas(x_nchw, w1_oihw, g1, b1, w2_oihw, g2, b2,
                    eps=1e-5, b_tile=None):
    """x_nchw: (N, C, H, W) f32; conv weights in PyTorch OIHW. Returns NCHW f32."""
    N, C, H, W = x_nchw.shape
    # TODO(synk): for boards with W % 8 != 0 (e.g. 19x19) pad W to a multiple
    # of 8 in the wrapper and mask the extra columns in the stats / before
    # conv2; needed so the shifted views and reshapes stay layout-preserving.
    assert W % 8 == 0, "pad W to a multiple of 8 first"
    if b_tile is None:
        # largest divisor of N <= 8; size for VMEM at production shapes
        # (v7x has 64 MiB per TensorCore vs 128 MiB on v5e/v6e).
        b_tile = next(bt for bt in (8, 4, 2, 1) if N % bt == 0)
    num_tiles = N // b_tile

    # Single NHWC bf16 copy of x: conv1 input AND pass-3 identity.
    x_bf = jnp.transpose(x_nchw, (0, 2, 3, 1)).astype(jnp.bfloat16)
    w1 = jnp.transpose(w1_oihw, (2, 3, 1, 0)).reshape(9, C, C).astype(jnp.bfloat16)
    w2 = jnp.transpose(w2_oihw, (2, 3, 1, 0)).reshape(9, C, C).astype(jnp.bfloat16)

    cparams = pltpu.CompilerParams(
        dimension_semantics=("parallel",),
        vmem_limit_bytes=64 * 1024 * 1024)
    count = float(N * H * W)

    img_spec = pl.BlockSpec((b_tile, H, W, C), lambda n: (n, 0, 0, 0))
    stats_spec = pl.BlockSpec((None, 1, 2 * C), lambda n: (n, 0, 0))
    w_spec = pl.BlockSpec((9, C, C), lambda n: (0, 0, 0))
    vec_spec = pl.BlockSpec((1, C), lambda n: (0, 0))
    halo_scratch = pltpu.VMEM((b_tile, H + 2, W + _WEXT, C), jnp.bfloat16)
    stats_shape = jax.ShapeDtypeStruct((num_tiles, 1, 2 * C), jnp.float32)
    img_bf16_shape = jax.ShapeDtypeStruct((N, H, W, C), jnp.bfloat16)

    # pass 1: conv1 + partial BN1 stats --------------------------------------
    y1, s1 = pl.pallas_call(
        _conv1_stats_kernel,
        grid=(num_tiles,),
        in_specs=[img_spec, w_spec],
        out_specs=[img_spec, stats_spec],
        out_shape=[img_bf16_shape, stats_shape],
        scratch_shapes=[halo_scratch],
        compiler_params=cparams,
    )(x_bf, w1)
    a1, c1 = _fold_bn(s1, g1, b1, count, eps)

    # pass 2: bn1 + relu + conv2 + partial BN2 stats --------------------------
    y2, s2 = pl.pallas_call(
        _bn_relu_conv2_stats_kernel,
        grid=(num_tiles,),
        in_specs=[img_spec, vec_spec, vec_spec, w_spec],
        out_specs=[img_spec, stats_spec],
        out_shape=[img_bf16_shape, stats_shape],
        scratch_shapes=[halo_scratch],
        compiler_params=cparams,
    )(y1, a1, c1, w2)
    a2, c2 = _fold_bn(s2, g2, b2, count, eps)

    # pass 3: bn2 + residual + relu -------------------------------------------
    out = pl.pallas_call(
        _bn_add_relu_kernel,
        grid=(num_tiles,),
        in_specs=[img_spec, img_spec, vec_spec, vec_spec],
        out_specs=img_spec,
        out_shape=jax.ShapeDtypeStruct((N, H, W, C), jnp.float32),
        compiler_params=cparams,
    )(y2, x_bf, a2, c2)
    return jnp.transpose(out, (0, 3, 1, 2))


# ---------------------------------------------------------------------------
# references for validation
# ---------------------------------------------------------------------------
def _conv_ref(v, w):
    return jax.lax.conv_general_dilated(
        v, w, (1, 1), "SAME", dimension_numbers=("NHWC", "HWIO", "NHWC"),
        preferred_element_type=jnp.float32)


def resblock_ref_f32(x_nchw, w1_oihw, g1, b1, w2_oihw, g2, b2, eps=1e-5):
    """Pure-f32 reference with the module's exact math (training-mode BN)."""
    x = jnp.transpose(x_nchw, (0, 2, 3, 1))
    w1 = jnp.transpose(w1_oihw, (2, 3, 1, 0))
    w2 = jnp.transpose(w2_oihw, (2, 3, 1, 0))

    def bn(v, g, bta):
        mean = v.mean(axis=(0, 1, 2), keepdims=True)
        var = ((v - mean) ** 2).mean(axis=(0, 1, 2), keepdims=True)
        return (v - mean) * jax.lax.rsqrt(var + eps) * g.reshape(1, 1, 1, -1) \
            + bta.reshape(1, 1, 1, -1)

    h = jax.nn.relu(bn(_conv_ref(x, w1), g1, b1))
    h = bn(_conv_ref(h, w2), g2, b2)
    return jnp.transpose(jax.nn.relu(h + x), (0, 3, 1, 2))


def resblock_ref_matched(x_nchw, w1_oihw, g1, b1, w2_oihw, g2, b2, eps=1e-5):
    """Reference with the same bf16 cast points as the Pallas kernels."""
    bf16, f32 = jnp.bfloat16, jnp.float32
    x_bf = jnp.transpose(x_nchw, (0, 2, 3, 1)).astype(bf16)
    w1 = jnp.transpose(w1_oihw, (2, 3, 1, 0)).astype(bf16)
    w2 = jnp.transpose(w2_oihw, (2, 3, 1, 0)).astype(bf16)

    def fold(y, g, bta):
        mean = jnp.mean(y, axis=(0, 1, 2))
        var = jnp.mean(y * y, axis=(0, 1, 2)) - mean * mean
        a = g * jax.lax.rsqrt(var + eps)
        return a, bta - mean * a

    y1 = _conv_ref(x_bf, w1)                                   # f32 accum
    a1, c1 = fold(y1, g1, b1)
    h = jnp.maximum(y1.astype(bf16).astype(f32) * a1 + c1, 0.0)
    y2 = _conv_ref(h.astype(bf16), w2)
    a2, c2 = fold(y2, g2, b2)
    out = jnp.maximum(y2.astype(bf16).astype(f32) * a2 + c2 + x_bf.astype(f32),
                      0.0)
    return jnp.transpose(out, (0, 3, 1, 2))


if __name__ == "__main__":
    N, C, H, W = 2, 4, 16, 16      # small stand-in for inplanes=planes=256
    key = jax.random.PRNGKey(0)
    kx, kw1, kw2 = jax.random.split(key, 3)

    x = jax.random.normal(kx, (N, C, H, W), jnp.float32)
    # deterministic conv weights (OIHW, like nn.Conv2d, bias=False)
    w1 = jax.random.normal(kw1, (C, C, 3, 3), jnp.float32) * 0.1
    w2 = jax.random.normal(kw2, (C, C, 3, 3), jnp.float32) * 0.1
    # BatchNorm2d affine params at their PyTorch init values
    g1, b1 = jnp.ones((C,), jnp.float32), jnp.zeros((C,), jnp.float32)
    g2, b2 = jnp.ones((C,), jnp.float32), jnp.zeros((C,), jnp.float32)

    out = jax.block_until_ready(resblock_pallas(x, w1, g1, b1, w2, g2, b2))
    assert out.shape == (N, C, H, W)

    ref_m = resblock_ref_matched(x, w1, g1, b1, w2, g2, b2)
    ref_f = resblock_ref_f32(x, w1, g1, b1, w2, g2, b2)
    # kernel logic vs. a reference using the same bf16 cast points: tight
    assert jnp.allclose(out, ref_m, atol=2e-3, rtol=2e-3), \
        float(jnp.max(jnp.abs(out - ref_m)))
    # sanity vs. the pure-f32 module math: loose (bf16 MXU operands / identity)
    assert jnp.allclose(out, ref_f, atol=5e-2, rtol=5e-2), \
        float(jnp.max(jnp.abs(out - ref_f)))
    print("KERNEL_OK")
</pallas_src>

<mosaic_0001>
module attributes {stable_mosaic.version = 11 : i64} {
  func.func @_conv1_stats_kernel(%arg0: i32, %arg1: memref<2x16x16x4xbf16, #tpu.memory_space<vmem>>, %arg2: memref<9x4x4xbf16, #tpu.memory_space<vmem>>, %arg3: memref<2x16x16x4xbf16, #tpu.memory_space<vmem>>, %arg4: memref<1x1x8xf32, #tpu.memory_space<vmem>>, %arg5: memref<2x18x48x4xbf16, #tpu.memory_space<vmem>>) attributes {dimension_semantics = [#tpu.dimension_semantics<parallel>], iteration_bounds = array<i64: 1>, scalar_prefetch = 0 : i64, scratch_operands = 1 : i64, tpu.core_type = #tpu.core_type<tc>, window_params = [{transform_indices = @transform_0, window_bounds = array<i64: 2, 16, 16, 4>}, {pipeline_mode = #tpu.pipeline_mode<synchronous>, transform_indices = @transform_1, window_bounds = array<i64: 9, 4, 4>}, {transform_indices = @transform_2, window_bounds = array<i64: 2, 16, 16, 4>}, {transform_indices = @transform_3, window_bounds = array<i64: 1, 1, 8>}]} {
    %c0 = arith.constant 0 : index
    %c0_0 = arith.constant 0 : index
    %c0_1 = arith.constant 0 : index
    %c0_2 = arith.constant 0 : index
    %0 = vector.load %arg1[%c0, %c0_0, %c0_1, %c0_2] : memref<2x16x16x4xbf16, #tpu.memory_space<vmem>>, vector<2x16x16x4xbf16>
    %cst = arith.constant 0.000000e+00 : bf16
    %1 = vector.broadcast %cst : bf16 to vector<2x1x48x4xbf16>
    %c0_3 = arith.constant 0 : index
    %c0_4 = arith.constant 0 : index
    %c0_5 = arith.constant 0 : index
    %c0_6 = arith.constant 0 : index
    %2 = vector.load %arg5[%c0_3, %c0_4, %c0_5, %c0_6] : memref<2x18x48x4xbf16, #tpu.memory_space<vmem>>, vector<2x1x48x4xbf16>
    tpu.vector_store %arg5[%c0_3, %c0_4, %c0_5, %c0_6], %1 {strides = array<i32>} : memref<2x18x48x4xbf16, #tpu.memory_space<vmem>>, vector<2x1x48x4xbf16>,
    %c0_7 = arith.constant 0 : index
    %c17 = arith.constant 17 : index
    %c0_8 = arith.constant 0 : index
    %c0_9 = arith.constant 0 : index
    %3 = vector.load %arg5[%c0_7, %c17, %c0_8, %c0_9] : memref<2x18x48x4xbf16, #tpu.memory_space<vmem>>, vector<2x1x48x4xbf16>
    tpu.vector_store %arg5[%c0_7, %c17, %c0_8, %c0_9], %1 {strides = array<i32>} : memref<2x18x48x4xbf16, #tpu.memory_space<vmem>>, vector<2x1x48x4xbf16>,
    %cst_10 = arith.constant 0.000000e+00 : bf16
    %4 = vector.broadcast %cst_10 : bf16 to vector<2x18x16x4xbf16>
    %c0_11 = arith.constant 0 : index
    %c0_12 = arith.constant 0 : index
    %c0_13 = arith.constant 0 : index
    %c0_14 = arith.constant 0 : index
    %5 = vector.load %arg5[%c0_11, %c0_12, %c0_13, %c0_14] : memref<2x18x48x4xbf16, #tpu.memory_space<vmem>>, vector<2x18x16x4xbf16>
    tpu.vector_store %arg5[%c0_11, %c0_12, %c0_13, %c0_14], %4 {strides = array<i32>} : memref<2x18x48x4xbf16, #tpu.memory_space<vmem>>, vector<2x18x16x4xbf16>,
    %c0_15 = arith.constant 0 : index
    %c0_16 = arith.constant 0 : index
    %c32 = arith.constant 32 : index
    %c0_17 = arith.constant 0 : index
    %6 = vector.load %arg5[%c0_15, %c0_16, %c32, %c0_17] : memref<2x18x48x4xbf16, #tpu.memory_space<vmem>>, vector<2x18x16x4xbf16>
    tpu.vector_store %arg5[%c0_15, %c0_16, %c32, %c0_17], %4 {strides = array<i32>} : memref<2x18x48x4xbf16, #tpu.memory_space<vmem>>, vector<2x18x16x4xbf16>,
    %c0_18 = arith.constant 0 : index
    %c1 = arith.constant 1 : index
    %c16 = arith.constant 16 : index
    %c0_19 = arith.constant 0 : index
    %7 = vector.load %arg5[%c0_18, %c1, %c16, %c0_19] : memref<2x18x48x4xbf16, #tpu.memory_space<vmem>>, vector<2x16x16x4xbf16>
    tpu.vector_store %arg5[%c0_18, %c1, %c16, %c0_19], %0 {strides = array<i32>} : memref<2x18x48x4xbf16, #tpu.memory_space<vmem>>, vector<2x16x16x4xbf16>,
    %c0_20 = arith.constant 0 : index
    %c0_21 = arith.constant 0 : index
    %c0_22 = arith.constant 0 : index
    %8 = vector.load %arg2[%c0_20, %c0_21, %c0_22] : memref<9x4x4xbf16, #tpu.memory_space<vmem>>, vector<9x4x4xbf16>
    %c0_23 = arith.constant 0 : index
    %c0_24 = arith.constant 0 : index
    %c15 = arith.constant 15 : index
    %c0_25 = arith.constant 0 : index
    %9 = vector.load %arg5[%c0_23, %c0_24, %c15, %c0_25] : memref<2x18x48x4xbf16, #tpu.memory_space<vmem>>, vector<2x18x16x4xbf16>
    %c0_26 = arith.constant 0 : index
    %c0_27 = arith.constant 0 : index
    %c16_28 = arith.constant 16 : index
    %c0_29 = arith.constant 0 : index
    %10 = vector.load %arg5[%c0_26, %c0_27, %c16_28, %c0_29] : memref<2x18x48x4xbf16, #tpu.memory_space<vmem>>, vector<2x18x16x4xbf16>
    %c0_30 = arith.constant 0 : index
    %c0_31 = arith.constant 0 : index
    %c17_32 = arith.constant 17 : index
    %c0_33 = arith.constant 0 : index
    %11 = vector.load %arg5[%c0_30, %c0_31, %c17_32, %c0_33] : memref<2x18x48x4xbf16, #tpu.memory_space<vmem>>, vector<2x18x16x4xbf16>
    %12 = vector.extract_strided_slice %9 {offsets = [0, 0, 0, 0], sizes = [2, 16, 16, 4], strides = [1, 1, 1, 1]} : vector<2x18x16x4xbf16> to vector<2x16x16x4xbf16>
    %13 = vector.shape_cast %12 : vector<2x16x16x4xbf16> to vector<512x4xbf16>
    %14 = vector.extract_strided_slice %8 {offsets = [0, 0, 0], sizes = [1, 4, 4], strides = [1, 1, 1]} : vector<9x4x4xbf16> to vector<1x4x4xbf16>
    %15 = vector.shape_cast %14 : vector<1x4x4xbf16> to vector<4x4xbf16>
    %cst_34 = arith.constant dense<0.000000e+00> : vector<512x4xf32>
    %16 = tpu.matmul %13, %15, %cst_34 {dimension_numbers = #tpu.dot_dimension_numbers<[1], [0], [0], [1], [0, 0, 1, 1], [], []>} : vector<512x4xbf16>, vector<4x4xbf16>, vector<512x4xf32> -> vector<512x4xf32>
    %17 = vector.extract_strided_slice %10 {offsets = [0, 0, 0, 0], sizes = [2, 16, 16, 4], strides = [1, 1, 1, 1]} : vector<2x18x16x4xbf16> to vector<2x16x16x4xbf16>
    %18 = vector.shape_cast %17 : vector<2x16x16x4xbf16> to vector<512x4xbf16>
    %19 = vector.extract_strided_slice %8 {offsets = [1, 0, 0], sizes = [1, 4, 4], strides = [1, 1, 1]} : vector<9x4x4xbf16> to vector<1x4x4xbf16>
    %20 = vector.shape_cast %19 : vector<1x4x4xbf16> to vector<4x4xbf16>
    %cst_35 = arith.constant dense<0.000000e+00> : vector<512x4xf32>
    %21 = tpu.matmul %18, %20, %cst_35 {dimension_numbers = #tpu.dot_dimension_numbers<[1], [0], [0], [1], [0, 0, 1, 1], [], []>} : vector<512x4xbf16>, vector<4x4xbf16>, vector<512x4xf32> -> vector<512x4xf32>
    %22 = arith.addf %16, %21 : vector<512x4xf32>
    %23 = vector.extract_strided_slice %11 {offsets = [0, 0, 0, 0], sizes = [2, 16, 16, 4], strides = [1, 1, 1, 1]} : vector<2x18x16x4xbf16> to vector<2x16x16x4xbf16>
    %24 = vector.shape_cast %23 : vector<2x16x16x4xbf16> to vector<512x4xbf16>
    %25 = vector.extract_strided_slice %8 {offsets = [2, 0, 0], sizes = [1, 4, 4], strides = [1, 1, 1]} : vector<9x4x4xbf16> to vector<1x4x4xbf16>
    %26 = vector.shape_cast %25 : vector<1x4x4xbf16> to vector<4x4xbf16>
    %cst_36 = arith.constant dense<0.000000e+00> : vector<512x4xf32>
    %27 = tpu.matmul %24, %26, %cst_36 {dimension_numbers = #tpu.dot_dimension_numbers<[1], [0], [0], [1], [0, 0, 1, 1], [], []>} : vector<512x4xbf16>, vector<4x4xbf16>, vector<512x4xf32> -> vector<512x4xf32>
    %28 = arith.addf %22, %27 : vector<512x4xf32>
    %29 = vector.extract_strided_slice %9 {offsets = [0, 1, 0, 0], sizes = [2, 16, 16, 4], strides = [1, 1, 1, 1]} : vector<2x18x16x4xbf16> to vector<2x16x16x4xbf16>
    %30 = vector.shape_cast %29 : vector<2x16x16x4xbf16> to vector<512x4xbf16>
    %31 = vector.extract_strided_slice %8 {offsets = [3, 0, 0], sizes = [1, 4, 4], strides = [1, 1, 1]} : vector<9x4x4xbf16> to vector<1x4x4xbf16>
    %32 = vector.shape_cast %31 : vector<1x4x4xbf16> to vector<4x4xbf16>
    %cst_37 = arith.constant dense<0.000000e+00> : vector<512x4xf32>
    %33 = tpu.matmul %30, %32, %cst_37 {dimension_numbers = #tpu.dot_dimension_numbers<[1], [0], [0], [1], [0, 0, 1, 1], [], []>} : vector<512x4xbf16>, vector<4x4xbf16>, vector<512x4xf32> -> vector<512x4xf32>
    %34 = arith.addf %28, %33 : vector<512x4xf32>
    %35 = vector.extract_strided_slice %10 {offsets = [0, 1, 0, 0], sizes = [2, 16, 16, 4], strides = [1, 1, 1, 1]} : vector<2x18x16x4xbf16> to vector<2x16x16x4xbf16>
    %36 = vector.shape_cast %35 : vector<2x16x16x4xbf16> to vector<512x4xbf16>
    %37 = vector.extract_strided_slice %8 {offsets = [4, 0, 0], sizes = [1, 4, 4], strides = [1, 1, 1]} : vector<9x4x4xbf16> to vector<1x4x4xbf16>
    %38 = vector.shape_cast %37 : vector<1x4x4xbf16> to vector<4x4xbf16>
    %cst_38 = arith.constant dense<0.000000e+00> : vector<512x4xf32>
    %39 = tpu.matmul %36, %38, %cst_38 {dimension_numbers = #tpu.dot_dimension_numbers<[1], [0], [0], [1], [0, 0, 1, 1], [], []>} : vector<512x4xbf16>, vector<4x4xbf16>, vector<512x4xf32> -> vector<512x4xf32>
    %40 = arith.addf %34, %39 : vector<512x4xf32>
    %41 = vector.extract_strided_slice %11 {offsets = [0, 1, 0, 0], sizes = [2, 16, 16, 4], strides = [1, 1, 1, 1]} : vector<2x18x16x4xbf16> to vector<2x16x16x4xbf16>
    %42 = vector.shape_cast %41 : vector<2x16x16x4xbf16> to vector<512x4xbf16>
    %43 = vector.extract_strided_slice %8 {offsets = [5, 0, 0], sizes = [1, 4, 4], strides = [1, 1, 1]} : vector<9x4x4xbf16> to vector<1x4x4xbf16>
    %44 = vector.shape_cast %43 : vector<1x4x4xbf16> to vector<4x4xbf16>
    %cst_39 = arith.constant dense<0.000000e+00> : vector<512x4xf32>
    %45 = tpu.matmul %42, %44, %cst_39 {dimension_numbers = #tpu.dot_dimension_numbers<[1], [0], [0], [1], [0, 0, 1, 1], [], []>} : vector<512x4xbf16>, vector<4x4xbf16>, vector<512x4xf32> -> vector<512x4xf32>
    %46 = arith.addf %40, %45 : vector<512x4xf32>
    %47 = vector.extract_strided_slice %9 {offsets = [0, 2, 0, 0], sizes = [2, 16, 16, 4], strides = [1, 1, 1, 1]} : vector<2x18x16x4xbf16> to vector<2x16x16x4xbf16>
    %48 = vector.shape_cast %47 : vector<2x16x16x4xbf16> to vector<512x4xbf16>
    %49 = vector.extract_strided_slice %8 {offsets = [6, 0, 0], sizes = [1, 4, 4], strides = [1, 1, 1]} : vector<9x4x4xbf16> to vector<1x4x4xbf16>
    %50 = vector.shape_cast %49 : vector<1x4x4xbf16> to vector<4x4xbf16>
    %cst_40 = arith.constant dense<0.000000e+00> : vector<512x4xf32>
    %51 = tpu.matmul %48, %50, %cst_40 {dimension_numbers = #tpu.dot_dimension_numbers<[1], [0], [0], [1], [0, 0, 1, 1], [], []>} : vector<512x4xbf16>, vector<4x4xbf16>, vector<512x4xf32> -> vector<512x4xf32>
    %52 = arith.addf %46, %51 : vector<512x4xf32>
    %53 = vector.extract_strided_slice %10 {offsets = [0, 2, 0, 0], sizes = [2, 16, 16, 4], strides = [1, 1, 1, 1]} : vector<2x18x16x4xbf16> to vector<2x16x16x4xbf16>
    %54 = vector.shape_cast %53 : vector<2x16x16x4xbf16> to vector<512x4xbf16>
    %55 = vector.extract_strided_slice %8 {offsets = [7, 0, 0], sizes = [1, 4, 4], strides = [1, 1, 1]} : vector<9x4x4xbf16> to vector<1x4x4xbf16>
    %56 = vector.shape_cast %55 : vector<1x4x4xbf16> to vector<4x4xbf16>
    %cst_41 = arith.constant dense<0.000000e+00> : vector<512x4xf32>
    %57 = tpu.matmul %54, %56, %cst_41 {dimension_numbers = #tpu.dot_dimension_numbers<[1], [0], [0], [1], [0, 0, 1, 1], [], []>} : vector<512x4xbf16>, vector<4x4xbf16>, vector<512x4xf32> -> vector<512x4xf32>
    %58 = arith.addf %52, %57 : vector<512x4xf32>
    %59 = vector.extract_strided_slice %11 {offsets = [0, 2, 0, 0], sizes = [2, 16, 16, 4], strides = [1, 1, 1, 1]} : vector<2x18x16x4xbf16> to vector<2x16x16x4xbf16>
    %60 = vector.shape_cast %59 : vector<2x16x16x4xbf16> to vector<512x4xbf16>
    %61 = vector.extract_strided_slice %8 {offsets = [8, 0, 0], sizes = [1, 4, 4], strides = [1, 1, 1]} : vector<9x4x4xbf16> to vector<1x4x4xbf16>
    %62 = vector.shape_cast %61 : vector<1x4x4xbf16> to vector<4x4xbf16>
    %cst_42 = arith.constant dense<0.000000e+00> : vector<512x4xf32>
    %63 = tpu.matmul %60, %62, %cst_42 {dimension_numbers = #tpu.dot_dimension_numbers<[1], [0], [0], [1], [0, 0, 1, 1], [], []>} : vector<512x4xbf16>, vector<4x4xbf16>, vector<512x4xf32> -> vector<512x4xf32>
    %64 = arith.addf %58, %63 : vector<512x4xf32>
    %cst_43 = arith.constant dense<0.000000e+00> : vector<4xf32>
    %65 = vector.multi_reduction <add>, %64, %cst_43 [0] : vector<512x4xf32> to vector<4xf32>
    %66 = vector.shape_cast %65 : vector<4xf32> to vector<1x4xf32>
    %67 = arith.mulf %64, %64 : vector<512x4xf32>
    %cst_44 = arith.constant dense<0.000000e+00> : vector<4xf32>
    %68 = vector.multi_reduction <add>, %67, %cst_44 [0] : vector<512x4xf32> to vector<4xf32>
    %69 = vector.shape_cast %68 : vector<4xf32> to vector<1x4xf32>
    %70 = tpu.concatenate %66, %69 in 1 : vector<1x4xf32>, vector<1x4xf32> -> vector<1x8xf32>
    %c0_45 = arith.constant 0 : index
    %c0_46 = arith.constant 0 : index
    %c0_47 = arith.constant 0 : index
    %71 = vector.load %arg4[%c0_45, %c0_46, %c0_47] : memref<1x1x8xf32, #tpu.memory_space<vmem>>, vector<1x1x8xf32>
    %72 = vector.shape_cast %71 : vector<1x1x8xf32> to vector<1x8xf32>
    %73 = vector.shape_cast %70 : vector<1x8xf32> to vector<1x1x8xf32>
    tpu.vector_store %arg4[%c0_45, %c0_46, %c0_47], %73 {strides = array<i32>} : memref<1x1x8xf32, #tpu.memory_space<vmem>>, vector<1x1x8xf32>,
    %74 = vector.shape_cast %64 : vector<512x4xf32> to vector<2x16x16x4xf32>
    %75 = arith.truncf %74 : vector<2x16x16x4xf32> to vector<2x16x16x4xbf16>
    %c0_48 = arith.constant 0 : index
    %c0_49 = arith.constant 0 : index
    %c0_50 = arith.constant 0 : index
    %c0_51 = arith.constant 0 : index
    %76 = vector.load %arg3[%c0_48, %c0_49, %c0_50, %c0_51] : memref<2x16x16x4xbf16, #tpu.memory_space<vmem>>, vector<2x16x16x4xbf16>
    tpu.vector_store %arg3[%c0_48, %c0_49, %c0_50, %c0_51], %75 {strides = array<i32>} : memref<2x16x16x4xbf16, #tpu.memory_space<vmem>>, vector<2x16x16x4xbf16>,
    return
  }
  func.func @transform_0(%arg0: i32) -> (i32, i32, i32, i32) {
    %c0_i32 = arith.constant 0 : i32
    %c0_i32_0 = arith.constant 0 : i32
    %c0_i32_1 = arith.constant 0 : i32
    %c0_i32_2 = arith.constant 0 : i32
    return %arg0, %c0_i32, %c0_i32_0, %c0_i32_1 : i32, i32, i32, i32
  }
  func.func @transform_1(%arg0: i32) -> (i32, i32, i32) {
    %c0_i32 = arith.constant 0 : i32
    %c0_i32_0 = arith.constant 0 : i32
    %c0_i32_1 = arith.constant 0 : i32
    %c0_i32_2 = arith.constant 0 : i32
    return %c0_i32, %c0_i32_0, %c0_i32_1 : i32, i32, i32
  }
  func.func @transform_2(%arg0: i32) -> (i32, i32, i32, i32) {
    %c0_i32 = arith.constant 0 : i32
    %c0_i32_0 = arith.constant 0 : i32
    %c0_i32_1 = arith.constant 0 : i32
    %c0_i32_2 = arith.constant 0 : i32
    return %arg0, %c0_i32, %c0_i32_0, %c0_i32_1 : i32, i32, i32, i32
  }
  func.func @transform_3(%arg0: i32) -> (i32, i32, i32) {
    %c0_i32 = arith.constant 0 : i32
    %c0_i32_0 = arith.constant 0 : i32
    %c0_i32_1 = arith.constant 0 : i32
    return %arg0, %c0_i32, %c0_i32_0 : i32, i32, i32
  }
}

</mosaic_0001>

<llo_original>
// kernel: tpu_custom_call.1
$region0: #{tpu_custom_call.1}
  #allocation0 [shape = 'u32[]', space=smem, size = 0x4, offset = 0x4, fixed_abs, tag = 'smem constant byte address 0x4 - core index']
  #allocation1 [shape = 'u32[144,128]{1,0:T(1,128)}', space=vmem, size = 0x12000, scoped, tag = 'internal scratch']
  #allocation2 [shape = 'bf16[2,18,48,4]{3,2,1,0:T(16,128)(2,1)}', space=vmem, size = 0x6c000, scoped, tag = 'scratch operand']
  %s0 = inlined_call_operand.hbm [shape: bf16[2,16,16,4], index: 0, kind: input, shape index: {}]
  %s1 = inlined_call_operand.hbm [shape: bf16[9,4,4], index: 1, kind: input, shape index: {}]
  %s2 = inlined_call_operand.hbm [shape: bf16[2,16,16,4], index: 2, kind: output, shape index: {0}]
  %s3 = inlined_call_operand.hbm [shape: f32[1,1,8], index: 3, kind: output, shape index: {1}]
  %4 = xla_tuple %s2, %s3
  %s5 = sld [smem:[#allocation0]]
  $region34: #{tpu_custom_call.1} parent=0
    _
  %s7 = ssub.s32 1, %s5
  %s8 = scalar_select 0, %s7, %s5
  $region1: #{tpu_custom_call.1} parent=0
    #allocation3 [shape = 'u8[131072]{0}', space=vmem, size = 0x20000, scoped, tag = 'input window, operand 0, single buffered']
    #allocation4 [shape = 's32[1]{0}', space=sflag, size = 0x4, scoped, tag = 'scoped memory for tpu_custom_call.1']
    #allocation5 [shape = 's32[1]{0}', space=sflag, size = 0x4, scoped, tag = 'scoped memory for tpu_custom_call.1']
    #allocation6 [shape = 'u8[9216]{0}', space=vmem, size = 0x2400, scoped, tag = 'input window, operand 1, single buffered']
    #allocation7 [shape = 's32[1]{0}', space=sflag, size = 0x4, scoped, tag = 'scoped memory for tpu_custom_call.1']
    #allocation8 [shape = 'u8[131072]{0}', space=vmem, size = 0x20000, scoped, tag = 'output window, operand 0, single buffered']
    #allocation9 [shape = 'u8[512]{0}', space=vmem, size = 0x400, scoped, tag = 'output window, operand 1, single buffered']
    #allocation10 [shape = 's32[1]{0}', space=sflag, size = 0x4, scoped, tag = 'scoped memory for tpu_custom_call.1']
    %9 = vsyncpa [#allocation4], 0
    %10 = vsyncpa [#allocation7], 0
    %11 = vsyncpa [#allocation5], 0
    %12 = vsyncpa [#allocation10], 0
    // Predicated region
    $region2: #{tpu_custom_call.1} parent=1 // pred_check
      _
    $region3: #{tpu_custom_call.1} parent=1 // pred_check_branch
      %14 = sbr.rel (0) target = $region5
    $region4: #{tpu_custom_call.1} parent=1 // pred_region
      %s16 = ssub.s32 4096, 4096
      %17 = vsyncadd [#allocation4], %s16
      %s18 = sshll.u32 [#allocation3], 4
      %s19 = int_to_ptr.vmem [resolvable:$true] %s18
      %24 = dma.hbm_to_vmem [thread:$0]  %s0, 4096, %s19, [#allocation4], 64, 64, 4
    $region5: #{tpu_custom_call.1} parent=1 // pred_fallthru
      _
    // Predicated region
    $region6: #{tpu_custom_call.1} parent=1 // pred_check
      _
    $region7: #{tpu_custom_call.1} parent=1 // pred_check_branch
      %26 = sbr.rel (0) target = $region9
    $region8: #{tpu_custom_call.1} parent=1 // pred_region
      %s28 = ssub.s32 288, 288
      %29 = vsyncadd [#allocation7], %s28
      %s30 = sshll.u32 [#allocation6], 4
      %s31 = int_to_ptr.vmem [resolvable:$true] %s30
      %36 = dma.hbm_to_vmem [thread:$0]  %s1, 288, %s31, [#allocation7], 32, 32, 2
    $region9: #{tpu_custom_call.1} parent=1 // pred_fallthru
      _
    // Predicated region
    $region10: #{tpu_custom_call.1} parent=1 // pred_check
      _
    $region11: #{tpu_custom_call.1} parent=1 // pred_check_branch
      %38 = sbr.rel (0) target = $region13
    $region12: #{tpu_custom_call.1} parent=1 // pred_region
      %39 = dma.done [#allocation4], 4096
    $region13: #{tpu_custom_call.1} parent=1 // pred_fallthru
      _
    // Predicated region
    $region14: #{tpu_custom_call.1} parent=1 // pred_check
      _
    $region15: #{tpu_custom_call.1} parent=1 // pred_check_branch
      %41 = sbr.rel (0) target = $region17
    $region16: #{tpu_custom_call.1} parent=1 // pred_region
      %42 = dma.done [#allocation7], 288
    $region17: #{tpu_custom_call.1} parent=1 // pred_fallthru
      _
    %v44 = vld [vmem:[#allocation3] sm:$0xf]
    %v45 = vld [vmem:[#allocation3 + $0x4] sm:$0xf]
    %v46 = vld [vmem:[#allocation3 + $0x8] sm:$0xf]
    %v47 = vld [vmem:[#allocation3 + $0xc] sm:$0xf]
    %v48 = vld [vmem:[#allocation3 + $0x10] sm:$0xf]
    %v49 = vld [vmem:[#allocation3 + $0x14] sm:$0xf]
    %v50 = vld [vmem:[#allocation3 + $0x18] sm:$0xf]
    %v51 = vld [vmem:[#allocation3 + $0x1c] sm:$0xf]
    %v52 = vld [vmem:[#allocation3 + $0x20] sm:$0xf]
    %v53 = vld [vmem:[#allocation3 + $0x24] sm:$0xf]
    %v54 = vld [vmem:[#allocation3 + $0x28] sm:$0xf]
    %v55 = vld [vmem:[#allocation3 + $0x2c] sm:$0xf]
    %v56 = vld [vmem:[#allocation3 + $0x30] sm:$0xf]
    %v57 = vld [vmem:[#allocation3 + $0x34] sm:$0xf]
    %v58 = vld [vmem:[#allocation3 + $0x38] sm:$0xf]
    %v59 = vld [vmem:[#allocation3 + $0x3c] sm:$0xf]
    %v60 = vld [vmem:[#allocation3 + $0x40] sm:$0xf]
    %v61 = vld [vmem:[#allocation3 + $0x44] sm:$0xf]
    %v62 = vld [vmem:[#allocation3 + $0x48] sm:$0xf]
    %v63 = vld [vmem:[#allocation3 + $0x4c] sm:$0xf]
    %v64 = vld [vmem:[#allocation3 + $0x50] sm:$0xf]
    %v65 = vld [vmem:[#allocation3 + $0x54] sm:$0xf]
    %v66 = vld [vmem:[#allocation3 + $0x58] sm:$0xf]
    %v67 = vld [vmem:[#allocation3 + $0x5c] sm:$0xf]
    %v68 = vld [vmem:[#allocation3 + $0x60] sm:$0xf]
    %v69 = vld [vmem:[#allocation3 + $0x64] sm:$0xf]
    %v70 = vld [vmem:[#allocation3 + $0x68] sm:$0xf]
    %v71 = vld [vmem:[#allocation3 + $0x6c] sm:$0xf]
    %v72 = vld [vmem:[#allocation3 + $0x70] sm:$0xf]
    %v73 = vld [vmem:[#allocation3 + $0x74] sm:$0xf]
    %v74 = vld [vmem:[#allocation3 + $0x78] sm:$0xf]
    %v75 = vld [vmem:[#allocation3 + $0x7c] sm:$0xf]
    %v76 = vld [vmem:[#allocation3 + $0x80] sm:$0xf]
    %v77 = vld [vmem:[#allocation3 + $0x84] sm:$0xf]
    %v78 = vld [vmem:[#allocation3 + $0x88] sm:$0xf]
    %v79 = vld [vmem:[#allocation3 + $0x8c] sm:$0xf]
    %v80 = vld [vmem:[#allocation3 + $0x90] sm:$0xf]
    %v81 = vld [vmem:[#allocation3 + $0x94] sm:$0xf]
    %v82 = vld [vmem:[#allocation3 + $0x98] sm:$0xf]
    %v83 = vld [vmem:[#allocation3 + $0x9c] sm:$0xf]
    %v84 = vld [vmem:[#allocation3 + $0xa0] sm:$0xf]
    %v85 = vld [vmem:[#allocation3 + $0xa4] sm:$0xf]
    %v86 = vld [vmem:[#allocation3 + $0xa8] sm:$0xf]
    %v87 = vld [vmem:[#allocation3 + $0xac] sm:$0xf]
    %v88 = vld [vmem:[#allocation3 + $0xb0] sm:$0xf]
    %v89 = vld [vmem:[#allocation3 + $0xb4] sm:$0xf]
    %v90 = vld [vmem:[#allocation3 + $0xb8] sm:$0xf]
    %v91 = vld [vmem:[#allocation3 + $0xbc] sm:$0xf]
    %v92 = vld [vmem:[#allocation3 + $0xc0] sm:$0xf]
    %v93 = vld [vmem:[#allocation3 + $0xc4] sm:$0xf]
    %v94 = vld [vmem:[#allocation3 + $0xc8] sm:$0xf]
    %v95 = vld [vmem:[#allocation3 + $0xcc] sm:$0xf]
    %v96 = vld [vmem:[#allocation3 + $0xd0] sm:$0xf]
    %v97 = vld [vmem:[#allocation3 + $0xd4] sm:$0xf]
    %v98 = vld [vmem:[#allocation3 + $0xd8] sm:$0xf]
    %v99 = vld [vmem:[#allocation3 + $0xdc] sm:$0xf]
    %v100 = vld [vmem:[#allocation3 + $0xe0] sm:$0xf]
    %v101 = vld [vmem:[#allocation3 + $0xe4] sm:$0xf]
    %v102 = vld [vmem:[#allocation3 + $0xe8] sm:$0xf]
    %v103 = vld [vmem:[#allocation3 + $0xec] sm:$0xf]
    %v104 = vld [vmem:[#allocation3 + $0xf0] sm:$0xf]
    %v105 = vld [vmem:[#allocation3 + $0xf4] sm:$0xf]
    %v106 = vld [vmem:[#allocation3 + $0xf8] sm:$0xf]
    %v107 = vld [vmem:[#allocation3 + $0xfc] sm:$0xf]
    %vm108 = vcmask 31744
    %109 = vst.msk [vmem:[#allocation2] sm:$0xff] %vm108, 0
    %110 = vst.msk [vmem:[#allocation2 + $0x8] sm:$0xff] %vm108, 0
    %111 = vst.msk [vmem:[#allocation2 + $0x10] sm:$0xff] %vm108, 0
    %112 = vst.msk [vmem:[#allocation2 + $0x1b0] sm:$0xff] %vm108, 0
    %113 = vst.msk [vmem:[#allocation2 + $0x1b8] sm:$0xff] %vm108, 0
    %114 = vst.msk [vmem:[#allocation2 + $0x1c0] sm:$0xff] %vm108, 0
    %s115 = scalar_lea.vmem [#allocation2], 408
    %116 = vst.msk [vmem:[%s115] sm:$0xff] %vm108, 0
    %117 = vst.msk [vmem:[%s115 + $0x8] sm:$0xff] %vm108, 0
    %118 = vst.msk [vmem:[%s115 + $0x10] sm:$0xff] %vm108, 0
    %119 = vst.msk [vmem:[%s115 + $0x1b0] sm:$0xff] %vm108, 0
    %120 = vst.msk [vmem:[%s115 + $0x1b8] sm:$0xff] %vm108, 0
    %121 = vst.msk [vmem:[%s115 + $0x1c0] sm:$0xff] %vm108, 0
    %122 = vst.msk [vmem:[#allocation2] sm:$0xff] %vm108, 0
    %123 = vst.msk [vmem:[#allocation2 + $0x18] sm:$0xff] %vm108, 0
    %124 = vst.msk [vmem:[#allocation2 + $0x30] sm:$0xff] %vm108, 0
    %125 = vst.msk [vmem:[#allocation2 + $0x48] sm:$0xff] %vm108, 0
    %126 = vst.msk [vmem:[#allocation2 + $0x60] sm:$0xff] %vm108, 0
    %127 = vst.msk [vmem:[#allocation2 + $0x78] sm:$0xff] %vm108, 0
    %128 = vst.msk [vmem:[#allocation2 + $0x90] sm:$0xff] %vm108, 0
    %129 = vst.msk [vmem:[#allocation2 + $0xa8] sm:$0xff] %vm108, 0
    %130 = vst.msk [vmem:[#allocation2 + $0xc0] sm:$0xff] %vm108, 0
    %131 = vst.msk [vmem:[#allocation2 + $0xd8] sm:$0xff] %vm108, 0
    %132 = vst.msk [vmem:[#allocation2 + $0xf0] sm:$0xff] %vm108, 0
    %133 = vst.msk [vmem:[#allocation2 + $0x108] sm:$0xff] %vm108, 0
    %134 = vst.msk [vmem:[#allocation2 + $0x120] sm:$0xff] %vm108, 0
    %135 = vst.msk [vmem:[#allocation2 + $0x138] sm:$0xff] %vm108, 0
    %136 = vst.msk [vmem:[#allocation2 + $0x150] sm:$0xff] %vm108, 0
    %137 = vst.msk [vmem:[#allocation2 + $0x168] sm:$0xff] %vm108, 0
    %138 = vst.msk [vmem:[#allocation2 + $0x180] sm:$0xff] %vm108, 0
    %139 = vst.msk [vmem:[#allocation2 + $0x198] sm:$0xff] %vm108, 0
    %140 = vst.msk [vmem:[#allocation2 + $0x1b0] sm:$0xff] %vm108, 0
    %141 = vst.msk [vmem:[#allocation2 + $0x1c8] sm:$0xff] %vm108, 0
    %142 = vst.msk [vmem:[#allocation2 + $0x1e0] sm:$0xff] %vm108, 0
    %143 = vst.msk [vmem:[#allocation2 + $0x1f8] sm:$0xff] %vm108, 0
    %144 = vst.msk [vmem:[#allocation2 + $0x210] sm:$0xff] %vm108, 0
    %145 = vst.msk [vmem:[#allocation2 + $0x228] sm:$0xff] %vm108, 0
    %146 = vst.msk [vmem:[#allocation2 + $0x240] sm:$0xff] %vm108, 0
    %147 = vst.msk [vmem:[#allocation2 + $0x258] sm:$0xff] %vm108, 0
    %148 = vst.msk [vmem:[#allocation2 + $0x270] sm:$0xff] %vm108, 0
    %149 = vst.msk [vmem:[#allocation2 + $0x288] sm:$0xff] %vm108, 0
    %150 = vst.msk [vmem:[#allocation2 + $0x2a0] sm:$0xff] %vm108, 0
    %151 = vst.msk [vmem:[#allocation2 + $0x2b8] sm:$0xff] %vm108, 0
    %152 = vst.msk [vmem:[#allocation2 + $0x2d0] sm:$0xff] %vm108, 0
    %153 = vst.msk [vmem:[#allocation2 + $0x2e8] sm:$0xff] %vm108, 0
    %154 = vst.msk [vmem:[#allocation2 + $0x300] sm:$0xff] %vm108, 0
    %155 = vst.msk [vmem:[#allocation2 + $0x318] sm:$0xff] %vm108, 0
    %156 = vst.msk [vmem:[#allocation2 + $0x330] sm:$0xff] %vm108, 0
    %157 = vst.msk [vmem:[#allocation2 + $0x348] sm:$0xff] %vm108, 0
    %158 = vst.msk [vmem:[#allocation2 + $0x10] sm:$0xff] %vm108, 0
    %159 = vst.msk [vmem:[#allocation2 + $0x28] sm:$0xff] %vm108, 0
    %160 = vst.msk [vmem:[#allocation2 + $0x40] sm:$0xff] %vm108, 0
    %161 = vst.msk [vmem:[#allocation2 + $0x58] sm:$0xff] %vm108, 0
    %162 = vst.msk [vmem:[#allocation2 + $0x70] sm:$0xff] %vm108, 0
    %163 = vst.msk [vmem:[#allocation2 + $0x88] sm:$0xff] %vm108, 0
    %164 = vst.msk [vmem:[#allocation2 + $0xa0] sm:$0xff] %vm108, 0
    %165 = vst.msk [vmem:[#allocation2 + $0xb8] sm:$0xff] %vm108, 0
    %166 = vst.msk [vmem:[#allocation2 + $0xd0] sm:$0xff] %vm108, 0
    %167 = vst.msk [vmem:[#allocation2 + $0xe8] sm:$0xff] %vm108, 0
    %168 = vst.msk [vmem:[#allocation2 + $0x100] sm:$0xff] %vm108, 0
    %169 = vst.msk [vmem:[#allocation2 + $0x118] sm:$0xff] %vm108, 0
    %170 = vst.msk [vmem:[#allocation2 + $0x130] sm:$0xff] %vm108, 0
    %171 = vst.msk [vmem:[#allocation2 + $0x148] sm:$0xff] %vm108, 0
    %172 = vst.msk [vmem:[#allocation2 + $0x160] sm:$0xff] %vm108, 0
    %173 = vst.msk [vmem:[#allocation2 + $0x178] sm:$0xff] %vm108, 0
    %174 = vst.msk [vmem:[#allocation2 + $0x190] sm:$0xff] %vm108, 0
    %175 = vst.msk [vmem:[#allocation2 + $0x1a8] sm:$0xff] %vm108, 0
    %176 = vst.msk [vmem:[#allocation2 + $0x1c0] sm:$0xff] %vm108, 0
    %177 = vst.msk [vmem:[#allocation2 + $0x1d8] sm:$0xff] %vm108, 0
    %178 = vst.msk [vmem:[#allocation2 + $0x1f0] sm:$0xff] %vm108, 0
    %179 = vst.msk [vmem:[#allocation2 + $0x208] sm:$0xff] %vm108, 0
    %180 = vst.msk [vmem:[#allocation2 + $0x220] sm:$0xff] %vm108, 0
    %181 = vst.msk [vmem:[#allocation2 + $0x238] sm:$0xff] %vm108, 0
    %182 = vst.msk [vmem:[#allocation2 + $0x250] sm:$0xff] %vm108, 0
    %183 = vst.msk [vmem:[#allocation2 + $0x268] sm:$0xff] %vm108, 0
    %184 = vst.msk [vmem:[#allocation2 + $0x280] sm:$0xff] %vm108, 0
    %185 = vst.msk [vmem:[#allocation2 + $0x298] sm:$0xff] %vm108, 0
    %186 = vst.msk [vmem:[#allocation2 + $0x2b0] sm:$0xff] %vm108, 0
    %187 = vst.msk [vmem:[#allocation2 + $0x2c8] sm:$0xff] %vm108, 0
    %188 = vst.msk [vmem:[#allocation2 + $0x2e0] sm:$0xff] %vm108, 0
    %189 = vst.msk [vmem:[#allocation2 + $0x2f8] sm:$0xff] %vm108, 0
    %190 = vst.msk [vmem:[#allocation2 + $0x310] sm:$0xff] %vm108, 0
    %191 = vst.msk [vmem:[#allocation2 + $0x328] sm:$0xff] %vm108, 0
    %192 = vst.msk [vmem:[#allocation2 + $0x340] sm:$0xff] %vm108, 0
    %193 = vst.msk [vmem:[#allocation2 + $0x358] sm:$0xff] %vm108, 0
    %v258 = vunpack.c.l.b16 %v44
    %v259 = vunpack.c.l.b16 %v45
    %v260 = vunpack.c.l.b16 %v46
    %v261 = vunpack.c.l.b16 %v47
    %v262 = vunpack.c.l.b16 %v48
    %v263 = vunpack.c.l.b16 %v49
    %v264 = vunpack.c.l.b16 %v50
    %v265 = vunpack.c.l.b16 %v51
    %v266 = vunpack.c.l.b16 %v52
    %v267 = vunpack.c.l.b16 %v53
    %v268 = vunpack.c.l.b16 %v54
    %v269 = vunpack.c.l.b16 %v55
    %v270 = vunpack.c.l.b16 %v56
    %v271 = vunpack.c.l.b16 %v57
    %v272 = vunpack.c.l.b16 %v58
    %v273 = vunpack.c.l.b16 %v59
    %v274 = vunpack.c.l.b16 %v60
    %v275 = vunpack.c.l.b16 %v61
    %v276 = vunpack.c.l.b16 %v62
    %v277 = vunpack.c.l.b16 %v63
    %v278 = vunpack.c.l.b16 %v64
    %v279 = vunpack.c.l.b16 %v65
    %v280 = vunpack.c.l.b16 %v66
    %v281 = vunpack.c.l.b16 %v67
    %v282 = vunpack.c.l.b16 %v68
    %v283 = vunpack.c.l.b16 %v69
    %v284 = vunpack.c.l.b16 %v70
    %v285 = vunpack.c.l.b16 %v71
    %v286 = vunpack.c.l.b16 %v72
    %v287 = vunpack.c.l.b16 %v73
    %v288 = vunpack.c.l.b16 %v74
    %v289 = vunpack.c.l.b16 %v75
    %v290 = vunpack.c.l.b16 %v76
    %v291 = vunpack.c.l.b16 %v77
    %v292 = vunpack.c.l.b16 %v78
    %v293 = vunpack.c.l.b16 %v79
    %v294 = vunpack.c.l.b16 %v80
    %v295 = vunpack.c.l.b16 %v81
    %v296 = vunpack.c.l.b16 %v82
    %v297 = vunpack.c.l.b16 %v83
    %v298 = vunpack.c.l.b16 %v84
    %v299 = vunpack.c.l.b16 %v85
    %v300 = vunpack.c.l.b16 %v86
    %v301 = vunpack.c.l.b16 %v87
    %v302 = vunpack.c.l.b16 %v88
    %v303 = vunpack.c.l.b16 %v89
    %v304 = vunpack.c.l.b16 %v90
    %v305 = vunpack.c.l.b16 %v91
    %v306 = vunpack.c.l.b16 %v92
    %v307 = vunpack.c.l.b16 %v93
    %v308 = vunpack.c.l.b16 %v94
    %v309 = vunpack.c.l.b16 %v95
    %v310 = vunpack.c.l.b16 %v96
    %v311 = vunpack.c.l.b16 %v97
    %v312 = vunpack.c.l.b16 %v98
    %v313 = vunpack.c.l.b16 %v99
    %v314 = vunpack.c.l.b16 %v100
    %v315 = vunpack.c.l.b16 %v101
    %v316 = vunpack.c.l.b16 %v102
    %v317 = vunpack.c.l.b16 %v103
    %v318 = vunpack.c.l.b16 %v104
    %v319 = vunpack.c.l.b16 %v105
    %v320 = vunpack.c.l.b16 %v106
    %v321 = vunpack.c.l.b16 %v107
    %v322 = vpack.c.b16 %v259, %v258
    %v323 = vpack.c.b16 %v261, %v260
    %v324 = vpack.c.b16 %v263, %v262
    %v325 = vpack.c.b16 %v265, %v264
    %v326 = vpack.c.b16 %v267, %v266
    %v327 = vpack.c.b16 %v269, %v268
    %v328 = vpack.c.b16 %v271, %v270
    %v329 = vpack.c.b16 %v273, %v272
    %v330 = vpack.c.b16 %v275, %v274
    %v331 = vpack.c.b16 %v277, %v276
    %v332 = vpack.c.b16 %v279, %v278
    %v333 = vpack.c.b16 %v281, %v280
    %v334 = vpack.c.b16 %v283, %v282
    %v335 = vpack.c.b16 %v285, %v284
    %v336 = vpack.c.b16 %v287, %v286
    %v337 = vpack.c.b16 %v289, %v288
    %v338 = vpack.c.b16 %v291, %v290
    %v339 = vpack.c.b16 %v293, %v292
    %v340 = vpack.c.b16 %v295, %v294
    %v341 = vpack.c.b16 %v297, %v296
    %v342 = vpack.c.b16 %v299, %v298
    %v343 = vpack.c.b16 %v301, %v300
    %v344 = vpack.c.b16 %v303, %v302
    %v345 = vpack.c.b16 %v305, %v304
    %v346 = vpack.c.b16 %v307, %v306
    %v347 = vpack.c.b16 %v309, %v308
    %v348 = vpack.c.b16 %v311, %v310
    %v349 = vpack.c.b16 %v313, %v312
    %v350 = vpack.c.b16 %v315, %v314
    %v351 = vpack.c.b16 %v317, %v316
    %v352 = vpack.c.b16 %v319, %v318
    %v353 = vpack.c.b16 %v321, %v320
    %s386 = scalar_lea.vmem [#allocation2], 24
    %387 = vst.msk [vmem:[%s386 + $0x8] sm:$0xff] %vm108, %v322
    %388 = vst.msk [vmem:[%s386 + $0x20] sm:$0xff] %vm108, %v323
    %389 = vst.msk [vmem:[%s386 + $0x38] sm:$0xff] %vm108, %v324
    %390 = vst.msk [vmem:[%s386 + $0x50] sm:$0xff] %vm108, %v325
    %391 = vst.msk [vmem:[%s386 + $0x68] sm:$0xff] %vm108, %v326
    %392 = vst.msk [vmem:[%s386 + $0x80] sm:$0xff] %vm108, %v327
    %393 = vst.msk [vmem:[%s386 + $0x98] sm:$0xff] %vm108, %v328
    %394 = vst.msk [vmem:[%s386 + $0xb0] sm:$0xff] %vm108, %v329
    %395 = vst.msk [vmem:[%s386 + $0xc8] sm:$0xff] %vm108, %v330
    %396 = vst.msk [vmem:[%s386 + $0xe0] sm:$0xff] %vm108, %v331
    %397 = vst.msk [vmem:[%s386 + $0xf8] sm:$0xff] %vm108, %v332
    %398 = vst.msk [vmem:[%s386 + $0x110] sm:$0xff] %vm108, %v333
    %399 = vst.msk [vmem:[%s386 + $0x128] sm:$0xff] %vm108, %v334
    %400 = vst.msk [vmem:[%s386 + $0x140] sm:$0xff] %vm108, %v335
    %401 = vst.msk [vmem:[%s386 + $0x158] sm:$0xff] %vm108, %v336
    %402 = vst.msk [vmem:[%s386 + $0x170] sm:$0xff] %vm108, %v337
    %403 = vst.msk [vmem:[%s386 + $0x1b8] sm:$0xff] %vm108, %v338
    %404 = vst.msk [vmem:[%s386 + $0x1d0] sm:$0xff] %vm108, %v339
    %405 = vst.msk [vmem:[%s386 + $0x1e8] sm:$0xff] %vm108, %v340
    %406 = vst.msk [vmem:[%s386 + $0x200] sm:$0xff] %vm108, %v341
    %407 = vst.msk [vmem:[%s386 + $0x218] sm:$0xff] %vm108, %v342
    %408 = vst.msk [vmem:[%s386 + $0x230] sm:$0xff] %vm108, %v343
    %409 = vst.msk [vmem:[%s386 + $0x248] sm:$0xff] %vm108, %v344
    %410 = vst.msk [vmem:[%s386 + $0x260] sm:$0xff] %vm108, %v345
    %411 = vst.msk [vmem:[%s386 + $0x278] sm:$0xff] %vm108, %v346
    %412 = vst.msk [vmem:[%s386 + $0x290] sm:$0xff] %vm108, %v347
    %413 = vst.msk [vmem:[%s386 + $0x2a8] sm:$0xff] %vm108, %v348
    %414 = vst.msk [vmem:[%s386 + $0x2c0] sm:$0xff] %vm108, %v349
    %415 = vst.msk [vmem:[%s386 + $0x2d8] sm:$0xff] %vm108, %v350
    %416 = vst.msk [vmem:[%s386 + $0x2f0] sm:$0xff] %vm108, %v351
    %417 = vst.msk [vmem:[%s386 + $0x308] sm:$0xff] %vm108, %v352
    %418 = vst.msk [vmem:[%s386 + $0x320] sm:$0xff] %vm108, %v353
    %v419 = vld [vmem:[#allocation6] sm:$0x3]
    %v420 = vld [vmem:[#allocation6 + $0x2] sm:$0x3]
    %v421 = vld [vmem:[#allocation6 + $0x4] sm:$0x3]
    %v422 = vld [vmem:[#allocation6 + $0x6] sm:$0x3]
    %v423 = vld [vmem:[#allocation6 + $0x8] sm:$0x3]
    %v424 = vld [vmem:[#allocation6 + $0xa] sm:$0x3]
    %v425 = vld [vmem:[#allocation6 + $0xc] sm:$0x3]
    %v426 = vld [vmem:[#allocation6 + $0xe] sm:$0x3]
    %v427 = vld [vmem:[#allocation6 + $0x10] sm:$0x3]
    %v428 = vld [vmem:[#allocation2] sm:$0x80]
    %v429 = vld [vmem:[#allocation2 + $0x8] sm:$0xff]
    %v430 = vld [vmem:[#allocation2 + $0x18] sm:$0x80]
    %v431 = vld [vmem:[#allocation2 + $0x20] sm:$0xff]
    %v432 = vld [vmem:[#allocation2 + $0x30] sm:$0x80]
    %v433 = vld [vmem:[#allocation2 + $0x38] sm:$0xff]
    %v434 = vld [vmem:[#allocation2 + $0x48] sm:$0x80]
    %v435 = vld [vmem:[#allocation2 + $0x50] sm:$0xff]
    %v436 = vld [vmem:[#allocation2 + $0x60] sm:$0x80]
    %v437 = vld [vmem:[#allocation2 + $0x68] sm:$0xff]
    %v438 = vld [vmem:[#allocation2 + $0x78] sm:$0x80]
    %v439 = vld [vmem:[#allocation2 + $0x80] sm:$0xff]
    %v440 = vld [vmem:[#allocation2 + $0x90] sm:$0x80]
    %v441 = vld [vmem:[#allocation2 + $0x98] sm:$0xff]
    %v442 = vld [vmem:[#allocation2 + $0xa8] sm:$0x80]
    %v443 = vld [vmem:[#allocation2 + $0xb0] sm:$0xff]
    %v444 = vld [vmem:[#allocation2 + $0xc0] sm:$0x80]
    %v445 = vld [vmem:[#allocation2 + $0xc8] sm:$0xff]
    %v446 = vld [vmem:[#allocation2 + $0xd8] sm:$0x80]
    %v447 = vld [vmem:[#allocation2 + $0xe0] sm:$0xff]
    %v448 = vld [vmem:[#allocation2 + $0xf0] sm:$0x80]
    %v449 = vld [vmem:[#allocation2 + $0xf8] sm:$0xff]
    %v450 = vld [vmem:[#allocation2 + $0x108] sm:$0x80]
    %v451 = vld [vmem:[#allocation2 + $0x110] sm:$0xff]
    %v452 = vld [vmem:[#allocation2 + $0x120] sm:$0x80]
    %v453 = vld [vmem:[#allocation2 + $0x128] sm:$0xff]
    %v454 = vld [vmem:[#allocation2 + $0x138] sm:$0x80]
    %v455 = vld [vmem:[#allocation2 + $0x140] sm:$0xff]
    %v456 = vld [vmem:[#allocation2 + $0x150] sm:$0x80]
    %v457 = vld [vmem:[#allocation2 + $0x158] sm:$0xff]
    %v458 = vld [vmem:[#allocation2 + $0x168] sm:$0x80]
    %v459 = vld [vmem:[#allocation2 + $0x170] sm:$0xff]
    %v460 = vld [vmem:[#allocation2 + $0x180] sm:$0x80]
    %v461 = vld [vmem:[#allocation2 + $0x188] sm:$0xff]
    %v462 = vld [vmem:[#allocation2 + $0x198] sm:$0x80]
    %v463 = vld [vmem:[#allocation2 + $0x1a0] sm:$0xff]
    %v464 = vld [vmem:[#allocation2 + $0x1b0] sm:$0x80]
    %v465 = vld [vmem:[#allocation2 + $0x1b8] sm:$0xff]
    %v466 = vld [vmem:[#allocation2 + $0x1c8] sm:$0x80]
    %v467 = vld [vmem:[#allocation2 + $0x1d0] sm:$0xff]
    %v468 = vld [vmem:[#allocation2 + $0x1e0] sm:$0x80]
    %v469 = vld [vmem:[#allocation2 + $0x1e8] sm:$0xff]
    %v470 = vld [vmem:[#allocation2 + $0x1f8] sm:$0x80]
    %v471 = vld [vmem:[#allocation2 + $0x200] sm:$0xff]
    %v472 = vld [vmem:[#allocation2 + $0x210] sm:$0x80]
    %v473 = vld [vmem:[#allocation2 + $0x218] sm:$0xff]
    %v474 = vld [vmem:[#allocation2 + $0x228] sm:$0x80]
    %v475 = vld [vmem:[#allocation2 + $0x230] sm:$0xff]
    %v476 = vld [vmem:[#allocation2 + $0x240] sm:$0x80]
    %v477 = vld [vmem:[#allocation2 + $0x248] sm:$0xff]
    %v478 = vld [vmem:[#allocation2 + $0x258] sm:$0x80]
    %v479 = vld [vmem:[#allocation2 + $0x260] sm:$0xff]
    %v480 = vld [vmem:[#allocation2 + $0x270] sm:$0x80]
    %v481 = vld [vmem:[#allocation2 + $0x278] sm:$0xff]
    %v482 = vld [vmem:[#allocation2 + $0x288] sm:$0x80]
    %v483 = vld [vmem:[#allocation2 + $0x290] sm:$0xff]
    %v484 = vld [vmem:[#allocation2 + $0x2a0] sm:$0x80]
    %v485 = vld [vmem:[#allocation2 + $0x2a8] sm:$0xff]
    %v486 = vld [vmem:[#allocation2 + $0x2b8] sm:$0x80]
    %v487 = vld [vmem:[#allocation2 + $0x2c0] sm:$0xff]
    %v488 = vld [vmem:[#allocation2 + $0x2d0] sm:$0x80]
    %v489 = vld [vmem:[#allocation2 + $0x2d8] sm:$0xff]
    %v490 = vld [vmem:[#allocation2 + $0x2e8] sm:$0x80]
    %v491 = vld [vmem:[#allocation2 + $0x2f0] sm:$0xff]
    %v492 = vld [vmem:[#allocation2 + $0x300] sm:$0x80]
    %v493 = vld [vmem:[#allocation2 + $0x308] sm:$0xff]
    %v494 = vld [vmem:[#allocation2 + $0x318] sm:$0x80]
    %v495 = vld [vmem:[#allocation2 + $0x320] sm:$0xff]
    %v496 = vld [vmem:[#allocation2 + $0x330] sm:$0x80]
    %v497 = vld [vmem:[#allocation2 + $0x338] sm:$0xff]
    %v498 = vld [vmem:[#allocation2 + $0x348] sm:$0x80]
    %v499 = vld [vmem:[#allocation2 + $0x350] sm:$0xff]
    %v500 = vld [vmem:[#allocation2 + $0x10] sm:$0x1]
    %v501 = vld [vmem:[#allocation2 + $0x28] sm:$0x1]
    %v502 = vld [vmem:[#allocation2 + $0x40] sm:$0x1]
    %v503 = vld [vmem:[#allocation2 + $0x58] sm:$0x1]
    %v504 = vld [vmem:[#allocation2 + $0x70] sm:$0x1]
    %v505 = vld [vmem:[#allocation2 + $0x88] sm:$0x1]
    %v506 = vld [vmem:[#allocation2 + $0xa0] sm:$0x1]
    %v507 = vld [vmem:[#allocation2 + $0xb8] sm:$0x1]
    %v508 = vld [vmem:[#allocation2 + $0xd0] sm:$0x1]
    %v509 = vld [vmem:[#allocation2 + $0xe8] sm:$0x1]
    %v510 = vld [vmem:[#allocation2 + $0x100] sm:$0x1]
    %v511 = vld [vmem:[#allocation2 + $0x118] sm:$0x1]
    %v512 = vld [vmem:[#allocation2 + $0x130] sm:$0x1]
    %v513 = vld [vmem:[#allocation2 + $0x148] sm:$0x1]
    %v514 = vld [vmem:[#allocation2 + $0x160] sm:$0x1]
    %v515 = vld [vmem:[#allocation2 + $0x178] sm:$0x1]
    %v516 = vld [vmem:[#allocation2 + $0x190] sm:$0x1]
    %v517 = vld [vmem:[#allocation2 + $0x1a8] sm:$0x1]
    %v518 = vld [vmem:[#allocation2 + $0x1c0] sm:$0x1]
    %v519 = vld [vmem:[#allocation2 + $0x1d8] sm:$0x1]
    %v520 = vld [vmem:[#allocation2 + $0x1f0] sm:$0x1]
    %v521 = vld [vmem:[#allocation2 + $0x208] sm:$0x1]
    %v522 = vld [vmem:[#allocation2 + $0x220] sm:$0x1]
    %v523 = vld [vmem:[#allocation2 + $0x238] sm:$0x1]
    %v524 = vld [vmem:[#allocation2 + $0x250] sm:$0x1]
    %v525 = vld [vmem:[#allocation2 + $0x268] sm:$0x1]
    %v526 = vld [vmem:[#allocation2 + $0x280] sm:$0x1]
    %v527 = vld [vmem:[#allocation2 + $0x298] sm:$0x1]
    %v528 = vld [vmem:[#allocation2 + $0x2b0] sm:$0x1]
    %v529 = vld [vmem:[#allocation2 + $0x2c8] sm:$0x1]
    %v530 = vld [vmem:[#allocation2 + $0x2e0] sm:$0x1]
    %v531 = vld [vmem:[#allocation2 + $0x2f8] sm:$0x1]
    %v532 = vld [vmem:[#allocation2 + $0x310] sm:$0x1]
    %v533 = vld [vmem:[#allocation2 + $0x328] sm:$0x1]
    %v534 = vld [vmem:[#allocation2 + $0x340] sm:$0x1]
    %v535 = vld [vmem:[#allocation2 + $0x358] sm:$0x1]
    %vm536 = vsmask.f32 256
    %v538 = vshrl.u32 %v428, 16
    %v540 = vrot.slane %v538, 7
    %v542 = vshrl.u32 %v429, 16
    %v544 = vrot.slane %v542, 7
    %v545 = vshll.u32 %v429, 16
    %v547 = vor.u32 %v544, %v545
    %v548 = vsel %vm536, %v540, %v547
    %v550 = vshrl.u32 %v430, 16
    %v552 = vrot.slane %v550, 7
    %v554 = vshrl.u32 %v431, 16
    %v556 = vrot.slane %v554, 7
    %v557 = vshll.u32 %v431, 16
    %v559 = vor.u32 %v556, %v557
    %v560 = vsel %vm536, %v552, %v559
    %v562 = vshrl.u32 %v432, 16
    %v564 = vrot.slane %v562, 7
    %v566 = vshrl.u32 %v433, 16
    %v568 = vrot.slane %v566, 7
    %v569 = vshll.u32 %v433, 16
    %v571 = vor.u32 %v568, %v569
    %v572 = vsel %vm536, %v564, %v571
    %v574 = vshrl.u32 %v434, 16
    %v576 = vrot.slane %v574, 7
    %v578 = vshrl.u32 %v435, 16
    %v580 = vrot.slane %v578, 7
    %v581 = vshll.u32 %v435, 16
    %v583 = vor.u32 %v580, %v581
    %v584 = vsel %vm536, %v576, %v583
    %v586 = vshrl.u32 %v436, 16
    %v588 = vrot.slane %v586, 7
    %v590 = vshrl.u32 %v437, 16
    %v592 = vrot.slane %v590, 7
    %v593 = vshll.u32 %v437, 16
    %v595 = vor.u32 %v592, %v593
    %v596 = vsel %vm536, %v588, %v595
    %v598 = vshrl.u32 %v438, 16
    %v600 = vrot.slane %v598, 7
    %v602 = vshrl.u32 %v439, 16
    %v604 = vrot.slane %v602, 7
    %v605 = vshll.u32 %v439, 16
    %v607 = vor.u32 %v604, %v605
    %v608 = vsel %vm536, %v600, %v607
    %v610 = vshrl.u32 %v440, 16
    %v612 = vrot.slane %v610, 7
    %v614 = vshrl.u32 %v441, 16
    %v616 = vrot.slane %v614, 7
    %v617 = vshll.u32 %v441, 16
    %v619 = vor.u32 %v616, %v617
    %v620 = vsel %vm536, %v612, %v619
    %v622 = vshrl.u32 %v442, 16
    %v624 = vrot.slane %v622, 7
    %v626 = vshrl.u32 %v443, 16
    %v628 = vrot.slane %v626, 7
    %v629 = vshll.u32 %v443, 16
    %v631 = vor.u32 %v628, %v629
    %v632 = vsel %vm536, %v624, %v631
    %v634 = vshrl.u32 %v444, 16
    %v636 = vrot.slane %v634, 7
    %v638 = vshrl.u32 %v445, 16
    %v640 = vrot.slane %v638, 7
    %v641 = vshll.u32 %v445, 16
    %v643 = vor.u32 %v640, %v641
    %v644 = vsel %vm536, %v636, %v643
    %v646 = vshrl.u32 %v446, 16
    %v648 = vrot.slane %v646, 7
    %v650 = vshrl.u32 %v447, 16
    %v652 = vrot.slane %v650, 7
    %v653 = vshll.u32 %v447, 16
    %v655 = vor.u32 %v652, %v653
    %v656 = vsel %vm536, %v648, %v655
    %v658 = vshrl.u32 %v448, 16
    %v660 = vrot.slane %v658, 7
    %v662 = vshrl.u32 %v449, 16
    %v664 = vrot.slane %v662, 7
    %v665 = vshll.u32 %v449, 16
    %v667 = vor.u32 %v664, %v665
    %v668 = vsel %vm536, %v660, %v667
    %v670 = vshrl.u32 %v450, 16
    %v672 = vrot.slane %v670, 7
    %v674 = vshrl.u32 %v451, 16
    %v676 = vrot.slane %v674, 7
    %v677 = vshll.u32 %v451, 16
    %v679 = vor.u32 %v676, %v677
    %v680 = vsel %vm536, %v672, %v679
    %v682 = vshrl.u32 %v452, 16
    %v684 = vrot.slane %v682, 7
    %v686 = vshrl.u32 %v453, 16
    %v688 = vrot.slane %v686, 7
    %v689 = vshll.u32 %v453, 16
    %v691 = vor.u32 %v688, %v689
    %v692 = vsel %vm536, %v684, %v691
    %v694 = vshrl.u32 %v454, 16
    %v696 = vrot.slane %v694, 7
    %v698 = vshrl.u32 %v455, 16
    %v700 = vrot.slane %v698, 7
    %v701 = vshll.u32 %v455, 16
    %v703 = vor.u32 %v700, %v701
    %v704 = vsel %vm536, %v696, %v703
    %v706 = vshrl.u32 %v456, 16
    %v708 = vrot.slane %v706, 7
    %v710 = vshrl.u32 %v457, 16
    %v712 = vrot.slane %v710, 7
    %v713 = vshll.u32 %v457, 16
    %v715 = vor.u32 %v712, %v713
    %v716 = vsel %vm536, %v708, %v715
    %v718 = vshrl.u32 %v458, 16
    %v720 = vrot.slane %v718, 7
    %v722 = vshrl.u32 %v459, 16
    %v724 = vrot.slane %v722, 7
    %v725 = vshll.u32 %v459, 16
    %v727 = vor.u32 %v724, %v725
    %v728 = vsel %vm536, %v720, %v727
    %v730 = vshrl.u32 %v464, 16
    %v732 = vrot.slane %v730, 7
    %v734 = vshrl.u32 %v465, 16
    %v736 = vrot.slane %v734, 7
    %v737 = vshll.u32 %v465, 16
    %v739 = vor.u32 %v736, %v737
    %v740 = vsel %vm536, %v732, %v739
    %v742 = vshrl.u32 %v466, 16
    %v744 = vrot.slane %v742, 7
    %v746 = vshrl.u32 %v467, 16
    %v748 = vrot.slane %v746, 7
    %v749 = vshll.u32 %v467, 16
    %v751 = vor.u32 %v748, %v749
    %v752 = vsel %vm536, %v744, %v751
    %v754 = vshrl.u32 %v468, 16
    %v756 = vrot.slane %v754, 7
    %v758 = vshrl.u32 %v469, 16
    %v760 = vrot.slane %v758, 7
    %v761 = vshll.u32 %v469, 16
    %v763 = vor.u32 %v760, %v761
    %v764 = vsel %vm536, %v756, %v763
    %v766 = vshrl.u32 %v470, 16
    %v768 = vrot.slane %v766, 7
    %v770 = vshrl.u32 %v471, 16
    %v772 = vrot.slane %v770, 7
    %v773 = vshll.u32 %v471, 16
    %v775 = vor.u32 %v772, %v773
    %v776 = vsel %vm536, %v768, %v775
    %v778 = vshrl.u32 %v472, 16
    %v780 = vrot.slane %v778, 7
    %v782 = vshrl.u32 %v473, 16
    %v784 = vrot.slane %v782, 7
    %v785 = vshll.u32 %v473, 16
    %v787 = vor.u32 %v784, %v785
    %v788 = vsel %vm536, %v780, %v787
    %v790 = vshrl.u32 %v474, 16
    %v792 = vrot.slane %v790, 7
    %v794 = vshrl.u32 %v475, 16
    %v796 = vrot.slane %v794, 7
    %v797 = vshll.u32 %v475, 16
    %v799 = vor.u32 %v796, %v797
    %v800 = vsel %vm536, %v792, %v799
    %v802 = vshrl.u32 %v476, 16
    %v804 = vrot.slane %v802, 7
    %v806 = vshrl.u32 %v477, 16
    %v808 = vrot.slane %v806, 7
    %v809 = vshll.u32 %v477, 16
    %v811 = vor.u32 %v808, %v809
    %v812 = vsel %vm536, %v804, %v811
    %v814 = vshrl.u32 %v478, 16
    %v816 = vrot.slane %v814, 7
    %v818 = vshrl.u32 %v479, 16
    %v820 = vrot.slane %v818, 7
    %v821 = vshll.u32 %v479, 16
    %v823 = vor.u32 %v820, %v821
    %v824 = vsel %vm536, %v816, %v823
    %v826 = vshrl.u32 %v480, 16
    %v828 = vrot.slane %v826, 7
    %v830 = vshrl.u32 %v481, 16
    %v832 = vrot.slane %v830, 7
    %v833 = vshll.u32 %v481, 16
    %v835 = vor.u32 %v832, %v833
    %v836 = vsel %vm536, %v828, %v835
    %v838 = vshrl.u32 %v482, 16
    %v840 = vrot.slane %v838, 7
    %v842 = vshrl.u32 %v483, 16
    %v844 = vrot.slane %v842, 7
    %v845 = vshll.u32 %v483, 16
    %v847 = vor.u32 %v844, %v845
    %v848 = vsel %vm536, %v840, %v847
    %v850 = vshrl.u32 %v484, 16
    %v852 = vrot.slane %v850, 7
    %v854 = vshrl.u32 %v485, 16
    %v856 = vrot.slane %v854, 7
    %v857 = vshll.u32 %v485, 16
    %v859 = vor.u32 %v856, %v857
    %v860 = vsel %vm536, %v852, %v859
    %v862 = vshrl.u32 %v486, 16
    %v864 = vrot.slane %v862, 7
    %v866 = vshrl.u32 %v487, 16
    %v868 = vrot.slane %v866, 7
    %v869 = vshll.u32 %v487, 16
    %v871 = vor.u32 %v868, %v869
    %v872 = vsel %vm536, %v864, %v871
    %v874 = vshrl.u32 %v488, 16
    %v876 = vrot.slane %v874, 7
    %v878 = vshrl.u32 %v489, 16
    %v880 = vrot.slane %v878, 7
    %v881 = vshll.u32 %v489, 16
    %v883 = vor.u32 %v880, %v881
    %v884 = vsel %vm536, %v876, %v883
    %v886 = vshrl.u32 %v490, 16
    %v888 = vrot.slane %v886, 7
    %v890 = vshrl.u32 %v491, 16
    %v892 = vrot.slane %v890, 7
    %v893 = vshll.u32 %v491, 16
    %v895 = vor.u32 %v892, %v893
    %v896 = vsel %vm536, %v888, %v895
    %v898 = vshrl.u32 %v492, 16
    %v900 = vrot.slane %v898, 7
    %v902 = vshrl.u32 %v493, 16
    %v904 = vrot.slane %v902, 7
    %v905 = vshll.u32 %v493, 16
    %v907 = vor.u32 %v904, %v905
    %v908 = vsel %vm536, %v900, %v907
    %v910 = vshrl.u32 %v494, 16
    %v912 = vrot.slane %v910, 7
    %v914 = vshrl.u32 %v495, 16
    %v916 = vrot.slane %v914, 7
    %v917 = vshll.u32 %v495, 16
    %v919 = vor.u32 %v916, %v917
    %v920 = vsel %vm536, %v912, %v919
    %v921 = vsel %vm108, %v429, 0
    %v923 = vsel %vm108, %v431, 0
    %v925 = vsel %vm108, %v433, 0
    %v927 = vsel %vm108, %v435, 0
    %v929 = vsel %vm108, %v437, 0
    %v931 = vsel %vm108, %v439, 0
    %v933 = vsel %vm108, %v441, 0
    %v935 = vsel %vm108, %v443, 0
    %v937 = vsel %vm108, %v445, 0
    %v939 = vsel %vm108, %v447, 0
    %v941 = vsel %vm108, %v449, 0
    %v943 = vsel %vm108, %v451, 0
    %v945 = vsel %vm108, %v453, 0
    %v947 = vsel %vm108, %v455, 0
    %v949 = vsel %vm108, %v457, 0
    %v951 = vsel %vm108, %v459, 0
    %v953 = vsel %vm108, %v465, 0
    %v955 = vsel %vm108, %v467, 0
    %v957 = vsel %vm108, %v469, 0
    %v959 = vsel %vm108, %v471, 0
    %v961 = vsel %vm108, %v473, 0
    %v963 = vsel %vm108, %v475, 0
    %v965 = vsel %vm108, %v477, 0
    %v967 = vsel %vm108, %v479, 0
    %v969 = vsel %vm108, %v481, 0
    %v971 = vsel %vm108, %v483, 0
    %v973 = vsel %vm108, %v485, 0
    %v975 = vsel %vm108, %v487, 0
    %v977 = vsel %vm108, %v489, 0
    %v979 = vsel %vm108, %v491, 0
    %v981 = vsel %vm108, %v493, 0
    %v983 = vsel %vm108, %v495, 0
    %vm985 = vcmask 1041408
    %v987 = vsel %vm985, %v420, 0
    %989 = vmatprep.subr.bf16.mxu0 0
    %990 = vmatpush1.bf16.msra.mxu0 %v987
    %991 = vmatprep.subr.bf16.mxu0 0
    %992 = vmatpush1.bf16.msra.mxu0 0
    %993 = vmatprep.subr.bf16.mxu0 0
    %994 = vmatpush1.bf16.msra.mxu0 0
    %995 = vmatprep.subr.bf16.mxu0 0
    %996 = vmatpush1.bf16.msra.mxu0 0
    %997 = vmatprep.subr.bf16.mxu0 0
    %998 = vmatpush1.bf16.msra.mxu0 0
    %999 = vmatprep.subr.bf16.mxu0 0
    %1000 = vmatpush1.bf16.msra.mxu0 0
    %1001 = vmatprep.subr.bf16.mxu0 0
    %1002 = vmatpush1.bf16.msra.mxu0 0
    %1003 = vmatprep.subr.bf16.mxu0 0
    %1004 = vmatpush1.bf16.msra.mxu0 0
    %1005 = vmatprep.subr.bf16.mxu0 0
    %1006 = vmatpush1.bf16.msra.mxu0 0
    %1007 = vmatprep.subr.bf16.mxu0 0
    %1008 = vmatpush1.bf16.msra.mxu0 0
    %1009 = vmatprep.subr.bf16.mxu0 0
    %1010 = vmatpush1.bf16.msra.mxu0 0
    %1011 = vmatprep.subr.bf16.mxu0 0
    %1012 = vmatpush1.bf16.msra.mxu0 0
    %1013 = vmatprep.subr.bf16.mxu0 0
    %1014 = vmatpush1.bf16.msra.mxu0 0
    %1015 = vmatprep.subr.bf16.mxu0 0
    %1016 = vmatpush1.bf16.msra.mxu0 0
    %1017 = vmatprep.subr.bf16.mxu0 0
    %1018 = vmatpush1.bf16.msra.mxu0 0
    %1019 = vmatprep.subr.bf16.mxu0 0
    %1020 = vmatpush1.bf16.msra.mxu0 0
    %1021 = vmatprep.mubr.bf16.mxu0 0
    %1022 = vmatmul.mubr.bf16.gmra.mrb[0].mxu0 %v921
    %v1023 = vpop.f32.mrb[0].mxu0
    %v1024 = vadd.f32 0.0, %v1023
    %v1025 = vpop.f32.mrb[0].mxu0
    %v1026 = vpop.f32.mrb[0].mxu0
    %v1027 = vadd.f32 0.0, %v1026
    %v1028 = vpop.f32.mrb[0].mxu0
    %1029 = vmatprep.mubr.bf16.mxu0 0
    %1030 = vmatmul.mubr.bf16.gmra.mrb[0].mxu0 %v923
    %v1031 = vpop.f32.mrb[0].mxu0
    %v1032 = vadd.f32 0.0, %v1031
    %v1033 = vpop.f32.mrb[0].mxu0
    %v1034 = vpop.f32.mrb[0].mxu0
    %v1035 = vadd.f32 0.0, %v1034
    %v1036 = vpop.f32.mrb[0].mxu0
    %1037 = vmatprep.mubr.bf16.mxu0 0
    %1038 = vmatmul.mubr.bf16.gmra.mrb[0].mxu0 %v925
    %v1039 = vpop.f32.mrb[0].mxu0
    %v1040 = vadd.f32 0.0, %v1039
    %v1041 = vpop.f32.mrb[0].mxu0
    %v1042 = vpop.f32.mrb[0].mxu0
    %v1043 = vadd.f32 0.0, %v1042
    %v1044 = vpop.f32.mrb[0].mxu0
    %1045 = vmatprep.mubr.bf16.mxu0 0
    %1046 = vmatmul.mubr.bf16.gmra.mrb[0].mxu0 %v927
    %v1047 = vpop.f32.mrb[0].mxu0
    %v1048 = vadd.f32 0.0, %v1047
    %v1049 = vpop.f32.mrb[0].mxu0
    %v1050 = vpop.f32.mrb[0].mxu0
    %v1051 = vadd.f32 0.0, %v1050
    %v1052 = vpop.f32.mrb[0].mxu0
    %1053 = vmatprep.mubr.bf16.mxu0 0
    %1054 = vmatmul.mubr.bf16.gmra.mrb[0].mxu0 %v929
    %v1055 = vpop.f32.mrb[0].mxu0
    %v1056 = vadd.f32 0.0, %v1055
    %v1057 = vpop.f32.mrb[0].mxu0
    %v1058 = vpop.f32.mrb[0].mxu0
    %v1059 = vadd.f32 0.0, %v1058
    %v1060 = vpop.f32.mrb[0].mxu0
    %1061 = vmatprep.mubr.bf16.mxu0 0
    %1062 = vmatmul.mubr.bf16.gmra.mrb[0].mxu0 %v931
    %v1063 = vpop.f32.mrb[0].mxu0
    %v1064 = vadd.f32 0.0, %v1063
    %v1065 = vpop.f32.mrb[0].mxu0
    %v1066 = vpop.f32.mrb[0].mxu0
    %v1067 = vadd.f32 0.0, %v1066
    %v1068 = vpop.f32.mrb[0].mxu0
    %1069 = vmatprep.mubr.bf16.mxu0 0
    %1070 = vmatmul.mubr.bf16.gmra.mrb[0].mxu0 %v933
    %v1071 = vpop.f32.mrb[0].mxu0
    %v1072 = vadd.f32 0.0, %v1071
    %v1073 = vpop.f32.mrb[0].mxu0
    %v1074 = vpop.f32.mrb[0].mxu0
    %v1075 = vadd.f32 0.0, %v1074
    %v1076 = vpop.f32.mrb[0].mxu0
    %1077 = vmatprep.mubr.bf16.mxu0 0
    %1078 = vmatmul.mubr.bf16.gmra.mrb[0].mxu0 %v935
    %v1079 = vpop.f32.mrb[0].mxu0
    %v1080 = vadd.f32 0.0, %v1079
    %v1081 = vpop.f32.mrb[0].mxu0
    %v1082 = vpop.f32.mrb[0].mxu0
    %v1083 = vadd.f32 0.0, %v1082
    %v1084 = vpop.f32.mrb[0].mxu0
    %1085 = vmatprep.mubr.bf16.mxu0 0
    %1086 = vmatmul.mubr.bf16.gmra.mrb[0].mxu0 %v937
    %v1087 = vpop.f32.mrb[0].mxu0
    %v1088 = vadd.f32 0.0, %v1087
    %v1089 = vpop.f32.mrb[0].mxu0
    %v1090 = vpop.f32.mrb[0].mxu0
    %v1091 = vadd.f32 0.0, %v1090
    %v1092 = vpop.f32.mrb[0].mxu0
    %1093 = vmatprep.mubr.bf16.mxu0 0
    %1094 = vmatmul.mubr.bf16.gmra.mrb[0].mxu0 %v939
    %v1095 = vpop.f32.mrb[0].mxu0
    %v1096 = vadd.f32 0.0, %v1095
    %v1097 = vpop.f32.mrb[0].mxu0
    %v1098 = vpop.f32.mrb[0].mxu0
    %v1099 = vadd.f32 0.0, %v1098
    %v1100 = vpop.f32.mrb[0].mxu0
    %1101 = vmatprep.mubr.bf16.mxu0 0
    %1102 = vmatmul.mubr.bf16.gmra.mrb[0].mxu0 %v941
    %v1103 = vpop.f32.mrb[0].mxu0
    %v1104 = vadd.f32 0.0, %v1103
    %v1105 = vpop.f32.mrb[0].mxu0
    %v1106 = vpop.f32.mrb[0].mxu0
    %v1107 = vadd.f32 0.0, %v1106
    %v1108 = vpop.f32.mrb[0].mxu0
    %1109 = vmatprep.mubr.bf16.mxu0 0
    %1110 = vmatmul.mubr.bf16.gmra.mrb[0].mxu0 %v943
    %v1111 = vpop.f32.mrb[0].mxu0
    %v1112 = vadd.f32 0.0, %v1111
    %v1113 = vpop.f32.mrb[0].mxu0
    %v1114 = vpop.f32.mrb[0].mxu0
    %v1115 = vadd.f32 0.0, %v1114
    %v1116 = vpop.f32.mrb[0].mxu0
    %1117 = vmatprep.mubr.bf16.mxu0 0
    %1118 = vmatmul.mubr.bf16.gmra.mrb[0].mxu0 %v945
    %v1119 = vpop.f32.mrb[0].mxu0
    %v1120 = vadd.f32 0.0, %v1119
    %v1121 = vpop.f32.mrb[0].mxu0
    %v1122 = vpop.f32.mrb[0].mxu0
    %v1123 = vadd.f32 0.0, %v1122
    %v1124 = vpop.f32.mrb[0].mxu0
    %1125 = vmatprep.mubr.bf16.mxu0 0
    %1126 = vmatmul.mubr.bf16.gmra.mrb[0].mxu0 %v947
    %v1127 = vpop.f32.mrb[0].mxu0
    %v1128 = vadd.f32 0.0, %v1127
    %v1129 = vpop.f32.mrb[0].mxu0
    %v1130 = vpop.f32.mrb[0].mxu0
    %v1131 = vadd.f32 0.0, %v1130
    %v1132 = vpop.f32.mrb[0].mxu0
    %1133 = vmatprep.mubr.bf16.mxu0 0
    %1134 = vmatmul.mubr.bf16.gmra.mrb[0].mxu0 %v949
    %v1135 = vpop.f32.mrb[0].mxu0
    %v1136 = vadd.f32 0.0, %v1135
    %v1137 = vpop.f32.mrb[0].mxu0
    %v1138 = vpop.f32.mrb[0].mxu0
    %v1139 = vadd.f32 0.0, %v1138
    %v1140 = vpop.f32.mrb[0].mxu0
    %1141 = vmatprep.mubr.bf16.mxu0 0
    %1142 = vmatmul.mubr.bf16.gmra.mrb[0].mxu0 %v951
    %v1143 = vpop.f32.mrb[0].mxu0
    %v1144 = vadd.f32 0.0, %v1143
    %v1145 = vpop.f32.mrb[0].mxu0
    %v1146 = vpop.f32.mrb[0].mxu0
    %v1147 = vadd.f32 0.0, %v1146
    %v1148 = vpop.f32.mrb[0].mxu0
    %1149 = vmatprep.mubr.bf16.mxu0 0
    %1150 = vmatmul.mubr.bf16.gmra.mrb[0].mxu0 %v953
    %v1151 = vpop.f32.mrb[0].mxu0
    %v1152 = vadd.f32 0.0, %v1151
    %v1153 = vpop.f32.mrb[0].mxu0
    %v1154 = vpop.f32.mrb[0].mxu0
    %v1155 = vadd.f32 0.0, %v1154
    %v1156 = vpop.f32.mrb[0].mxu0
    %1157 = vmatprep.mubr.bf16.mxu0 0
    %1158 = vmatmul.mubr.bf16.gmra.mrb[0].mxu0 %v955
    %v1159 = vpop.f32.mrb[0].mxu0
    %v1160 = vadd.f32 0.0, %v1159
    %v1161 = vpop.f32.mrb[0].mxu0
    %v1162 = vpop.f32.mrb[0].mxu0
    %v1163 = vadd.f32 0.0, %v1162
    %v1164 = vpop.f32.mrb[0].mxu0
    %1165 = vmatprep.mubr.bf16.mxu0 0
    %1166 = vmatmul.mubr.bf16.gmra.mrb[0].mxu0 %v957
    %v1167 = vpop.f32.mrb[0].mxu0
    %v1168 = vadd.f32 0.0, %v1167
    %v1169 = vpop.f32.mrb[0].mxu0
    %v1170 = vpop.f32.mrb[0].mxu0
    %v1171 = vadd.f32 0.0, %v1170
    %v1172 = vpop.f32.mrb[0].mxu0
    %1173 = vmatprep.mubr.bf16.mxu0 0
    %1174 = vmatmul.mubr.bf16.gmra.mrb[0].mxu0 %v959
    %v1175 = vpop.f32.mrb[0].mxu0
    %v1176 = vadd.f32 0.0, %v1175
    %v1177 = vpop.f32.mrb[0].mxu0
    %v1178 = vpop.f32.mrb[0].mxu0
    %v1179 = vadd.f32 0.0, %v1178
    %v1180 = vpop.f32.mrb[0].mxu0
    %1181 = vmatprep.mubr.bf16.mxu0 0
    %1182 = vmatmul.mubr.bf16.gmra.mrb[0].mxu0 %v961
    %v1183 = vpop.f32.mrb[0].mxu0
    %v1184 = vadd.f32 0.0, %v1183
    %v1185 = vpop.f32.mrb[0].mxu0
    %v1186 = vpop.f32.mrb[0].mxu0
    %v1187 = vadd.f32 0.0, %v1186
    %v1188 = vpop.f32.mrb[0].mxu0
    %1189 = vmatprep.mubr.bf16.mxu0 0
    %1190 = vmatmul.mubr.bf16.gmra.mrb[0].mxu0 %v963
    %v1191 = vpop.f32.mrb[0].mxu0
    %v1192 = vadd.f32 0.0, %v1191
    %v1193 = vpop.f32.mrb[0].mxu0
    %v1194 = vpop.f32.mrb[0].mxu0
    %v1195 = vadd.f32 0.0, %v1194
    %v1196 = vpop.f32.mrb[0].mxu0
    %1197 = vmatprep.mubr.bf16.mxu0 0
    %1198 = vmatmul.mubr.bf16.gmra.mrb[0].mxu0 %v965
    %v1199 = vpop.f32.mrb[0].mxu0
    %v1200 = vadd.f32 0.0, %v1199
    %v1201 = vpop.f32.mrb[0].mxu0
    %v1202 = vpop.f32.mrb[0].mxu0
    %v1203 = vadd.f32 0.0, %v1202
    %v1204 = vpop.f32.mrb[0].mxu0
    %1205 = vmatprep.mubr.bf16.mxu0 0
    %1206 = vmatmul.mubr.bf16.gmra.mrb[0].mxu0 %v967
    %v1207 = vpop.f32.mrb[0].mxu0
    %v1208 = vadd.f32 0.0, %v1207
    %v1209 = vpop.f32.mrb[0].mxu0
    %v1210 = vpop.f32.mrb[0].mxu0
    %v1211 = vadd.f32 0.0, %v1210
    %v1212 = vpop.f32.mrb[0].mxu0
    %1213 = vmatprep.mubr.bf16.mxu0 0
    %1214 = vmatmul.mubr.bf16.gmra.mrb[0].mxu0 %v969
    %v1215 = vpop.f32.mrb[0].mxu0
    %v1216 = vadd.f32 0.0, %v1215
    %v1217 = vpop.f32.mrb[0].mxu0
    %v1218 = vpop.f32.mrb[0].mxu0
    %v1219 = vadd.f32 0.0, %v1218
    %v1220 = vpop.f32.mrb[0].mxu0
    %1221 = vmatprep.mubr.bf16.mxu0 0
    %1222 = vmatmul.mubr.bf16.gmra.mrb[0].mxu0 %v971
    %v1223 = vpop.f32.mrb[0].mxu0
    %v1224 = vadd.f32 0.0, %v1223
    %v1225 = vpop.f32.mrb[0].mxu0
    %v1226 = vpop.f32.mrb[0].mxu0
    %v1227 = vadd.f32 0.0, %v1226
    %v1228 = vpop.f32.mrb[0].mxu0
    %1229 = vmatprep.mubr.bf16.mxu0 0
    %1230 = vmatmul.mubr.bf16.gmra.mrb[0].mxu0 %v973
    %v1231 = vpop.f32.mrb[0].mxu0
    %v1232 = vadd.f32 0.0, %v1231
    %v1233 = vpop.f32.mrb[0].mxu0
    %v1234 = vpop.f32.mrb[0].mxu0
    %v1235 = vadd.f32 0.0, %v1234
    %v1236 = vpop.f32.mrb[0].mxu0
    %1237 = vmatprep.mubr.bf16.mxu0 0
    %1238 = vmatmul.mubr.bf16.gmra.mrb[0].mxu0 %v975
    %v1239 = vpop.f32.mrb[0].mxu0
    %v1240 = vadd.f32 0.0, %v1239
    %v1241 = vpop.f32.mrb[0].mxu0
    %v1242 = vpop.f32.mrb[0].mxu0
    %v1243 = vadd.f32 0.0, %v1242
    %v1244 = vpop.f32.mrb[0].mxu0
    %1245 = vmatprep.mubr.bf16.mxu0 0
    %1246 = vmatmul.mubr.bf16.gmra.mrb[0].mxu0 %v977
    %v1247 = vpop.f32.mrb[0].mxu0
    %v1248 = vadd.f32 0.0, %v1247
    %v1249 = vpop.f32.mrb[0].mxu0
    %v1250 = vpop.f32.mrb[0].mxu0
    %v1251 = vadd.f32 0.0, %v1250
    %v1252 = vpop.f32.mrb[0].mxu0
    %1253 = vmatprep.mubr.bf16.mxu0 0
    %1254 = vmatmul.mubr.bf16.gmra.mrb[0].mxu0 %v979
    %v1255 = vpop.f32.mrb[0].mxu0
    %v1256 = vadd.f32 0.0, %v1255
    %v1257 = vpop.f32.mrb[0].mxu0
    %v1258 = vpop.f32.mrb[0].mxu0
    %v1259 = vadd.f32 0.0, %v1258
    %v1260 = vpop.f32.mrb[0].mxu0
    %1261 = vmatprep.mubr.bf16.mxu0 0
    %1262 = vmatmul.mubr.bf16.gmra.mrb[0].mxu0 %v981
    %v1263 = vpop.f32.mrb[0].mxu0
    %v1264 = vadd.f32 0.0, %v1263
    %v1265 = vpop.f32.mrb[0].mxu0
    %v1266 = vpop.f32.mrb[0].mxu0
    %v1267 = vadd.f32 0.0, %v1266
    %v1268 = vpop.f32.mrb[0].mxu0
    %1269 = vmatprep.mubr.bf16.mxu0 0
    %1270 = vmatmul.mubr.bf16.gmra.mrb[0].mxu0 %v983
    %v1271 = vpop.f32.mrb[0].mxu0
    %v1272 = vadd.f32 0.0, %v1271
    %v1273 = vpop.f32.mrb[0].mxu0
    %v1274 = vpop.f32.mrb[0].mxu0
    %v1275 = vadd.f32 0.0, %v1274
    %v1276 = vpop.f32.mrb[0].mxu0
    %1277 = vdwg.mxu0
    %v1279 = vsel %vm108, %v548, 0
    %v1282 = vsel %vm108, %v560, 0
    %v1285 = vsel %vm108, %v572, 0
    %v1288 = vsel %vm108, %v584, 0
    %v1291 = vsel %vm108, %v596, 0
    %v1294 = vsel %vm108, %v608, 0
    %v1297 = vsel %vm108, %v620, 0
    %v1300 = vsel %vm108, %v632, 0
    %v1303 = vsel %vm108, %v644, 0
    %v1306 = vsel %vm108, %v656, 0
    %v1309 = vsel %vm108, %v668, 0
    %v1312 = vsel %vm108, %v680, 0
    %v1315 = vsel %vm108, %v692, 0
    %v1318 = vsel %vm108, %v704, 0
    %v1321 = vsel %vm108, %v716, 0
    %v1324 = vsel %vm108, %v728, 0
    %v1327 = vsel %vm108, %v740, 0
    %v1330 = vsel %vm108, %v752, 0
    %v1333 = vsel %vm108, %v764, 0
    %v1336 = vsel %vm108, %v776, 0
    %v1339 = vsel %vm108, %v788, 0
    %v1342 = vsel %vm108, %v800, 0
    %v1345 = vsel %vm108, %v812, 0
    %v1348 = vsel %vm108, %v824, 0
    %v1351 = vsel %vm108, %v836, 0
    %v1354 = vsel %vm108, %v848, 0
    %v1357 = vsel %vm108, %v860, 0
    %v1360 = vsel %vm108, %v872, 0
    %v1363 = vsel %vm108, %v884, 0
    %v1366 = vsel %vm108, %v896, 0
    %v1369 = vsel %vm108, %v908, 0
    %v1372 = vsel %vm108, %v920, 0
    %v1375 = vsel %vm985, %v419, 0
    %1377 = vmatprep.subr.bf16.mxu0 0
    %1378 = vmatpush1.bf16.msra.mxu0 %v1375
    %1379 = vmatprep.subr.bf16.mxu0 0
    %1380 = vmatpush1.bf16.msra.mxu0 0
    %1381 = vmatprep.subr.bf16.mxu0 0
    %1382 = vmatpush1.bf16.msra.mxu0 0
    %1383 = vmatprep.subr.bf16.mxu0 0
    %1384 = vmatpush1.bf16.msra.mxu0 0
    %1385 = vmatprep.subr.bf16.mxu0 0
    %1386 = vmatpush1.bf16.msra.mxu0 0
    %1387 = vmatprep.subr.bf16.mxu0 0
    %1388 = vmatpush1.bf16.msra.mxu0 0
    %1389 = vmatprep.subr.bf16.mxu0 0
    %1390 = vmatpush1.bf16.msra.mxu0 0
    %1391 = vmatprep.subr.bf16.mxu0 0
    %1392 = vmatpush1.bf16.msra.mxu0 0
    %1393 = vmatprep.subr.bf16.mxu0 0
    %1394 = vmatpush1.bf16.msra.mxu0 0
    %1395 = vmatprep.subr.bf16.mxu0 0
    %1396 = vmatpush1.bf16.msra.mxu0 0
    %1397 = vmatprep.subr.bf16.mxu0 0
    %1398 = vmatpush1.bf16.msra.mxu0 0
    %1399 = vmatprep.subr.bf16.mxu0 0
    %1400 = vmatpush1.bf16.msra.mxu0 0
    %1401 = vmatprep.subr.bf16.mxu0 0
    %1402 = vmatpush1.bf16.msra.mxu0 0
    %1403 = vmatprep.subr.bf16.mxu0 0
    %1404 = vmatpush1.bf16.msra.mxu0 0
    %1405 = vmatprep.subr.bf16.mxu0 0
    %1406 = vmatpush1.bf16.msra.mxu0 0
    %1407 = vmatprep.subr.bf16.mxu0 0
    %1408 = vmatpush1.bf16.msra.mxu0 0
    %1409 = vmatprep.mubr.bf16.mxu0 0
    %1410 = vmatmul.mubr.bf16.gmra.mrb[0].mxu0 %v1279
    %v1411 = vpop.f32.mrb[0].mxu0
    %v1412 = vadd.f32 %v1024, %v1411
    %v1413 = vpop.f32.mrb[0].mxu0
    %v1414 = vpop.f32.mrb[0].mxu0
    %v1415 = vadd.f32 %v1027, %v1414
    %v1416 = vpop.f32.mrb[0].mxu0
    %1417 = vmatprep.mubr.bf16.mxu0 0
    %1418 = vmatmul.mubr.bf16.gmra.mrb[0].mxu0 %v1282
    %v1419 = vpop.f32.mrb[0].mxu0
    %v1420 = vadd.f32 %v1032, %v1419
    %v1421 = vpop.f32.mrb[0].mxu0
    %v1422 = vpop.f32.mrb[0].mxu0
    %v1423 = vadd.f32 %v1035, %v1422
    %v1424 = vpop.f32.mrb[0].mxu0
    %1425 = vmatprep.mubr.bf16.mxu0 0
    %1426 = vmatmul.mubr.bf16.gmra.mrb[0].mxu0 %v1285
    %v1427 = vpop.f32.mrb[0].mxu0
    %v1428 = vadd.f32 %v1040, %v1427
    %v1429 = vpop.f32.mrb[0].mxu0
    %v1430 = vpop.f32.mrb[0].mxu0
    %v1431 = vadd.f32 %v1043, %v1430
    %v1432 = vpop.f32.mrb[0].mxu0
    %1433 = vmatprep.mubr.bf16.mxu0 0
    %1434 = vmatmul.mubr.bf16.gmra.mrb[0].mxu0 %v1288
    %v1435 = vpop.f32.mrb[0].mxu0
    %v1436 = vadd.f32 %v1048, %v1435
    %v1437 = vpop.f32.mrb[0].mxu0
    %v1438 = vpop.f32.mrb[0].mxu0
    %v1439 = vadd.f32 %v1051, %v1438
    %v1440 = vpop.f32.mrb[0].mxu0
    %1441 = vmatprep.mubr.bf16.mxu0 0
    %1442 = vmatmul.mubr.bf16.gmra.mrb[0].mxu0 %v1291
    %v1443 = vpop.f32.mrb[0].mxu0
    %v1444 = vadd.f32 %v1056, %v1443
    %v1445 = vpop.f32.mrb[0].mxu0
    %v1446 = vpop.f32.mrb[0].mxu0
    %v1447 = vadd.f32 %v1059, %v1446
    %v1448 = vpop.f32.mrb[0].mxu0
    %1449 = vmatprep.mubr.bf16.mxu0 0
    %1450 = vmatmul.mubr.bf16.gmra.mrb[0].mxu0 %v1294
    %v1451 = vpop.f32.mrb[0].mxu0
    %v1452 = vadd.f32 %v1064, %v1451
    %v1453 = vpop.f32.mrb[0].mxu0
    %v1454 = vpop.f32.mrb[0].mxu0
    %v1455 = vadd.f32 %v1067, %v1454
    %v1456 = vpop.f32.mrb[0].mxu0
    %1457 = vmatprep.mubr.bf16.mxu0 0
    %1458 = vmatmul.mubr.bf16.gmra.mrb[0].mxu0 %v1297
    %v1459 = vpop.f32.mrb[0].mxu0
    %v1460 = vadd.f32 %v1072, %v1459
    %v1461 = vpop.f32.mrb[0].mxu0
    %v1462 = vpop.f32.mrb[0].mxu0
    %v1463 = vadd.f32 %v1075, %v1462
    %v1464 = vpop.f32.mrb[0].mxu0
    %1465 = vmatprep.mubr.bf16.mxu0 0
    %1466 = vmatmul.mubr.bf16.gmra.mrb[0].mxu0 %v1300
    %v1467 = vpop.f32.mrb[0].mxu0
    %v1468 = vadd.f32 %v1080, %v1467
    %v1469 = vpop.f32.mrb[0].mxu0
    %v1470 = vpop.f32.mrb[0].mxu0
    %v1471 = vadd.f32 %v1083, %v1470
    %v1472 = vpop.f32.mrb[0].mxu0
    %1473 = vmatprep.mubr.bf16.mxu0 0
    %1474 = vmatmul.mubr.bf16.gmra.mrb[0].mxu0 %v1303
    %v1475 = vpop.f32.mrb[0].mxu0
    %v1476 = vadd.f32 %v1088, %v1475
    %v1477 = vpop.f32.mrb[0].mxu0
    %v1478 = vpop.f32.mrb[0].mxu0
    %v1479 = vadd.f32 %v1091, %v1478
    %v1480 = vpop.f32.mrb[0].mxu0
    %1481 = vmatprep.mubr.bf16.mxu0 0
    %1482 = vmatmul.mubr.bf16.gmra.mrb[0].mxu0 %v1306
    %v1483 = vpop.f32.mrb[0].mxu0
    %v1484 = vadd.f32 %v1096, %v1483
    %v1485 = vpop.f32.mrb[0].mxu0
    %v1486 = vpop.f32.mrb[0].mxu0
    %v1487 = vadd.f32 %v1099, %v1486
    %v1488 = vpop.f32.mrb[0].mxu0
    %1489 = vmatprep.mubr.bf16.mxu0 0
    %1490 = vmatmul.mubr.bf16.gmra.mrb[0].mxu0 %v1309
    %v1491 = vpop.f32.mrb[0].mxu0
    %v1492 = vadd.f32 %v1104, %v1491
    %v1493 = vpop.f32.mrb[0].mxu0
    %v1494 = vpop.f32.mrb[0].mxu0
    %v1495 = vadd.f32 %v1107, %v1494
    %v1496 = vpop.f32.mrb[0].mxu0
    %1497 = vmatprep.mubr.bf16.mxu0 0
    %1498 = vmatmul.mubr.bf16.gmra.mrb[0].mxu0 %v1312
    %v1499 = vpop.f32.mrb[0].mxu0
    %v1500 = vadd.f32 %v1112, %v1499
    %v1501 = vpop.f32.mrb[0].mxu0
    %v1502 = vpop.f32.mrb[0].mxu0
    %v1503 = vadd.f32 %v1115, %v1502
    %v1504 = vpop.f32.mrb[0].mxu0
    %1505 = vmatprep.mubr.bf16.mxu0 0
    %1506 = vmatmul.mubr.bf16.gmra.mrb[0].mxu0 %v1315
    %v1507 = vpop.f32.mrb[0].mxu0
    %v1508 = vadd.f32 %v1120, %v1507
    %v1509 = vpop.f32.mrb[0].mxu0
    %v1510 = vpop.f32.mrb[0].mxu0
    %v1511 = vadd.f32 %v1123, %v1510
    %v1512 = vpop.f32.mrb[0].mxu0
    %1513 = vmatprep.mubr.bf16.mxu0 0
    %1514 = vmatmul.mubr.bf16.gmra.mrb[0].mxu0 %v1318
    %v1515 = vpop.f32.mrb[0].mxu0
    %v1516 = vadd.f32 %v1128, %v1515
    %v1517 = vpop.f32.mrb[0].mxu0
    %v1518 = vpop.f32.mrb[0].mxu0
    %v1519 = vadd.f32 %v1131, %v1518
    %v1520 = vpop.f32.mrb[0].mxu0
    %1521 = vmatprep.mubr.bf16.mxu0 0
    %1522 = vmatmul.mubr.bf16.gmra.mrb[0].mxu0 %v1321
    %v1523 = vpop.f32.mrb[0].mxu0
    %v1524 = vadd.f32 %v1136, %v1523
    %v1525 = vpop.f32.mrb[0].mxu0
    %v1526 = vpop.f32.mrb[0].mxu0
    %v1527 = vadd.f32 %v1139, %v1526
    %v1528 = vpop.f32.mrb[0].mxu0
    %1529 = vmatprep.mubr.bf16.mxu0 0
    %1530 = vmatmul.mubr.bf16.gmra.mrb[0].mxu0 %v1324
    %v1531 = vpop.f32.mrb[0].mxu0
    %v1532 = vadd.f32 %v1144, %v1531
    %v1533 = vpop.f32.mrb[0].mxu0
    %v1534 = vpop.f32.mrb[0].mxu0
    %v1535 = vadd.f32 %v1147, %v1534
    %v1536 = vpop.f32.mrb[0].mxu0
    %1537 = vmatprep.mubr.bf16.mxu0 0
    %1538 = vmatmul.mubr.bf16.gmra.mrb[0].mxu0 %v1327
    %v1539 = vpop.f32.mrb[0].mxu0
    %v1540 = vadd.f32 %v1152, %v1539
    %v1541 = vpop.f32.mrb[0].mxu0
    %v1542 = vpop.f32.mrb[0].mxu0
    %v1543 = vadd.f32 %v1155, %v1542
    %v1544 = vpop.f32.mrb[0].mxu0
    %1545 = vmatprep.mubr.bf16.mxu0 0
    %1546 = vmatmul.mubr.bf16.gmra.mrb[0].mxu0 %v1330
    %v1547 = vpop.f32.mrb[0].mxu0
    %v1548 = vadd.f32 %v1160, %v1547
    %v1549 = vpop.f32.mrb[0].mxu0
    %v1550 = vpop.f32.mrb[0].mxu0
    %v1551 = vadd.f32 %v1163, %v1550
    %v1552 = vpop.f32.mrb[0].mxu0
    %1553 = vmatprep.mubr.bf16.mxu0 0
    %1554 = vmatmul.mubr.bf16.gmra.mrb[0].mxu0 %v1333
    %v1555 = vpop.f32.mrb[0].mxu0
    %v1556 = vadd.f32 %v1168, %v1555
    %v1557 = vpop.f32.mrb[0].mxu0
    %v1558 = vpop.f32.mrb[0].mxu0
    %v1559 = vadd.f32 %v1171, %v1558
    %v1560 = vpop.f32.mrb[0].mxu0
    %1561 = vmatprep.mubr.bf16.mxu0 0
    %1562 = vmatmul.mubr.bf16.gmra.mrb[0].mxu0 %v1336
    %v1563 = vpop.f32.mrb[0].mxu0
    %v1564 = vadd.f32 %v1176, %v1563
    %v1565 = vpop.f32.mrb[0].mxu0
    %v1566 = vpop.f32.mrb[0].mxu0
    %v1567 = vadd.f32 %v1179, %v1566
    %v1568 = vpop.f32.mrb[0].mxu0
    %1569 = vmatprep.mubr.bf16.mxu0 0
    %1570 = vmatmul.mubr.bf16.gmra.mrb[0].mxu0 %v1339
    %v1571 = vpop.f32.mrb[0].mxu0
    %v1572 = vadd.f32 %v1184, %v1571
    %v1573 = vpop.f32.mrb[0].mxu0
    %v1574 = vpop.f32.mrb[0].mxu0
    %v1575 = vadd.f32 %v1187, %v1574
    %v1576 = vpop.f32.mrb[0].mxu0
    %1577 = vmatprep.mubr.bf16.mxu0 0
    %1578 = vmatmul.mubr.bf16.gmra.mrb[0].mxu0 %v1342
    %v1579 = vpop.f32.mrb[0].mxu0
    %v1580 = vadd.f32 %v1192, %v1579
    %v1581 = vpop.f32.mrb[0].mxu0
    %v1582 = vpop.f32.mrb[0].mxu0
    %v1583 = vadd.f32 %v1195, %v1582
    %v1584 = vpop.f32.mrb[0].mxu0
    %1585 = vmatprep.mubr.bf16.mxu0 0
    %1586 = vmatmul.mubr.bf16.gmra.mrb[0].mxu0 %v1345
    %v1587 = vpop.f32.mrb[0].mxu0
    %v1588 = vadd.f32 %v1200, %v1587
    %v1589 = vpop.f32.mrb[0].mxu0
    %v1590 = vpop.f32.mrb[0].mxu0
    %v1591 = vadd.f32 %v1203, %v1590
    %v1592 = vpop.f32.mrb[0].mxu0
    %1593 = vmatprep.mubr.bf16.mxu0 0
    %1594 = vmatmul.mubr.bf16.gmra.mrb[0].mxu0 %v1348
    %v1595 = vpop.f32.mrb[0].mxu0
    %v1596 = vadd.f32 %v1208, %v1595
    %v1597 = vpop.f32.mrb[0].mxu0
    %v1598 = vpop.f32.mrb[0].mxu0
    %v1599 = vadd.f32 %v1211, %v1598
    %v1600 = vpop.f32.mrb[0].mxu0
    %1601 = vmatprep.mubr.bf16.mxu0 0
    %1602 = vmatmul.mubr.bf16.gmra.mrb[0].mxu0 %v1351
    %v1603 = vpop.f32.mrb[0].mxu0
    %v1604 = vadd.f32 %v1216, %v1603
    %v1605 = vpop.f32.mrb[0].mxu0
    %v1606 = vpop.f32.mrb[0].mxu0
    %v1607 = vadd.f32 %v1219, %v1606
    %v1608 = vpop.f32.mrb[0].mxu0
    %1609 = vmatprep.mubr.bf16.mxu0 0
    %1610 = vmatmul.mubr.bf16.gmra.mrb[0].mxu0 %v1354
    %v1611 = vpop.f32.mrb[0].mxu0
    %v1612 = vadd.f32 %v1224, %v1611
    %v1613 = vpop.f32.mrb[0].mxu0
    %v1614 = vpop.f32.mrb[0].mxu0
    %v1615 = vadd.f32 %v1227, %v1614
    %v1616 = vpop.f32.mrb[0].mxu0
    %1617 = vmatprep.mubr.bf16.mxu0 0
    %1618 = vmatmul.mubr.bf16.gmra.mrb[0].mxu0 %v1357
    %v1619 = vpop.f32.mrb[0].mxu0
    %v1620 = vadd.f32 %v1232, %v1619
    %v1621 = vpop.f32.mrb[0].mxu0
    %v1622 = vpop.f32.mrb[0].mxu0
    %v1623 = vadd.f32 %v1235, %v1622
    %v1624 = vpop.f32.mrb[0].mxu0
    %1625 = vmatprep.mubr.bf16.mxu0 0
    %1626 = vmatmul.mubr.bf16.gmra.mrb[0].mxu0 %v1360
    %v1627 = vpop.f32.mrb[0].mxu0
    %v1628 = vadd.f32 %v1240, %v1627
    %v1629 = vpop.f32.mrb[0].mxu0
    %v1630 = vpop.f32.mrb[0].mxu0
    %v1631 = vadd.f32 %v1243, %v1630
    %v1632 = vpop.f32.mrb[0].mxu0
    %1633 = vmatprep.mubr.bf16.mxu0 0
    %1634 = vmatmul.mubr.bf16.gmra.mrb[0].mxu0 %v1363
    %v1635 = vpop.f32.mrb[0].mxu0
    %v1636 = vadd.f32 %v1248, %v1635
    %v1637 = vpop.f32.mrb[0].mxu0
    %v1638 = vpop.f32.mrb[0].mxu0
    %v1639 = vadd.f32 %v1251, %v1638
    %v1640 = vpop.f32.mrb[0].mxu0
    %1641 = vmatprep.mubr.bf16.mxu0 0
    %1642 = vmatmul.mubr.bf16.gmra.mrb[0].mxu0 %v1366
    %v1643 = vpop.f32.mrb[0].mxu0
    %v1644 = vadd.f32 %v1256, %v1643
    %v1645 = vpop.f32.mrb[0].mxu0
    %v1646 = vpop.f32.mrb[0].mxu0
    %v1647 = vadd.f32 %v1259, %v1646
    %v1648 = vpop.f32.mrb[0].mxu0
    %1649 = vmatprep.mubr.bf16.mxu0 0
    %1650 = vmatmul.mubr.bf16.gmra.mrb[0].mxu0 %v1369
    %v1651 = vpop.f32.mrb[0].mxu0
    %v1652 = vadd.f32 %v1264, %v1651
    %v1653 = vpop.f32.mrb[0].mxu0
    %v1654 = vpop.f32.mrb[0].mxu0
    %v1655 = vadd.f32 %v1267, %v1654
    %v1656 = vpop.f32.mrb[0].mxu0
    %1657 = vmatprep.mubr.bf16.mxu0 0
    %1658 = vmatmul.mubr.bf16.gmra.mrb[0].mxu0 %v1372
    %v1659 = vpop.f32.mrb[0].mxu0
    %v1660 = vadd.f32 %v1272, %v1659
    %v1661 = vpop.f32.mrb[0].mxu0
    %v1662 = vpop.f32.mrb[0].mxu0
    %v1663 = vadd.f32 %v1275, %v1662
    %v1664 = vpop.f32.mrb[0].mxu0
    %1665 = vdwg.mxu0
    %vm1666 = vsmask.f32 7424
    %v1667 = vrot.slane %v545, 1
    %v1668 = vor.u32 %v542, %v1667
    %v1670 = vshll.u32 %v500, 16
    %v1672 = vrot.slane %v1670, 1
    %v1673 = vsel %vm1666, %v1668, %v1672
    %v1674 = vrot.slane %v557, 1
    %v1675 = vor.u32 %v554, %v1674
    %v1677 = vshll.u32 %v501, 16
    %v1679 = vrot.slane %v1677, 1
    %v1680 = vsel %vm1666, %v1675, %v1679
    %v1681 = vrot.slane %v569, 1
    %v1682 = vor.u32 %v566, %v1681
    %v1684 = vshll.u32 %v502, 16
    %v1686 = vrot.slane %v1684, 1
    %v1687 = vsel %vm1666, %v1682, %v1686
    %v1688 = vrot.slane %v581, 1
    %v1689 = vor.u32 %v578, %v1688
    %v1691 = vshll.u32 %v503, 16
    %v1693 = vrot.slane %v1691, 1
    %v1694 = vsel %vm1666, %v1689, %v1693
    %v1695 = vrot.slane %v593, 1
    %v1696 = vor.u32 %v590, %v1695
    %v1698 = vshll.u32 %v504, 16
    %v1700 = vrot.slane %v1698, 1
    %v1701 = vsel %vm1666, %v1696, %v1700
    %v1702 = vrot.slane %v605, 1
    %v1703 = vor.u32 %v602, %v1702
    %v1705 = vshll.u32 %v505, 16
    %v1707 = vrot.slane %v1705, 1
    %v1708 = vsel %vm1666, %v1703, %v1707
    %v1709 = vrot.slane %v617, 1
    %v1710 = vor.u32 %v614, %v1709
    %v1712 = vshll.u32 %v506, 16
    %v1714 = vrot.slane %v1712, 1
    %v1715 = vsel %vm1666, %v1710, %v1714
    %v1716 = vrot.slane %v629, 1
    %v1717 = vor.u32 %v626, %v1716
    %v1719 = vshll.u32 %v507, 16
    %v1721 = vrot.slane %v1719, 1
    %v1722 = vsel %vm1666, %v1717, %v1721
    %v1723 = vrot.slane %v641, 1
    %v1724 = vor.u32 %v638, %v1723
    %v1726 = vshll.u32 %v508, 16
    %v1728 = vrot.slane %v1726, 1
    %v1729 = vsel %vm1666, %v1724, %v1728
    %v1730 = vrot.slane %v653, 1
    %v1731 = vor.u32 %v650, %v1730
    %v1733 = vshll.u32 %v509, 16
    %v1735 = vrot.slane %v1733, 1
    %v1736 = vsel %vm1666, %v1731, %v1735
    %v1737 = vrot.slane %v665, 1
    %v1738 = vor.u32 %v662, %v1737
    %v1740 = vshll.u32 %v510, 16
    %v1742 = vrot.slane %v1740, 1
    %v1743 = vsel %vm1666, %v1738, %v1742
    %v1744 = vrot.slane %v677, 1
    %v1745 = vor.u32 %v674, %v1744
    %v1747 = vshll.u32 %v511, 16
    %v1749 = vrot.slane %v1747, 1
    %v1750 = vsel %vm1666, %v1745, %v1749
    %v1751 = vrot.slane %v689, 1
    %v1752 = vor.u32 %v686, %v1751
    %v1754 = vshll.u32 %v512, 16
    %v1756 = vrot.slane %v1754, 1
    %v1757 = vsel %vm1666, %v1752, %v1756
    %v1758 = vrot.slane %v701, 1
    %v1759 = vor.u32 %v698, %v1758
    %v1761 = vshll.u32 %v513, 16
    %v1763 = vrot.slane %v1761, 1
    %v1764 = vsel %vm1666, %v1759, %v1763
    %v1765 = vrot.slane %v713, 1
    %v1766 = vor.u32 %v710, %v1765
    %v1768 = vshll.u32 %v514, 16
    %v1770 = vrot.slane %v1768, 1
    %v1771 = vsel %vm1666, %v1766, %v1770
    %v1772 = vrot.slane %v725, 1
    %v1773 = vor.u32 %v722, %v1772
    %v1775 = vshll.u32 %v515, 16
    %v1777 = vrot.slane %v1775, 1
    %v1778 = vsel %vm1666, %v1773, %v1777
    %v1779 = vrot.slane %v737, 1
    %v1780 = vor.u32 %v734, %v1779
    %v1782 = vshll.u32 %v518, 16
    %v1784 = vrot.slane %v1782, 1
    %v1785 = vsel %vm1666, %v1780, %v1784
    %v1786 = vrot.slane %v749, 1
    %v1787 = vor.u32 %v746, %v1786
    %v1789 = vshll.u32 %v519, 16
    %v1791 = vrot.slane %v1789, 1
    %v1792 = vsel %vm1666, %v1787, %v1791
    %v1793 = vrot.slane %v761, 1
    %v1794 = vor.u32 %v758, %v1793
    %v1796 = vshll.u32 %v520, 16
    %v1798 = vrot.slane %v1796, 1
    %v1799 = vsel %vm1666, %v1794, %v1798
    %v1800 = vrot.slane %v773, 1
    %v1801 = vor.u32 %v770, %v1800
    %v1803 = vshll.u32 %v521, 16
    %v1805 = vrot.slane %v1803, 1
    %v1806 = vsel %vm1666, %v1801, %v1805
    %v1807 = vrot.slane %v785, 1
    %v1808 = vor.u32 %v782, %v1807
    %v1810 = vshll.u32 %v522, 16
    %v1812 = vrot.slane %v1810, 1
    %v1813 = vsel %vm1666, %v1808, %v1812
    %v1814 = vrot.slane %v797, 1
    %v1815 = vor.u32 %v794, %v1814
    %v1817 = vshll.u32 %v523, 16
    %v1819 = vrot.slane %v1817, 1
    %v1820 = vsel %vm1666, %v1815, %v1819
    %v1821 = vrot.slane %v809, 1
    %v1822 = vor.u32 %v806, %v1821
    %v1824 = vshll.u32 %v524, 16
    %v1826 = vrot.slane %v1824, 1
    %v1827 = vsel %vm1666, %v1822, %v1826
    %v1828 = vrot.slane %v821, 1
    %v1829 = vor.u32 %v818, %v1828
    %v1831 = vshll.u32 %v525, 16
    %v1833 = vrot.slane %v1831, 1
    %v1834 = vsel %vm1666, %v1829, %v1833
    %v1835 = vrot.slane %v833, 1
    %v1836 = vor.u32 %v830, %v1835
    %v1838 = vshll.u32 %v526, 16
    %v1840 = vrot.slane %v1838, 1
    %v1841 = vsel %vm1666, %v1836, %v1840
    %v1842 = vrot.slane %v845, 1
    %v1843 = vor.u32 %v842, %v1842
    %v1845 = vshll.u32 %v527, 16
    %v1847 = vrot.slane %v1845, 1
    %v1848 = vsel %vm1666, %v1843, %v1847
    %v1849 = vrot.slane %v857, 1
    %v1850 = vor.u32 %v854, %v1849
    %v1852 = vshll.u32 %v528, 16
    %v1854 = vrot.slane %v1852, 1
    %v1855 = vsel %vm1666, %v1850, %v1854
    %v1856 = vrot.slane %v869, 1
    %v1857 = vor.u32 %v866, %v1856
    %v1859 = vshll.u32 %v529, 16
    %v1861 = vrot.slane %v1859, 1
    %v1862 = vsel %vm1666, %v1857, %v1861
    %v1863 = vrot.slane %v881, 1
    %v1864 = vor.u32 %v878, %v1863
    %v1866 = vshll.u32 %v530, 16
    %v1868 = vrot.slane %v1866, 1
    %v1869 = vsel %vm1666, %v1864, %v1868
    %v1870 = vrot.slane %v893, 1
    %v1871 = vor.u32 %v890, %v1870
    %v1873 = vshll.u32 %v531, 16
    %v1875 = vrot.slane %v1873, 1
    %v1876 = vsel %vm1666, %v1871, %v1875
    %v1877 = vrot.slane %v905, 1
    %v1878 = vor.u32 %v902, %v1877
    %v1880 = vshll.u32 %v532, 16
    %v1882 = vrot.slane %v1880, 1
    %v1883 = vsel %vm1666, %v1878, %v1882
    %v1884 = vrot.slane %v917, 1
    %v1885 = vor.u32 %v914, %v1884
    %v1887 = vshll.u32 %v533, 16
    %v1889 = vrot.slane %v1887, 1
    %v1890 = vsel %vm1666, %v1885, %v1889
    %v1892 = vsel %vm108, %v1673, 0
    %v1895 = vsel %vm108, %v1680, 0
    %v1898 = vsel %vm108, %v1687, 0
    %v1901 = vsel %vm108, %v1694, 0
    %v1904 = vsel %vm108, %v1701, 0
    %v1907 = vsel %vm108, %v1708, 0
    %v1910 = vsel %vm108, %v1715, 0
    %v1913 = vsel %vm108, %v1722, 0
    %v1916 = vsel %vm108, %v1729, 0
    %v1919 = vsel %vm108, %v1736, 0
    %v1922 = vsel %vm108, %v1743, 0
    %v1925 = vsel %vm108, %v1750, 0
    %v1928 = vsel %vm108, %v1757, 0
    %v1931 = vsel %vm108, %v1764, 0
    %v1934 = vsel %vm108, %v1771, 0
    %v1937 = vsel %vm108, %v1778, 0
    %v1940 = vsel %vm108, %v1785, 0
    %v1943 = vsel %vm108, %v1792, 0
    %v1946 = vsel %vm108, %v1799, 0
    %v1949 = vsel %vm108, %v1806, 0
    %v1952 = vsel %vm108, %v1813, 0
    %v1955 = vsel %vm108, %v1820, 0
    %v1958 = vsel %vm108, %v1827, 0
    %v1961 = vsel %vm108, %v1834, 0
    %v1964 = vsel %vm108, %v1841, 0
    %v1967 = vsel %vm108, %v1848, 0
    %v1970 = vsel %vm108, %v1855, 0
    %v1973 = vsel %vm108, %v1862, 0
    %v1976 = vsel %vm108, %v1869, 0
    %v1979 = vsel %vm108, %v1876, 0
    %v1982 = vsel %vm108, %v1883, 0
    %v1985 = vsel %vm108, %v1890, 0
    %v1988 = vsel %vm985, %v421, 0
    %1990 = vmatprep.subr.bf16.mxu0 0
    %1991 = vmatpush1.bf16.msra.mxu0 %v1988
    %1992 = vmatprep.subr.bf16.mxu0 0
    %1993 = vmatpush1.bf16.msra.mxu0 0
    %1994 = vmatprep.subr.bf16.mxu0 0
    %1995 = vmatpush1.bf16.msra.mxu0 0
    %1996 = vmatprep.subr.bf16.mxu0 0
    %1997 = vmatpush1.bf16.msra.mxu0 0
    %1998 = vmatprep.subr.bf16.mxu0 0
    %1999 = vmatpush1.bf16.msra.mxu0 0
    %2000 = vmatprep.subr.bf16.mxu0 0
    %2001 = vmatpush1.bf16.msra.mxu0 0
    %2002 = vmatprep.subr.bf16.mxu0 0
    %2003 = vmatpush1.bf16.msra.mxu0 0
    %2004 = vmatprep.subr.bf16.mxu0 0
    %2005 = vmatpush1.bf16.msra.mxu0 0
    %2006 = vmatprep.subr.bf16.mxu0 0
    %2007 = vmatpush1.bf16.msra.mxu0 0
    %2008 = vmatprep.subr.bf16.mxu0 0
    %2009 = vmatpush1.bf16.msra.mxu0 0
    %2010 = vmatprep.subr.bf16.mxu0 0
    %2011 = vmatpush1.bf16.msra.mxu0 0
    %2012 = vmatprep.subr.bf16.mxu0 0
    %2013 = vmatpush1.bf16.msra.mxu0 0
    %2014 = vmatprep.subr.bf16.mxu0 0
    %2015 = vmatpush1.bf16.msra.mxu0 0
    %2016 = vmatprep.subr.bf16.mxu0 0
    %2017 = vmatpush1.bf16.msra.mxu0 0
    %2018 = vmatprep.subr.bf16.mxu0 0
    %2019 = vmatpush1.bf16.msra.mxu0 0
    %2020 = vmatprep.subr.bf16.mxu0 0
    %2021 = vmatpush1.bf16.msra.mxu0 0
    %2022 = vmatprep.mubr.bf16.mxu0 0
    %2023 = vmatmul.mubr.bf16.gmra.mrb[0].mxu0 %v1892
    %v2024 = vpop.f32.mrb[0].mxu0
    %v2025 = vadd.f32 0.0, %v2024
    %v2026 = vpop.f32.mrb[0].mxu0
    %v2027 = vpop.f32.mrb[0].mxu0
    %v2028 = vadd.f32 0.0, %v2027
    %v2029 = vpop.f32.mrb[0].mxu0
    %2030 = vmatprep.mubr.bf16.mxu0 0
    %2031 = vmatmul.mubr.bf16.gmra.mrb[0].mxu0 %v1895
    %v2032 = vpop.f32.mrb[0].mxu0
    %v2033 = vadd.f32 0.0, %v2032
    %v2034 = vpop.f32.mrb[0].mxu0
    %v2035 = vpop.f32.mrb[0].mxu0
    %v2036 = vadd.f32 0.0, %v2035
    %v2037 = vpop.f32.mrb[0].mxu0
    %2038 = vmatprep.mubr.bf16.mxu0 0
    %2039 = vmatmul.mubr.bf16.gmra.mrb[0].mxu0 %v1898
    %v2040 = vpop.f32.mrb[0].mxu0
    %v2041 = vadd.f32 0.0, %v2040
    %v2042 = vpop.f32.mrb[0].mxu0
    %v2043 = vpop.f32.mrb[0].mxu0
    %v2044 = vadd.f32 0.0, %v2043
    %v2045 = vpop.f32.mrb[0].mxu0
    %2046 = vmatprep.mubr.bf16.mxu0 0
    %2047 = vmatmul.mubr.bf16.gmra.mrb[0].mxu0 %v1901
    %v2048 = vpop.f32.mrb[0].mxu0
    %v2049 = vadd.f32 0.0, %v2048
    %v2050 = vpop.f32.mrb[0].mxu0
    %v2051 = vpop.f32.mrb[0].mxu0
    %v2052 = vadd.f32 0.0, %v2051
    %v2053 = vpop.f32.mrb[0].mxu0
    %2054 = vmatprep.mubr.bf16.mxu0 0
    %2055 = vmatmul.mubr.bf16.gmra.mrb[0].mxu0 %v1904
    %v2056 = vpop.f32.mrb[0].mxu0
    %v2057 = vadd.f32 0.0, %v2056
    %v2058 = vpop.f32.mrb[0].mxu0
    %v2059 = vpop.f32.mrb[0].mxu0
    %v2060 = vadd.f32 0.0, %v2059
    %v2061 = vpop.f32.mrb[0].mxu0
    %2062 = vmatprep.mubr.bf16.mxu0 0
    %2063 = vmatmul.mubr.bf16.gmra.mrb[0].mxu0 %v1907
    %v2064 = vpop.f32.mrb[0].mxu0
    %v2065 = vadd.f32 0.0, %v2064
    %v2066 = vpop.f32.mrb[0].mxu0
    %v2067 = vpop.f32.mrb[0].mxu0
    %v2068 = vadd.f32 0.0, %v2067
    %v2069 = vpop.f32.mrb[0].mxu0
    %2070 = vmatprep.mubr.bf16.mxu0 0
    %2071 = vmatmul.mubr.bf16.gmra.mrb[0].mxu0 %v1910
    %v2072 = vpop.f32.mrb[0].mxu0
    %v2073 = vadd.f32 0.0, %v2072
    %v2074 = vpop.f32.mrb[0].mxu0
    %v2075 = vpop.f32.mrb[0].mxu0
    %v2076 = vadd.f32 0.0, %v2075
    %v2077 = vpop.f32.mrb[0].mxu0
    %2078 = vmatprep.mubr.bf16.mxu0 0
    %2079 = vmatmul.mubr.bf16.gmra.mrb[0].mxu0 %v1913
    %v2080 = vpop.f32.mrb[0].mxu0
    %v2081 = vadd.f32 0.0, %v2080
    %v2082 = vpop.f32.mrb[0].mxu0
    %v2083 = vpop.f32.mrb[0].mxu0
    %v2084 = vadd.f32 0.0, %v2083
    %v2085 = vpop.f32.mrb[0].mxu0
    %2086 = vmatprep.mubr.bf16.mxu0 0
    %2087 = vmatmul.mubr.bf16.gmra.mrb[0].mxu0 %v1916
    %v2088 = vpop.f32.mrb[0].mxu0
    %v2089 = vadd.f32 0.0, %v2088
    %v2090 = vpop.f32.mrb[0].mxu0
    %v2091 = vpop.f32.mrb[0].mxu0
    %v2092 = vadd.f32 0.0, %v2091
    %v2093 = vpop.f32.mrb[0].mxu0
    %2094 = vmatprep.mubr.bf16.mxu0 0
    %2095 = vmatmul.mubr.bf16.gmra.mrb[0].mxu0 %v1919
    %v2096 = vpop.f32.mrb[0].mxu0
    %v2097 = vadd.f32 0.0, %v2096
    %v2098 = vpop.f32.mrb[0].mxu0
    %v2099 = vpop.f32.mrb[0].mxu0
    %v2100 = vadd.f32 0.0, %v2099
    %v2101 = vpop.f32.mrb[0].mxu0
    %2102 = vmatprep.mubr.bf16.mxu0 0
    %2103 = vmatmul.mubr.bf16.gmra.mrb[0].mxu0 %v1922
    %v2104 = vpop.f32.mrb[0].mxu0
    %v2105 = vadd.f32 0.0, %v2104
    %v2106 = vpop.f32.mrb[0].mxu0
    %v2107 = vpop.f32.mrb[0].mxu0
    %v2108 = vadd.f32 0.0, %v2107
    %v2109 = vpop.f32.mrb[0].mxu0
    %2110 = vmatprep.mubr.bf16.mxu0 0
    %2111 = vmatmul.mubr.bf16.gmra.mrb[0].mxu0 %v1925
    %v2112 = vpop.f32.mrb[0].mxu0
    %v2113 = vadd.f32 0.0, %v2112
    %v2114 = vpop.f32.mrb[0].mxu0
    %v2115 = vpop.f32.mrb[0].mxu0
    %v2116 = vadd.f32 0.0, %v2115
    %v2117 = vpop.f32.mrb[0].mxu0
    %2118 = vmatprep.mubr.bf16.mxu0 0
    %2119 = vmatmul.mubr.bf16.gmra.mrb[0].mxu0 %v1928
    %v2120 = vpop.f32.mrb[0].mxu0
    %v2121 = vadd.f32 0.0, %v2120
    %v2122 = vpop.f32.mrb[0].mxu0
    %v2123 = vpop.f32.mrb[0].mxu0
    %v2124 = vadd.f32 0.0, %v2123
    %v2125 = vpop.f32.mrb[0].mxu0
    %2126 = vmatprep.mubr.bf16.mxu0 0
    %2127 = vmatmul.mubr.bf16.gmra.mrb[0].mxu0 %v1931
    %v2128 = vpop.f32.mrb[0].mxu0
    %v2129 = vadd.f32 0.0, %v2128
    %v2130 = vpop.f32.mrb[0].mxu0
    %v2131 = vpop.f32.mrb[0].mxu0
    %v2132 = vadd.f32 0.0, %v2131
    %v2133 = vpop.f32.mrb[0].mxu0
    %2134 = vmatprep.mubr.bf16.mxu0 0
    %2135 = vmatmul.mubr.bf16.gmra.mrb[0].mxu0 %v1934
    %v2136 = vpop.f32.mrb[0].mxu0
    %v2137 = vadd.f32 0.0, %v2136
    %v2138 = vpop.f32.mrb[0].mxu0
    %v2139 = vpop.f32.mrb[0].mxu0
    %v2140 = vadd.f32 0.0, %v2139
    %v2141 = vpop.f32.mrb[0].mxu0
    %2142 = vmatprep.mubr.bf16.mxu0 0
    %2143 = vmatmul.mubr.bf16.gmra.mrb[0].mxu0 %v1937
    %v2144 = vpop.f32.mrb[0].mxu0
    %v2145 = vadd.f32 0.0, %v2144
    %v2146 = vpop.f32.mrb[0].mxu0
    %v2147 = vpop.f32.mrb[0].mxu0
    %v2148 = vadd.f32 0.0, %v2147
    %v2149 = vpop.f32.mrb[0].mxu0
    %2150 = vmatprep.mubr.bf16.mxu0 0
    %2151 = vmatmul.mubr.bf16.gmra.mrb[0].mxu0 %v1940
    %v2152 = vpop.f32.mrb[0].mxu0
    %v2153 = vadd.f32 0.0, %v2152
    %v2154 = vpop.f32.mrb[0].mxu0
    %v2155 = vpop.f32.mrb[0].mxu0
    %v2156 = vadd.f32 0.0, %v2155
    %v2157 = vpop.f32.mrb[0].mxu0
    %2158 = vmatprep.mubr.bf16.mxu0 0
    %2159 = vmatmul.mubr.bf16.gmra.mrb[0].mxu0 %v1943
    %v2160 = vpop.f32.mrb[0].mxu0
    %v2161 = vadd.f32 0.0, %v2160
    %v2162 = vpop.f32.mrb[0].mxu0
    %v2163 = vpop.f32.mrb[0].mxu0
    %v2164 = vadd.f32 0.0, %v2163
    %v2165 = vpop.f32.mrb[0].mxu0
    %2166 = vmatprep.mubr.bf16.mxu0 0
    %2167 = vmatmul.mubr.bf16.gmra.mrb[0].mxu0 %v1946
    %v2168 = vpop.f32.mrb[0].mxu0
    %v2169 = vadd.f32 0.0, %v2168
    %v2170 = vpop.f32.mrb[0].mxu0
    %v2171 = vpop.f32.mrb[0].mxu0
    %v2172 = vadd.f32 0.0, %v2171
    %v2173 = vpop.f32.mrb[0].mxu0
    %2174 = vmatprep.mubr.bf16.mxu0 0
    %2175 = vmatmul.mubr.bf16.gmra.mrb[0].mxu0 %v1949
    %v2176 = vpop.f32.mrb[0].mxu0
    %v2177 = vadd.f32 0.0, %v2176
    %v2178 = vpop.f32.mrb[0].mxu0
    %v2179 = vpop.f32.mrb[0].mxu0
    %v2180 = vadd.f32 0.0, %v2179
    %v2181 = vpop.f32.mrb[0].mxu0
    %2182 = vmatprep.mubr.bf16.mxu0 0
    %2183 = vmatmul.mubr.bf16.gmra.mrb[0].mxu0 %v1952
    %v2184 = vpop.f32.mrb[0].mxu0
    %v2185 = vadd.f32 0.0, %v2184
    %v2186 = vpop.f32.mrb[0].mxu0
    %v2187 = vpop.f32.mrb[0].mxu0
    %v2188 = vadd.f32 0.0, %v2187
    %v2189 = vpop.f32.mrb[0].mxu0
    %2190 = vmatprep.mubr.bf16.mxu0 0
    %2191 = vmatmul.mubr.bf16.gmra.mrb[0].mxu0 %v1955
    %v2192 = vpop.f32.mrb[0].mxu0
    %v2193 = vadd.f32 0.0, %v2192
    %v2194 = vpop.f32.mrb[0].mxu0
    %v2195 = vpop.f32.mrb[0].mxu0
    %v2196 = vadd.f32 0.0, %v2195
    %v2197 = vpop.f32.mrb[0].mxu0
    %2198 = vmatprep.mubr.bf16.mxu0 0
    %2199 = vmatmul.mubr.bf16.gmra.mrb[0].mxu0 %v1958
    %v2200 = vpop.f32.mrb[0].mxu0
    %v2201 = vadd.f32 0.0, %v2200
    %v2202 = vpop.f32.mrb[0].mxu0
    %v2203 = vpop.f32.mrb[0].mxu0
    %v2204 = vadd.f32 0.0, %v2203
    %v2205 = vpop.f32.mrb[0].mxu0
    %2206 = vmatprep.mubr.bf16.mxu0 0
    %2207 = vmatmul.mubr.bf16.gmra.mrb[0].mxu0 %v1961
    %v2208 = vpop.f32.mrb[0].mxu0
    %v2209 = vadd.f32 0.0, %v2208
    %v2210 = vpop.f32.mrb[0].mxu0
    %v2211 = vpop.f32.mrb[0].mxu0
    %v2212 = vadd.f32 0.0, %v2211
    %v2213 = vpop.f32.mrb[0].mxu0
    %2214 = vmatprep.mubr.bf16.mxu0 0
    %2215 = vmatmul.mubr.bf16.gmra.mrb[0].mxu0 %v1964
    %v2216 = vpop.f32.mrb[0].mxu0
    %v2217 = vadd.f32 0.0, %v2216
    %v2218 = vpop.f32.mrb[0].mxu0
    %v2219 = vpop.f32.mrb[0].mxu0
    %v2220 = vadd.f32 0.0, %v2219
    %v2221 = vpop.f32.mrb[0].mxu0
    %2222 = vmatprep.mubr.bf16.mxu0 0
    %2223 = vmatmul.mubr.bf16.gmra.mrb[0].mxu0 %v1967
    %v2224 = vpop.f32.mrb[0].mxu0
    %v2225 = vadd.f32 0.0, %v2224
    %v2226 = vpop.f32.mrb[0].mxu0
    %v2227 = vpop.f32.mrb[0].mxu0
    %v2228 = vadd.f32 0.0, %v2227
    %v2229 = vpop.f32.mrb[0].mxu0
    %2230 = vmatprep.mubr.bf16.mxu0 0
    %2231 = vmatmul.mubr.bf16.gmra.mrb[0].mxu0 %v1970
    %v2232 = vpop.f32.mrb[0].mxu0
    %v2233 = vadd.f32 0.0, %v2232
    %v2234 = vpop.f32.mrb[0].mxu0
    %v2235 = vpop.f32.mrb[0].mxu0
    %v2236 = vadd.f32 0.0, %v2235
    %v2237 = vpop.f32.mrb[0].mxu0
    %2238 = vmatprep.mubr.bf16.mxu0 0
    %2239 = vmatmul.mubr.bf16.gmra.mrb[0].mxu0 %v1973
    %v2240 = vpop.f32.mrb[0].mxu0
    %v2241 = vadd.f32 0.0, %v2240
    %v2242 = vpop.f32.mrb[0].mxu0
    %v2243 = vpop.f32.mrb[0].mxu0
    %v2244 = vadd.f32 0.0, %v2243
    %v2245 = vpop.f32.mrb[0].mxu0
    %2246 = vmatprep.mubr.bf16.mxu0 0
    %2247 = vmatmul.mubr.bf16.gmra.mrb[0].mxu0 %v1976
    %v2248 = vpop.f32.mrb[0].mxu0
    %v2249 = vadd.f32 0.0, %v2248
    %v2250 = vpop.f32.mrb[0].mxu0
    %v2251 = vpop.f32.mrb[0].mxu0
    %v2252 = vadd.f32 0.0, %v2251
    %v2253 = vpop.f32.mrb[0].mxu0
    %2254 = vmatprep.mubr.bf16.mxu0 0
    %2255 = vmatmul.mubr.bf16.gmra.mrb[0].mxu0 %v1979
    %v2256 = vpop.f32.mrb[0].mxu0
    %v2257 = vadd.f32 0.0, %v2256
    %v2258 = vpop.f32.mrb[0].mxu0
    %v2259 = vpop.f32.mrb[0].mxu0
    %v2260 = vadd.f32 0.0, %v2259
    %v2261 = vpop.f32.mrb[0].mxu0
    %2262 = vmatprep.mubr.bf16.mxu0 0
    %2263 = vmatmul.mubr.bf16.gmra.mrb[0].mxu0 %v1982
    %v2264 = vpop.f32.mrb[0].mxu0
    %v2265 = vadd.f32 0.0, %v2264
    %v2266 = vpop.f32.mrb[0].mxu0
    %v2267 = vpop.f32.mrb[0].mxu0
    %v2268 = vadd.f32 0.0, %v2267
    %v2269 = vpop.f32.mrb[0].mxu0
    %2270 = vmatprep.mubr.bf16.mxu0 0
    %2271 = vmatmul.mubr.bf16.gmra.mrb[0].mxu0 %v1985
    %v2272 = vpop.f32.mrb[0].mxu0
    %v2273 = vadd.f32 0.0, %v2272
    %v2274 = vpop.f32.mrb[0].mxu0
    %v2275 = vpop.f32.mrb[0].mxu0
    %v2276 = vadd.f32 0.0, %v2275
    %v2277 = vpop.f32.mrb[0].mxu0
    %2278 = vdwg.mxu0
    %v2279 = vadd.f32 %v1412, %v2025
    %v2280 = vadd.f32 %v1415, %v2028
    %v2281 = vadd.f32 %v1420, %v2033
    %v2282 = vadd.f32 %v1423, %v2036
    %v2283 = vadd.f32 %v1428, %v2041
    %v2284 = vadd.f32 %v1431, %v2044
    %v2285 = vadd.f32 %v1436, %v2049
    %v2286 = vadd.f32 %v1439, %v2052
    %v2287 = vadd.f32 %v1444, %v2057
    %v2288 = vadd.f32 %v1447, %v2060
    %v2289 = vadd.f32 %v1452, %v2065
    %v2290 = vadd.f32 %v1455, %v2068
    %v2291 = vadd.f32 %v1460, %v2073
    %v2292 = vadd.f32 %v1463, %v2076
    %v2293 = vadd.f32 %v1468, %v2081
    %v2294 = vadd.f32 %v1471, %v2084
    %v2295 = vadd.f32 %v1476, %v2089
    %v2296 = vadd.f32 %v1479, %v2092
    %v2297 = vadd.f32 %v1484, %v2097
    %v2298 = vadd.f32 %v1487, %v2100
    %v2299 = vadd.f32 %v1492, %v2105
    %v2300 = vadd.f32 %v1495, %v2108
    %v2301 = vadd.f32 %v1500, %v2113
    %v2302 = vadd.f32 %v1503, %v2116
    %v2303 = vadd.f32 %v1508, %v2121
    %v2304 = vadd.f32 %v1511, %v2124
    %v2305 = vadd.f32 %v1516, %v2129
    %v2306 = vadd.f32 %v1519, %v2132
    %v2307 = vadd.f32 %v1524, %v2137
    %v2308 = vadd.f32 %v1527, %v2140
    %v2309 = vadd.f32 %v1532, %v2145
    %v2310 = vadd.f32 %v1535, %v2148
    %v2311 = vadd.f32 %v1540, %v2153
    %v2312 = vadd.f32 %v1543, %v2156
    %v2313 = vadd.f32 %v1548, %v2161
    %v2314 = vadd.f32 %v1551, %v2164
    %v2315 = vadd.f32 %v1556, %v2169
    %v2316 = vadd.f32 %v1559, %v2172
    %v2317 = vadd.f32 %v1564, %v2177
    %v2318 = vadd.f32 %v1567, %v2180
    %v2319 = vadd.f32 %v1572, %v2185
    %v2320 = vadd.f32 %v1575, %v2188
    %v2321 = vadd.f32 %v1580, %v2193
    %v2322 = vadd.f32 %v1583, %v2196
    %v2323 = vadd.f32 %v1588, %v2201
    %v2324 = vadd.f32 %v1591, %v2204
    %v2325 = vadd.f32 %v1596, %v2209
    %v2326 = vadd.f32 %v1599, %v2212
    %v2327 = vadd.f32 %v1604, %v2217
    %v2328 = vadd.f32 %v1607, %v2220
    %v2329 = vadd.f32 %v1612, %v2225
    %v2330 = vadd.f32 %v1615, %v2228
    %v2331 = vadd.f32 %v1620, %v2233
    %v2332 = vadd.f32 %v1623, %v2236
    %v2333 = vadd.f32 %v1628, %v2241
    %v2334 = vadd.f32 %v1631, %v2244
    %v2335 = vadd.f32 %v1636, %v2249
    %v2336 = vadd.f32 %v1639, %v2252
    %v2337 = vadd.f32 %v1644, %v2257
    %v2338 = vadd.f32 %v1647, %v2260
    %v2339 = vadd.f32 %v1652, %v2265
    %v2340 = vadd.f32 %v1655, %v2268
    %v2341 = vadd.f32 %v1660, %v2273
    %v2342 = vadd.f32 %v1663, %v2276
    %v2344 = vshrl.u32 %v460, 16
    %v2346 = vrot.slane %v2344, 7
    %v2348 = vshrl.u32 %v461, 16
    %v2350 = vrot.slane %v2348, 7
    %v2351 = vshll.u32 %v461, 16
    %v2353 = vor.u32 %v2350, %v2351
    %v2354 = vsel %vm536, %v2346, %v2353
    %v2356 = vshrl.u32 %v496, 16
    %v2358 = vrot.slane %v2356, 7
    %v2360 = vshrl.u32 %v497, 16
    %v2362 = vrot.slane %v2360, 7
    %v2363 = vshll.u32 %v497, 16
    %v2365 = vor.u32 %v2362, %v2363
    %v2366 = vsel %vm536, %v2358, %v2365
    %v2368 = vsel %vm108, %v2354, 0
    %v2371 = vsel %vm108, %v2366, 0
    %v2374 = vsel %vm985, %v422, 0
    %2376 = vmatprep.subr.bf16.mxu0 0
    %2377 = vmatpush1.bf16.msra.mxu0 %v2374
    %2378 = vmatprep.subr.bf16.mxu0 0
    %2379 = vmatpush1.bf16.msra.mxu0 0
    %2380 = vmatprep.subr.bf16.mxu0 0
    %2381 = vmatpush1.bf16.msra.mxu0 0
    %2382 = vmatprep.subr.bf16.mxu0 0
    %2383 = vmatpush1.bf16.msra.mxu0 0
    %2384 = vmatprep.subr.bf16.mxu0 0
    %2385 = vmatpush1.bf16.msra.mxu0 0
    %2386 = vmatprep.subr.bf16.mxu0 0
    %2387 = vmatpush1.bf16.msra.mxu0 0
    %2388 = vmatprep.subr.bf16.mxu0 0
    %2389 = vmatpush1.bf16.msra.mxu0 0
    %2390 = vmatprep.subr.bf16.mxu0 0
    %2391 = vmatpush1.bf16.msra.mxu0 0
    %2392 = vmatprep.subr.bf16.mxu0 0
    %2393 = vmatpush1.bf16.msra.mxu0 0
    %2394 = vmatprep.subr.bf16.mxu0 0
    %2395 = vmatpush1.bf16.msra.mxu0 0
    %2396 = vmatprep.subr.bf16.mxu0 0
    %2397 = vmatpush1.bf16.msra.mxu0 0
    %2398 = vmatprep.subr.bf16.mxu0 0
    %2399 = vmatpush1.bf16.msra.mxu0 0
    %2400 = vmatprep.subr.bf16.mxu0 0
    %2401 = vmatpush1.bf16.msra.mxu0 0
    %2402 = vmatprep.subr.bf16.mxu0 0
    %2403 = vmatpush1.bf16.msra.mxu0 0
    %2404 = vmatprep.subr.bf16.mxu0 0
    %2405 = vmatpush1.bf16.msra.mxu0 0
    %2406 = vmatprep.subr.bf16.mxu0 0
    %2407 = vmatpush1.bf16.msra.mxu0 0
    %2408 = vmatprep.mubr.bf16.mxu0 0
    %2409 = vmatmul.mubr.bf16.gmra.mrb[0].mxu0 %v1282
    %v2410 = vpop.f32.mrb[0].mxu0
    %v2411 = vadd.f32 0.0, %v2410
    %v2412 = vpop.f32.mrb[0].mxu0
    %v2413 = vpop.f32.mrb[0].mxu0
    %v2414 = vadd.f32 0.0, %v2413
    %v2415 = vpop.f32.mrb[0].mxu0
    %2416 = vmatprep.mubr.bf16.mxu0 0
    %2417 = vmatmul.mubr.bf16.gmra.mrb[0].mxu0 %v1285
    %v2418 = vpop.f32.mrb[0].mxu0
    %v2419 = vadd.f32 0.0, %v2418
    %v2420 = vpop.f32.mrb[0].mxu0
    %v2421 = vpop.f32.mrb[0].mxu0
    %v2422 = vadd.f32 0.0, %v2421
    %v2423 = vpop.f32.mrb[0].mxu0
    %2424 = vmatprep.mubr.bf16.mxu0 0
    %2425 = vmatmul.mubr.bf16.gmra.mrb[0].mxu0 %v1288
    %v2426 = vpop.f32.mrb[0].mxu0
    %v2427 = vadd.f32 0.0, %v2426
    %v2428 = vpop.f32.mrb[0].mxu0
    %v2429 = vpop.f32.mrb[0].mxu0
    %v2430 = vadd.f32 0.0, %v2429
    %v2431 = vpop.f32.mrb[0].mxu0
    %2432 = vmatprep.mubr.bf16.mxu0 0
    %2433 = vmatmul.mubr.bf16.gmra.mrb[0].mxu0 %v1291
    %v2434 = vpop.f32.mrb[0].mxu0
    %v2435 = vadd.f32 0.0, %v2434
    %v2436 = vpop.f32.mrb[0].mxu0
    %v2437 = vpop.f32.mrb[0].mxu0
    %v2438 = vadd.f32 0.0, %v2437
    %v2439 = vpop.f32.mrb[0].mxu0
    %2440 = vmatprep.mubr.bf16.mxu0 0
    %2441 = vmatmul.mubr.bf16.gmra.mrb[0].mxu0 %v1294
    %v2442 = vpop.f32.mrb[0].mxu0
    %v2443 = vadd.f32 0.0, %v2442
    %v2444 = vpop.f32.mrb[0].mxu0
    %v2445 = vpop.f32.mrb[0].mxu0
    %v2446 = vadd.f32 0.0, %v2445
    %v2447 = vpop.f32.mrb[0].mxu0
    %2448 = vmatprep.mubr.bf16.mxu0 0
    %2449 = vmatmul.mubr.bf16.gmra.mrb[0].mxu0 %v1297
    %v2450 = vpop.f32.mrb[0].mxu0
    %v2451 = vadd.f32 0.0, %v2450
    %v2452 = vpop.f32.mrb[0].mxu0
    %v2453 = vpop.f32.mrb[0].mxu0
    %v2454 = vadd.f32 0.0, %v2453
    %v2455 = vpop.f32.mrb[0].mxu0
    %2456 = vmatprep.mubr.bf16.mxu0 0
    %2457 = vmatmul.mubr.bf16.gmra.mrb[0].mxu0 %v1300
    %v2458 = vpop.f32.mrb[0].mxu0
    %v2459 = vadd.f32 0.0, %v2458
    %v2460 = vpop.f32.mrb[0].mxu0
    %v2461 = vpop.f32.mrb[0].mxu0
    %v2462 = vadd.f32 0.0, %v2461
    %v2463 = vpop.f32.mrb[0].mxu0
    %2464 = vmatprep.mubr.bf16.mxu0 0
    %2465 = vmatmul.mubr.bf16.gmra.mrb[0].mxu0 %v1303
    %v2466 = vpop.f32.mrb[0].mxu0
    %v2467 = vadd.f32 0.0, %v2466
    %v2468 = vpop.f32.mrb[0].mxu0
    %v2469 = vpop.f32.mrb[0].mxu0
    %v2470 = vadd.f32 0.0, %v2469
    %v2471 = vpop.f32.mrb[0].mxu0
    %2472 = vmatprep.mubr.bf16.mxu0 0
    %2473 = vmatmul.mubr.bf16.gmra.mrb[0].mxu0 %v1306
    %v2474 = vpop.f32.mrb[0].mxu0
    %v2475 = vadd.f32 0.0, %v2474
    %v2476 = vpop.f32.mrb[0].mxu0
    %v2477 = vpop.f32.mrb[0].mxu0
    %v2478 = vadd.f32 0.0, %v2477
    %v2479 = vpop.f32.mrb[0].mxu0
    %2480 = vmatprep.mubr.bf16.mxu0 0
    %2481 = vmatmul.mubr.bf16.gmra.mrb[0].mxu0 %v1309
    %v2482 = vpop.f32.mrb[0].mxu0
    %v2483 = vadd.f32 0.0, %v2482
    %v2484 = vpop.f32.mrb[0].mxu0
    %v2485 = vpop.f32.mrb[0].mxu0
    %v2486 = vadd.f32 0.0, %v2485
    %v2487 = vpop.f32.mrb[0].mxu0
    %2488 = vmatprep.mubr.bf16.mxu0 0
    %2489 = vmatmul.mubr.bf16.gmra.mrb[0].mxu0 %v1312
    %v2490 = vpop.f32.mrb[0].mxu0
    %v2491 = vadd.f32 0.0, %v2490
    %v2492 = vpop.f32.mrb[0].mxu0
    %v2493 = vpop.f32.mrb[0].mxu0
    %v2494 = vadd.f32 0.0, %v2493
    %v2495 = vpop.f32.mrb[0].mxu0
    %2496 = vmatprep.mubr.bf16.mxu0 0
    %2497 = vmatmul.mubr.bf16.gmra.mrb[0].mxu0 %v1315
    %v2498 = vpop.f32.mrb[0].mxu0
    %v2499 = vadd.f32 0.0, %v2498
    %v2500 = vpop.f32.mrb[0].mxu0
    %v2501 = vpop.f32.mrb[0].mxu0
    %v2502 = vadd.f32 0.0, %v2501
    %v2503 = vpop.f32.mrb[0].mxu0
    %2504 = vmatprep.mubr.bf16.mxu0 0
    %2505 = vmatmul.mubr.bf16.gmra.mrb[0].mxu0 %v1318
    %v2506 = vpop.f32.mrb[0].mxu0
    %v2507 = vadd.f32 0.0, %v2506
    %v2508 = vpop.f32.mrb[0].mxu0
    %v2509 = vpop.f32.mrb[0].mxu0
    %v2510 = vadd.f32 0.0, %v2509
    %v2511 = vpop.f32.mrb[0].mxu0
    %2512 = vmatprep.mubr.bf16.mxu0 0
    %2513 = vmatmul.mubr.bf16.gmra.mrb[0].mxu0 %v1321
    %v2514 = vpop.f32.mrb[0].mxu0
    %v2515 = vadd.f32 0.0, %v2514
    %v2516 = vpop.f32.mrb[0].mxu0
    %v2517 = vpop.f32.mrb[0].mxu0
    %v2518 = vadd.f32 0.0, %v2517
    %v2519 = vpop.f32.mrb[0].mxu0
    %2520 = vmatprep.mubr.bf16.mxu0 0
    %2521 = vmatmul.mubr.bf16.gmra.mrb[0].mxu0 %v1324
    %v2522 = vpop.f32.mrb[0].mxu0
    %v2523 = vadd.f32 0.0, %v2522
    %v2524 = vpop.f32.mrb[0].mxu0
    %v2525 = vpop.f32.mrb[0].mxu0
    %v2526 = vadd.f32 0.0, %v2525
    %v2527 = vpop.f32.mrb[0].mxu0
    %2528 = vmatprep.mubr.bf16.mxu0 0
    %2529 = vmatmul.mubr.bf16.gmra.mrb[0].mxu0 %v2368
    %v2530 = vpop.f32.mrb[0].mxu0
    %v2531 = vadd.f32 0.0, %v2530
    %v2532 = vpop.f32.mrb[0].mxu0
    %v2533 = vpop.f32.mrb[0].mxu0
    %v2534 = vadd.f32 0.0, %v2533
    %v2535 = vpop.f32.mrb[0].mxu0
    %2536 = vmatprep.mubr.bf16.mxu0 0
    %2537 = vmatmul.mubr.bf16.gmra.mrb[0].mxu0 %v1330
    %v2538 = vpop.f32.mrb[0].mxu0
    %v2539 = vadd.f32 0.0, %v2538
    %v2540 = vpop.f32.mrb[0].mxu0
    %v2541 = vpop.f32.mrb[0].mxu0
    %v2542 = vadd.f32 0.0, %v2541
    %v2543 = vpop.f32.mrb[0].mxu0
    %2544 = vmatprep.mubr.bf16.mxu0 0
    %2545 = vmatmul.mubr.bf16.gmra.mrb[0].mxu0 %v1333
    %v2546 = vpop.f32.mrb[0].mxu0
    %v2547 = vadd.f32 0.0, %v2546
    %v2548 = vpop.f32.mrb[0].mxu0
    %v2549 = vpop.f32.mrb[0].mxu0
    %v2550 = vadd.f32 0.0, %v2549
    %v2551 = vpop.f32.mrb[0].mxu0
    %2552 = vmatprep.mubr.bf16.mxu0 0
    %2553 = vmatmul.mubr.bf16.gmra.mrb[0].mxu0 %v1336
    %v2554 = vpop.f32.mrb[0].mxu0
    %v2555 = vadd.f32 0.0, %v2554
    %v2556 = vpop.f32.mrb[0].mxu0
    %v2557 = vpop.f32.mrb[0].mxu0
    %v2558 = vadd.f32 0.0, %v2557
    %v2559 = vpop.f32.mrb[0].mxu0
    %2560 = vmatprep.mubr.bf16.mxu0 0
    %2561 = vmatmul.mubr.bf16.gmra.mrb[0].mxu0 %v1339
    %v2562 = vpop.f32.mrb[0].mxu0
    %v2563 = vadd.f32 0.0, %v2562
    %v2564 = vpop.f32.mrb[0].mxu0
    %v2565 = vpop.f32.mrb[0].mxu0
    %v2566 = vadd.f32 0.0, %v2565
    %v2567 = vpop.f32.mrb[0].mxu0
    %2568 = vmatprep.mubr.bf16.mxu0 0
    %2569 = vmatmul.mubr.bf16.gmra.mrb[0].mxu0 %v1342
    %v2570 = vpop.f32.mrb[0].mxu0
    %v2571 = vadd.f32 0.0, %v2570
    %v2572 = vpop.f32.mrb[0].mxu0
    %v2573 = vpop.f32.mrb[0].mxu0
    %v2574 = vadd.f32 0.0, %v2573
    %v2575 = vpop.f32.mrb[0].mxu0
    %2576 = vmatprep.mubr.bf16.mxu0 0
    %2577 = vmatmul.mubr.bf16.gmra.mrb[0].mxu0 %v1345
    %v2578 = vpop.f32.mrb[0].mxu0
    %v2579 = vadd.f32 0.0, %v2578
    %v2580 = vpop.f32.mrb[0].mxu0
    %v2581 = vpop.f32.mrb[0].mxu0
    %v2582 = vadd.f32 0.0, %v2581
    %v2583 = vpop.f32.mrb[0].mxu0
    %2584 = vmatprep.mubr.bf16.mxu0 0
    %2585 = vmatmul.mubr.bf16.gmra.mrb[0].mxu0 %v1348
    %v2586 = vpop.f32.mrb[0].mxu0
    %v2587 = vadd.f32 0.0, %v2586
    %v2588 = vpop.f32.mrb[0].mxu0
    %v2589 = vpop.f32.mrb[0].mxu0
    %v2590 = vadd.f32 0.0, %v2589
    %v2591 = vpop.f32.mrb[0].mxu0
    %2592 = vmatprep.mubr.bf16.mxu0 0
    %2593 = vmatmul.mubr.bf16.gmra.mrb[0].mxu0 %v1351
    %v2594 = vpop.f32.mrb[0].mxu0
    %v2595 = vadd.f32 0.0, %v2594
    %v2596 = vpop.f32.mrb[0].mxu0
    %v2597 = vpop.f32.mrb[0].mxu0
    %v2598 = vadd.f32 0.0, %v2597
    %v2599 = vpop.f32.mrb[0].mxu0
    %2600 = vmatprep.mubr.bf16.mxu0 0
    %2601 = vmatmul.mubr.bf16.gmra.mrb[0].mxu0 %v1354
    %v2602 = vpop.f32.mrb[0].mxu0
    %v2603 = vadd.f32 0.0, %v2602
    %v2604 = vpop.f32.mrb[0].mxu0
    %v2605 = vpop.f32.mrb[0].mxu0
    %v2606 = vadd.f32 0.0, %v2605
    %v2607 = vpop.f32.mrb[0].mxu0
    %2608 = vmatprep.mubr.bf16.mxu0 0
    %2609 = vmatmul.mubr.bf16.gmra.mrb[0].mxu0 %v1357
    %v2610 = vpop.f32.mrb[0].mxu0
    %v2611 = vadd.f32 0.0, %v2610
    %v2612 = vpop.f32.mrb[0].mxu0
    %v2613 = vpop.f32.mrb[0].mxu0
    %v2614 = vadd.f32 0.0, %v2613
    %v2615 = vpop.f32.mrb[0].mxu0
    %2616 = vmatprep.mubr.bf16.mxu0 0
    %2617 = vmatmul.mubr.bf16.gmra.mrb[0].mxu0 %v1360
    %v2618 = vpop.f32.mrb[0].mxu0
    %v2619 = vadd.f32 0.0, %v2618
    %v2620 = vpop.f32.mrb[0].mxu0
    %v2621 = vpop.f32.mrb[0].mxu0
    %v2622 = vadd.f32 0.0, %v2621
    %v2623 = vpop.f32.mrb[0].mxu0
    %2624 = vmatprep.mubr.bf16.mxu0 0
    %2625 = vmatmul.mubr.bf16.gmra.mrb[0].mxu0 %v1363
    %v2626 = vpop.f32.mrb[0].mxu0
    %v2627 = vadd.f32 0.0, %v2626
    %v2628 = vpop.f32.mrb[0].mxu0
    %v2629 = vpop.f32.mrb[0].mxu0
    %v2630 = vadd.f32 0.0, %v2629
    %v2631 = vpop.f32.mrb[0].mxu0
    %2632 = vmatprep.mubr.bf16.mxu0 0
    %2633 = vmatmul.mubr.bf16.gmra.mrb[0].mxu0 %v1366
    %v2634 = vpop.f32.mrb[0].mxu0
    %v2635 = vadd.f32 0.0, %v2634
    %v2636 = vpop.f32.mrb[0].mxu0
    %v2637 = vpop.f32.mrb[0].mxu0
    %v2638 = vadd.f32 0.0, %v2637
    %v2639 = vpop.f32.mrb[0].mxu0
    %2640 = vmatprep.mubr.bf16.mxu0 0
    %2641 = vmatmul.mubr.bf16.gmra.mrb[0].mxu0 %v1369
    %v2642 = vpop.f32.mrb[0].mxu0
    %v2643 = vadd.f32 0.0, %v2642
    %v2644 = vpop.f32.mrb[0].mxu0
    %v2645 = vpop.f32.mrb[0].mxu0
    %v2646 = vadd.f32 0.0, %v2645
    %v2647 = vpop.f32.mrb[0].mxu0
    %2648 = vmatprep.mubr.bf16.mxu0 0
    %2649 = vmatmul.mubr.bf16.gmra.mrb[0].mxu0 %v1372
    %v2650 = vpop.f32.mrb[0].mxu0
    %v2651 = vadd.f32 0.0, %v2650
    %v2652 = vpop.f32.mrb[0].mxu0
    %v2653 = vpop.f32.mrb[0].mxu0
    %v2654 = vadd.f32 0.0, %v2653
    %v2655 = vpop.f32.mrb[0].mxu0
    %2656 = vmatprep.mubr.bf16.mxu0 0
    %2657 = vmatmul.mubr.bf16.gmra.mrb[0].mxu0 %v2371
    %v2658 = vpop.f32.mrb[0].mxu0
    %v2659 = vadd.f32 0.0, %v2658
    %v2660 = vpop.f32.mrb[0].mxu0
    %v2661 = vpop.f32.mrb[0].mxu0
    %v2662 = vadd.f32 0.0, %v2661
    %v2663 = vpop.f32.mrb[0].mxu0
    %2664 = vdwg.mxu0
    %v2665 = vadd.f32 %v2279, %v2411
    %v2666 = vadd.f32 %v2280, %v2414
    %v2667 = vadd.f32 %v2281, %v2419
    %v2668 = vadd.f32 %v2282, %v2422
    %v2669 = vadd.f32 %v2283, %v2427
    %v2670 = vadd.f32 %v2284, %v2430
    %v2671 = vadd.f32 %v2285, %v2435
    %v2672 = vadd.f32 %v2286, %v2438
    %v2673 = vadd.f32 %v2287, %v2443
    %v2674 = vadd.f32 %v2288, %v2446
    %v2675 = vadd.f32 %v2289, %v2451
    %v2676 = vadd.f32 %v2290, %v2454
    %v2677 = vadd.f32 %v2291, %v2459
    %v2678 = vadd.f32 %v2292, %v2462
    %v2679 = vadd.f32 %v2293, %v2467
    %v2680 = vadd.f32 %v2294, %v2470
    %v2681 = vadd.f32 %v2295, %v2475
    %v2682 = vadd.f32 %v2296, %v2478
    %v2683 = vadd.f32 %v2297, %v2483
    %v2684 = vadd.f32 %v2298, %v2486
    %v2685 = vadd.f32 %v2299, %v2491
    %v2686 = vadd.f32 %v2300, %v2494
    %v2687 = vadd.f32 %v2301, %v2499
    %v2688 = vadd.f32 %v2302, %v2502
    %v2689 = vadd.f32 %v2303, %v2507
    %v2690 = vadd.f32 %v2304, %v2510
    %v2691 = vadd.f32 %v2305, %v2515
    %v2692 = vadd.f32 %v2306, %v2518
    %v2693 = vadd.f32 %v2307, %v2523
    %v2694 = vadd.f32 %v2308, %v2526
    %v2695 = vadd.f32 %v2309, %v2531
    %v2696 = vadd.f32 %v2310, %v2534
    %v2697 = vadd.f32 %v2311, %v2539
    %v2698 = vadd.f32 %v2312, %v2542
    %v2699 = vadd.f32 %v2313, %v2547
    %v2700 = vadd.f32 %v2314, %v2550
    %v2701 = vadd.f32 %v2315, %v2555
    %v2702 = vadd.f32 %v2316, %v2558
    %v2703 = vadd.f32 %v2317, %v2563
    %v2704 = vadd.f32 %v2318, %v2566
    %v2705 = vadd.f32 %v2319, %v2571
    %v2706 = vadd.f32 %v2320, %v2574
    %v2707 = vadd.f32 %v2321, %v2579
    %v2708 = vadd.f32 %v2322, %v2582
    %v2709 = vadd.f32 %v2323, %v2587
    %v2710 = vadd.f32 %v2324, %v2590
    %v2711 = vadd.f32 %v2325, %v2595
    %v2712 = vadd.f32 %v2326, %v2598
    %v2713 = vadd.f32 %v2327, %v2603
    %v2714 = vadd.f32 %v2328, %v2606
    %v2715 = vadd.f32 %v2329, %v2611
    %v2716 = vadd.f32 %v2330, %v2614
    %v2717 = vadd.f32 %v2331, %v2619
    %v2718 = vadd.f32 %v2332, %v2622
    %v2719 = vadd.f32 %v2333, %v2627
    %v2720 = vadd.f32 %v2334, %v2630
    %v2721 = vadd.f32 %v2335, %v2635
    %v2722 = vadd.f32 %v2336, %v2638
    %v2723 = vadd.f32 %v2337, %v2643
    %v2724 = vadd.f32 %v2338, %v2646
    %v2725 = vadd.f32 %v2339, %v2651
    %v2726 = vadd.f32 %v2340, %v2654
    %v2727 = vadd.f32 %v2341, %v2659
    %v2728 = vadd.f32 %v2342, %v2662
    %v2729 = vsel %vm108, %v461, 0
    %v2731 = vsel %vm108, %v497, 0
    %v2734 = vsel %vm985, %v423, 0
    %2736 = vmatprep.subr.bf16.mxu0 0
    %2737 = vmatpush1.bf16.msra.mxu0 %v2734
    %2738 = vmatprep.subr.bf16.mxu0 0
    %2739 = vmatpush1.bf16.msra.mxu0 0
    %2740 = vmatprep.subr.bf16.mxu0 0
    %2741 = vmatpush1.bf16.msra.mxu0 0
    %2742 = vmatprep.subr.bf16.mxu0 0
    %2743 = vmatpush1.bf16.msra.mxu0 0
    %2744 = vmatprep.subr.bf16.mxu0 0
    %2745 = vmatpush1.bf16.msra.mxu0 0
    %2746 = vmatprep.subr.bf16.mxu0 0
    %2747 = vmatpush1.bf16.msra.mxu0 0
    %2748 = vmatprep.subr.bf16.mxu0 0
    %2749 = vmatpush1.bf16.msra.mxu0 0
    %2750 = vmatprep.subr.bf16.mxu0 0
    %2751 = vmatpush1.bf16.msra.mxu0 0
    %2752 = vmatprep.subr.bf16.mxu0 0
    %2753 = vmatpush1.bf16.msra.mxu0 0
    %2754 = vmatprep.subr.bf16.mxu0 0
    %2755 = vmatpush1.bf16.msra.mxu0 0
    %2756 = vmatprep.subr.bf16.mxu0 0
    %2757 = vmatpush1.bf16.msra.mxu0 0
    %2758 = vmatprep.subr.bf16.mxu0 0
    %2759 = vmatpush1.bf16.msra.mxu0 0
    %2760 = vmatprep.subr.bf16.mxu0 0
    %2761 = vmatpush1.bf16.msra.mxu0 0
    %2762 = vmatprep.subr.bf16.mxu0 0
    %2763 = vmatpush1.bf16.msra.mxu0 0
    %2764 = vmatprep.subr.bf16.mxu0 0
    %2765 = vmatpush1.bf16.msra.mxu0 0
    %2766 = vmatprep.subr.bf16.mxu0 0
    %2767 = vmatpush1.bf16.msra.mxu0 0
    %2768 = vmatprep.mubr.bf16.mxu0 0
    %2769 = vmatmul.mubr.bf16.gmra.mrb[0].mxu0 %v923
    %v2770 = vpop.f32.mrb[0].mxu0
    %v2771 = vadd.f32 0.0, %v2770
    %v2772 = vpop.f32.mrb[0].mxu0
    %v2773 = vpop.f32.mrb[0].mxu0
    %v2774 = vadd.f32 0.0, %v2773
    %v2775 = vpop.f32.mrb[0].mxu0
    %2776 = vmatprep.mubr.bf16.mxu0 0
    %2777 = vmatmul.mubr.bf16.gmra.mrb[0].mxu0 %v925
    %v2778 = vpop.f32.mrb[0].mxu0
    %v2779 = vadd.f32 0.0, %v2778
    %v2780 = vpop.f32.mrb[0].mxu0
    %v2781 = vpop.f32.mrb[0].mxu0
    %v2782 = vadd.f32 0.0, %v2781
    %v2783 = vpop.f32.mrb[0].mxu0
    %2784 = vmatprep.mubr.bf16.mxu0 0
    %2785 = vmatmul.mubr.bf16.gmra.mrb[0].mxu0 %v927
    %v2786 = vpop.f32.mrb[0].mxu0
    %v2787 = vadd.f32 0.0, %v2786
    %v2788 = vpop.f32.mrb[0].mxu0
    %v2789 = vpop.f32.mrb[0].mxu0
    %v2790 = vadd.f32 0.0, %v2789
    %v2791 = vpop.f32.mrb[0].mxu0
    %2792 = vmatprep.mubr.bf16.mxu0 0
    %2793 = vmatmul.mubr.bf16.gmra.mrb[0].mxu0 %v929
    %v2794 = vpop.f32.mrb[0].mxu0
    %v2795 = vadd.f32 0.0, %v2794
    %v2796 = vpop.f32.mrb[0].mxu0
    %v2797 = vpop.f32.mrb[0].mxu0
    %v2798 = vadd.f32 0.0, %v2797
    %v2799 = vpop.f32.mrb[0].mxu0
    %2800 = vmatprep.mubr.bf16.mxu0 0
    %2801 = vmatmul.mubr.bf16.gmra.mrb[0].mxu0 %v931
    %v2802 = vpop.f32.mrb[0].mxu0
    %v2803 = vadd.f32 0.0, %v2802
    %v2804 = vpop.f32.mrb[0].mxu0
    %v2805 = vpop.f32.mrb[0].mxu0
    %v2806 = vadd.f32 0.0, %v2805
    %v2807 = vpop.f32.mrb[0].mxu0
    %2808 = vmatprep.mubr.bf16.mxu0 0
    %2809 = vmatmul.mubr.bf16.gmra.mrb[0].mxu0 %v933
    %v2810 = vpop.f32.mrb[0].mxu0
    %v2811 = vadd.f32 0.0, %v2810
    %v2812 = vpop.f32.mrb[0].mxu0
    %v2813 = vpop.f32.mrb[0].mxu0
    %v2814 = vadd.f32 0.0, %v2813
    %v2815 = vpop.f32.mrb[0].mxu0
    %2816 = vmatprep.mubr.bf16.mxu0 0
    %2817 = vmatmul.mubr.bf16.gmra.mrb[0].mxu0 %v935
    %v2818 = vpop.f32.mrb[0].mxu0
    %v2819 = vadd.f32 0.0, %v2818
    %v2820 = vpop.f32.mrb[0].mxu0
    %v2821 = vpop.f32.mrb[0].mxu0
    %v2822 = vadd.f32 0.0, %v2821
    %v2823 = vpop.f32.mrb[0].mxu0
    %2824 = vmatprep.mubr.bf16.mxu0 0
    %2825 = vmatmul.mubr.bf16.gmra.mrb[0].mxu0 %v937
    %v2826 = vpop.f32.mrb[0].mxu0
    %v2827 = vadd.f32 0.0, %v2826
    %v2828 = vpop.f32.mrb[0].mxu0
    %v2829 = vpop.f32.mrb[0].mxu0
    %v2830 = vadd.f32 0.0, %v2829
    %v2831 = vpop.f32.mrb[0].mxu0
    %2832 = vmatprep.mubr.bf16.mxu0 0
    %2833 = vmatmul.mubr.bf16.gmra.mrb[0].mxu0 %v939
    %v2834 = vpop.f32.mrb[0].mxu0
    %v2835 = vadd.f32 0.0, %v2834
    %v2836 = vpop.f32.mrb[0].mxu0
    %v2837 = vpop.f32.mrb[0].mxu0
    %v2838 = vadd.f32 0.0, %v2837
    %v2839 = vpop.f32.mrb[0].mxu0
    %2840 = vmatprep.mubr.bf16.mxu0 0
    %2841 = vmatmul.mubr.bf16.gmra.mrb[0].mxu0 %v941
    %v2842 = vpop.f32.mrb[0].mxu0
    %v2843 = vadd.f32 0.0, %v2842
    %v2844 = vpop.f32.mrb[0].mxu0
    %v2845 = vpop.f32.mrb[0].mxu0
    %v2846 = vadd.f32 0.0, %v2845
    %v2847 = vpop.f32.mrb[0].mxu0
    %2848 = vmatprep.mubr.bf16.mxu0 0
    %2849 = vmatmul.mubr.bf16.gmra.mrb[0].mxu0 %v943
    %v2850 = vpop.f32.mrb[0].mxu0
    %v2851 = vadd.f32 0.0, %v2850
    %v2852 = vpop.f32.mrb[0].mxu0
    %v2853 = vpop.f32.mrb[0].mxu0
    %v2854 = vadd.f32 0.0, %v2853
    %v2855 = vpop.f32.mrb[0].mxu0
    %2856 = vmatprep.mubr.bf16.mxu0 0
    %2857 = vmatmul.mubr.bf16.gmra.mrb[0].mxu0 %v945
    %v2858 = vpop.f32.mrb[0].mxu0
    %v2859 = vadd.f32 0.0, %v2858
    %v2860 = vpop.f32.mrb[0].mxu0
    %v2861 = vpop.f32.mrb[0].mxu0
    %v2862 = vadd.f32 0.0, %v2861
    %v2863 = vpop.f32.mrb[0].mxu0
    %2864 = vmatprep.mubr.bf16.mxu0 0
    %2865 = vmatmul.mubr.bf16.gmra.mrb[0].mxu0 %v947
    %v2866 = vpop.f32.mrb[0].mxu0
    %v2867 = vadd.f32 0.0, %v2866
    %v2868 = vpop.f32.mrb[0].mxu0
    %v2869 = vpop.f32.mrb[0].mxu0
    %v2870 = vadd.f32 0.0, %v2869
    %v2871 = vpop.f32.mrb[0].mxu0
    %2872 = vmatprep.mubr.bf16.mxu0 0
    %2873 = vmatmul.mubr.bf16.gmra.mrb[0].mxu0 %v949
    %v2874 = vpop.f32.mrb[0].mxu0
    %v2875 = vadd.f32 0.0, %v2874
    %v2876 = vpop.f32.mrb[0].mxu0
    %v2877 = vpop.f32.mrb[0].mxu0
    %v2878 = vadd.f32 0.0, %v2877
    %v2879 = vpop.f32.mrb[0].mxu0
    %2880 = vmatprep.mubr.bf16.mxu0 0
    %2881 = vmatmul.mubr.bf16.gmra.mrb[0].mxu0 %v951
    %v2882 = vpop.f32.mrb[0].mxu0
    %v2883 = vadd.f32 0.0, %v2882
    %v2884 = vpop.f32.mrb[0].mxu0
    %v2885 = vpop.f32.mrb[0].mxu0
    %v2886 = vadd.f32 0.0, %v2885
    %v2887 = vpop.f32.mrb[0].mxu0
    %2888 = vmatprep.mubr.bf16.mxu0 0
    %2889 = vmatmul.mubr.bf16.gmra.mrb[0].mxu0 %v2729
    %v2890 = vpop.f32.mrb[0].mxu0
    %v2891 = vadd.f32 0.0, %v2890
    %v2892 = vpop.f32.mrb[0].mxu0
    %v2893 = vpop.f32.mrb[0].mxu0
    %v2894 = vadd.f32 0.0, %v2893
    %v2895 = vpop.f32.mrb[0].mxu0
    %2896 = vmatprep.mubr.bf16.mxu0 0
    %2897 = vmatmul.mubr.bf16.gmra.mrb[0].mxu0 %v955
    %v2898 = vpop.f32.mrb[0].mxu0
    %v2899 = vadd.f32 0.0, %v2898
    %v2900 = vpop.f32.mrb[0].mxu0
    %v2901 = vpop.f32.mrb[0].mxu0
    %v2902 = vadd.f32 0.0, %v2901
    %v2903 = vpop.f32.mrb[0].mxu0
    %2904 = vmatprep.mubr.bf16.mxu0 0
    %2905 = vmatmul.mubr.bf16.gmra.mrb[0].mxu0 %v957
    %v2906 = vpop.f32.mrb[0].mxu0
    %v2907 = vadd.f32 0.0, %v2906
    %v2908 = vpop.f32.mrb[0].mxu0
    %v2909 = vpop.f32.mrb[0].mxu0
    %v2910 = vadd.f32 0.0, %v2909
    %v2911 = vpop.f32.mrb[0].mxu0
    %2912 = vmatprep.mubr.bf16.mxu0 0
    %2913 = vmatmul.mubr.bf16.gmra.mrb[0].mxu0 %v959
    %v2914 = vpop.f32.mrb[0].mxu0
    %v2915 = vadd.f32 0.0, %v2914
    %v2916 = vpop.f32.mrb[0].mxu0
    %v2917 = vpop.f32.mrb[0].mxu0
    %v2918 = vadd.f32 0.0, %v2917
    %v2919 = vpop.f32.mrb[0].mxu0
    %2920 = vmatprep.mubr.bf16.mxu0 0
    %2921 = vmatmul.mubr.bf16.gmra.mrb[0].mxu0 %v961
    %v2922 = vpop.f32.mrb[0].mxu0
    %v2923 = vadd.f32 0.0, %v2922
    %v2924 = vpop.f32.mrb[0].mxu0
    %v2925 = vpop.f32.mrb[0].mxu0
    %v2926 = vadd.f32 0.0, %v2925
    %v2927 = vpop.f32.mrb[0].mxu0
    %2928 = vmatprep.mubr.bf16.mxu0 0
    %2929 = vmatmul.mubr.bf16.gmra.mrb[0].mxu0 %v963
    %v2930 = vpop.f32.mrb[0].mxu0
    %v2931 = vadd.f32 0.0, %v2930
    %v2932 = vpop.f32.mrb[0].mxu0
    %v2933 = vpop.f32.mrb[0].mxu0
    %v2934 = vadd.f32 0.0, %v2933
    %v2935 = vpop.f32.mrb[0].mxu0
    %2936 = vmatprep.mubr.bf16.mxu0 0
    %2937 = vmatmul.mubr.bf16.gmra.mrb[0].mxu0 %v965
    %v2938 = vpop.f32.mrb[0].mxu0
    %v2939 = vadd.f32 0.0, %v2938
    %v2940 = vpop.f32.mrb[0].mxu0
    %v2941 = vpop.f32.mrb[0].mxu0
    %v2942 = vadd.f32 0.0, %v2941
    %v2943 = vpop.f32.mrb[0].mxu0
    %2944 = vmatprep.mubr.bf16.mxu0 0
    %2945 = vmatmul.mubr.bf16.gmra.mrb[0].mxu0 %v967
    %v2946 = vpop.f32.mrb[0].mxu0
    %v2947 = vadd.f32 0.0, %v2946
    %v2948 = vpop.f32.mrb[0].mxu0
    %v2949 = vpop.f32.mrb[0].mxu0
    %v2950 = vadd.f32 0.0, %v2949
    %v2951 = vpop.f32.mrb[0].mxu0
    %2952 = vmatprep.mubr.bf16.mxu0 0
    %2953 = vmatmul.mubr.bf16.gmra.mrb[0].mxu0 %v969
    %v2954 = vpop.f32.mrb[0].mxu0
    %v2955 = vadd.f32 0.0, %v2954
    %v2956 = vpop.f32.mrb[0].mxu0
    %v2957 = vpop.f32.mrb[0].mxu0
    %v2958 = vadd.f32 0.0, %v2957
    %v2959 = vpop.f32.mrb[0].mxu0
    %2960 = vmatprep.mubr.bf16.mxu0 0
    %2961 = vmatmul.mubr.bf16.gmra.mrb[0].mxu0 %v971
    %v2962 = vpop.f32.mrb[0].mxu0
    %v2963 = vadd.f32 0.0, %v2962
    %v2964 = vpop.f32.mrb[0].mxu0
    %v2965 = vpop.f32.mrb[0].mxu0
    %v2966 = vadd.f32 0.0, %v2965
    %v2967 = vpop.f32.mrb[0].mxu0
    %2968 = vmatprep.mubr.bf16.mxu0 0
    %2969 = vmatmul.mubr.bf16.gmra.mrb[0].mxu0 %v973
    %v2970 = vpop.f32.mrb[0].mxu0
    %v2971 = vadd.f32 0.0, %v2970
    %v2972 = vpop.f32.mrb[0].mxu0
    %v2973 = vpop.f32.mrb[0].mxu0
    %v2974 = vadd.f32 0.0, %v2973
    %v2975 = vpop.f32.mrb[0].mxu0
    %2976 = vmatprep.mubr.bf16.mxu0 0
    %2977 = vmatmul.mubr.bf16.gmra.mrb[0].mxu0 %v975
    %v2978 = vpop.f32.mrb[0].mxu0
    %v2979 = vadd.f32 0.0, %v2978
    %v2980 = vpop.f32.mrb[0].mxu0
    %v2981 = vpop.f32.mrb[0].mxu0
    %v2982 = vadd.f32 0.0, %v2981
    %v2983 = vpop.f32.mrb[0].mxu0
    %2984 = vmatprep.mubr.bf16.mxu0 0
    %2985 = vmatmul.mubr.bf16.gmra.mrb[0].mxu0 %v977
    %v2986 = vpop.f32.mrb[0].mxu0
    %v2987 = vadd.f32 0.0, %v2986
    %v2988 = vpop.f32.mrb[0].mxu0
    %v2989 = vpop.f32.mrb[0].mxu0
    %v2990 = vadd.f32 0.0, %v2989
    %v2991 = vpop.f32.mrb[0].mxu0
    %2992 = vmatprep.mubr.bf16.mxu0 0
    %2993 = vmatmul.mubr.bf16.gmra.mrb[0].mxu0 %v979
    %v2994 = vpop.f32.mrb[0].mxu0
    %v2995 = vadd.f32 0.0, %v2994
    %v2996 = vpop.f32.mrb[0].mxu0
    %v2997 = vpop.f32.mrb[0].mxu0
    %v2998 = vadd.f32 0.0, %v2997
    %v2999 = vpop.f32.mrb[0].mxu0
    %3000 = vmatprep.mubr.bf16.mxu0 0
    %3001 = vmatmul.mubr.bf16.gmra.mrb[0].mxu0 %v981
    %v3002 = vpop.f32.mrb[0].mxu0
    %v3003 = vadd.f32 0.0, %v3002
    %v3004 = vpop.f32.mrb[0].mxu0
    %v3005 = vpop.f32.mrb[0].mxu0
    %v3006 = vadd.f32 0.0, %v3005
    %v3007 = vpop.f32.mrb[0].mxu0
    %3008 = vmatprep.mubr.bf16.mxu0 0
    %3009 = vmatmul.mubr.bf16.gmra.mrb[0].mxu0 %v983
    %v3010 = vpop.f32.mrb[0].mxu0
    %v3011 = vadd.f32 0.0, %v3010
    %v3012 = vpop.f32.mrb[0].mxu0
    %v3013 = vpop.f32.mrb[0].mxu0
    %v3014 = vadd.f32 0.0, %v3013
    %v3015 = vpop.f32.mrb[0].mxu0
    %3016 = vmatprep.mubr.bf16.mxu0 0
    %3017 = vmatmul.mubr.bf16.gmra.mrb[0].mxu0 %v2731
    %v3018 = vpop.f32.mrb[0].mxu0
    %v3019 = vadd.f32 0.0, %v3018
    %v3020 = vpop.f32.mrb[0].mxu0
    %v3021 = vpop.f32.mrb[0].mxu0
    %v3022 = vadd.f32 0.0, %v3021
    %v3023 = vpop.f32.mrb[0].mxu0
    %3024 = vdwg.mxu0
    %v3025 = vadd.f32 %v2665, %v2771
    %v3026 = vadd.f32 %v2666, %v2774
    %v3027 = vadd.f32 %v2667, %v2779
    %v3028 = vadd.f32 %v2668, %v2782
    %v3029 = vadd.f32 %v2669, %v2787
    %v3030 = vadd.f32 %v2670, %v2790
    %v3031 = vadd.f32 %v2671, %v2795
    %v3032 = vadd.f32 %v2672, %v2798
    %v3033 = vadd.f32 %v2673, %v2803
    %v3034 = vadd.f32 %v2674, %v2806
    %v3035 = vadd.f32 %v2675, %v2811
    %v3036 = vadd.f32 %v2676, %v2814
    %v3037 = vadd.f32 %v2677, %v2819
    %v3038 = vadd.f32 %v2678, %v2822
    %v3039 = vadd.f32 %v2679, %v2827
    %v3040 = vadd.f32 %v2680, %v2830
    %v3041 = vadd.f32 %v2681, %v2835
    %v3042 = vadd.f32 %v2682, %v2838
    %v3043 = vadd.f32 %v2683, %v2843
    %v3044 = vadd.f32 %v2684, %v2846
    %v3045 = vadd.f32 %v2685, %v2851
    %v3046 = vadd.f32 %v2686, %v2854
    %v3047 = vadd.f32 %v2687, %v2859
    %v3048 = vadd.f32 %v2688, %v2862
    %v3049 = vadd.f32 %v2689, %v2867
    %v3050 = vadd.f32 %v2690, %v2870
    %v3051 = vadd.f32 %v2691, %v2875
    %v3052 = vadd.f32 %v2692, %v2878
    %v3053 = vadd.f32 %v2693, %v2883
    %v3054 = vadd.f32 %v2694, %v2886
    %v3055 = vadd.f32 %v2695, %v2891
    %v3056 = vadd.f32 %v2696, %v2894
    %v3057 = vadd.f32 %v2697, %v2899
    %v3058 = vadd.f32 %v2698, %v2902
    %v3059 = vadd.f32 %v2699, %v2907
    %v3060 = vadd.f32 %v2700, %v2910
    %v3061 = vadd.f32 %v2701, %v2915
    %v3062 = vadd.f32 %v2702, %v2918
    %v3063 = vadd.f32 %v2703, %v2923
    %v3064 = vadd.f32 %v2704, %v2926
    %v3065 = vadd.f32 %v2705, %v2931
    %v3066 = vadd.f32 %v2706, %v2934
    %v3067 = vadd.f32 %v2707, %v2939
    %v3068 = vadd.f32 %v2708, %v2942
    %v3069 = vadd.f32 %v2709, %v2947
    %v3070 = vadd.f32 %v2710, %v2950
    %v3071 = vadd.f32 %v2711, %v2955
    %v3072 = vadd.f32 %v2712, %v2958
    %v3073 = vadd.f32 %v2713, %v2963
    %v3074 = vadd.f32 %v2714, %v2966
    %v3075 = vadd.f32 %v2715, %v2971
    %v3076 = vadd.f32 %v2716, %v2974
    %v3077 = vadd.f32 %v2717, %v2979
    %v3078 = vadd.f32 %v2718, %v2982
    %v3079 = vadd.f32 %v2719, %v2987
    %v3080 = vadd.f32 %v2720, %v2990
    %v3081 = vadd.f32 %v2721, %v2995
    %v3082 = vadd.f32 %v2722, %v2998
    %v3083 = vadd.f32 %v2723, %v3003
    %v3084 = vadd.f32 %v2724, %v3006
    %v3085 = vadd.f32 %v2725, %v3011
    %v3086 = vadd.f32 %v2726, %v3014
    %v3087 = vadd.f32 %v2727, %v3019
    %v3088 = vadd.f32 %v2728, %v3022
    %v3089 = vrot.slane %v2351, 1
    %v3090 = vor.u32 %v2348, %v3089
    %v3092 = vshll.u32 %v516, 16
    %v3094 = vrot.slane %v3092, 1
    %v3095 = vsel %vm1666, %v3090, %v3094
    %v3096 = vrot.slane %v2363, 1
    %v3097 = vor.u32 %v2360, %v3096
    %v3099 = vshll.u32 %v534, 16
    %v3101 = vrot.slane %v3099, 1
    %v3102 = vsel %vm1666, %v3097, %v3101
    %v3104 = vsel %vm108, %v3095, 0
    %v3107 = vsel %vm108, %v3102, 0
    %v3110 = vsel %vm985, %v424, 0
    %3112 = vmatprep.subr.bf16.mxu0 0
    %3113 = vmatpush1.bf16.msra.mxu0 %v3110
    %3114 = vmatprep.subr.bf16.mxu0 0
    %3115 = vmatpush1.bf16.msra.mxu0 0
    %3116 = vmatprep.subr.bf16.mxu0 0
    %3117 = vmatpush1.bf16.msra.mxu0 0
    %3118 = vmatprep.subr.bf16.mxu0 0
    %3119 = vmatpush1.bf16.msra.mxu0 0
    %3120 = vmatprep.subr.bf16.mxu0 0
    %3121 = vmatpush1.bf16.msra.mxu0 0
    %3122 = vmatprep.subr.bf16.mxu0 0
    %3123 = vmatpush1.bf16.msra.mxu0 0
    %3124 = vmatprep.subr.bf16.mxu0 0
    %3125 = vmatpush1.bf16.msra.mxu0 0
    %3126 = vmatprep.subr.bf16.mxu0 0
    %3127 = vmatpush1.bf16.msra.mxu0 0
    %3128 = vmatprep.subr.bf16.mxu0 0
    %3129 = vmatpush1.bf16.msra.mxu0 0
    %3130 = vmatprep.subr.bf16.mxu0 0
    %3131 = vmatpush1.bf16.msra.mxu0 0
    %3132 = vmatprep.subr.bf16.mxu0 0
    %3133 = vmatpush1.bf16.msra.mxu0 0
    %3134 = vmatprep.subr.bf16.mxu0 0
    %3135 = vmatpush1.bf16.msra.mxu0 0
    %3136 = vmatprep.subr.bf16.mxu0 0
    %3137 = vmatpush1.bf16.msra.mxu0 0
    %3138 = vmatprep.subr.bf16.mxu0 0
    %3139 = vmatpush1.bf16.msra.mxu0 0
    %3140 = vmatprep.subr.bf16.mxu0 0
    %3141 = vmatpush1.bf16.msra.mxu0 0
    %3142 = vmatprep.subr.bf16.mxu0 0
    %3143 = vmatpush1.bf16.msra.mxu0 0
    %3144 = vmatprep.mubr.bf16.mxu0 0
    %3145 = vmatmul.mubr.bf16.gmra.mrb[0].mxu0 %v1895
    %v3146 = vpop.f32.mrb[0].mxu0
    %v3147 = vadd.f32 0.0, %v3146
    %v3148 = vpop.f32.mrb[0].mxu0
    %v3149 = vpop.f32.mrb[0].mxu0
    %v3150 = vadd.f32 0.0, %v3149
    %v3151 = vpop.f32.mrb[0].mxu0
    %3152 = vmatprep.mubr.bf16.mxu0 0
    %3153 = vmatmul.mubr.bf16.gmra.mrb[0].mxu0 %v1898
    %v3154 = vpop.f32.mrb[0].mxu0
    %v3155 = vadd.f32 0.0, %v3154
    %v3156 = vpop.f32.mrb[0].mxu0
    %v3157 = vpop.f32.mrb[0].mxu0
    %v3158 = vadd.f32 0.0, %v3157
    %v3159 = vpop.f32.mrb[0].mxu0
    %3160 = vmatprep.mubr.bf16.mxu0 0
    %3161 = vmatmul.mubr.bf16.gmra.mrb[0].mxu0 %v1901
    %v3162 = vpop.f32.mrb[0].mxu0
    %v3163 = vadd.f32 0.0, %v3162
    %v3164 = vpop.f32.mrb[0].mxu0
    %v3165 = vpop.f32.mrb[0].mxu0
    %v3166 = vadd.f32 0.0, %v3165
    %v3167 = vpop.f32.mrb[0].mxu0
    %3168 = vmatprep.mubr.bf16.mxu0 0
    %3169 = vmatmul.mubr.bf16.gmra.mrb[0].mxu0 %v1904
    %v3170 = vpop.f32.mrb[0].mxu0
    %v3171 = vadd.f32 0.0, %v3170
    %v3172 = vpop.f32.mrb[0].mxu0
    %v3173 = vpop.f32.mrb[0].mxu0
    %v3174 = vadd.f32 0.0, %v3173
    %v3175 = vpop.f32.mrb[0].mxu0
    %3176 = vmatprep.mubr.bf16.mxu0 0
    %3177 = vmatmul.mubr.bf16.gmra.mrb[0].mxu0 %v1907
    %v3178 = vpop.f32.mrb[0].mxu0
    %v3179 = vadd.f32 0.0, %v3178
    %v3180 = vpop.f32.mrb[0].mxu0
    %v3181 = vpop.f32.mrb[0].mxu0
    %v3182 = vadd.f32 0.0, %v3181
    %v3183 = vpop.f32.mrb[0].mxu0
    %3184 = vmatprep.mubr.bf16.mxu0 0
    %3185 = vmatmul.mubr.bf16.gmra.mrb[0].mxu0 %v1910
    %v3186 = vpop.f32.mrb[0].mxu0
    %v3187 = vadd.f32 0.0, %v3186
    %v3188 = vpop.f32.mrb[0].mxu0
    %v3189 = vpop.f32.mrb[0].mxu0
    %v3190 = vadd.f32 0.0, %v3189
    %v3191 = vpop.f32.mrb[0].mxu0
    %3192 = vmatprep.mubr.bf16.mxu0 0
    %3193 = vmatmul.mubr.bf16.gmra.mrb[0].mxu0 %v1913
    %v3194 = vpop.f32.mrb[0].mxu0
    %v3195 = vadd.f32 0.0, %v3194
    %v3196 = vpop.f32.mrb[0].mxu0
    %v3197 = vpop.f32.mrb[0].mxu0
    %v3198 = vadd.f32 0.0, %v3197
    %v3199 = vpop.f32.mrb[0].mxu0
    %3200 = vmatprep.mubr.bf16.mxu0 0
    %3201 = vmatmul.mubr.bf16.gmra.mrb[0].mxu0 %v1916
    %v3202 = vpop.f32.mrb[0].mxu0
    %v3203 = vadd.f32 0.0, %v3202
    %v3204 = vpop.f32.mrb[0].mxu0
    %v3205 = vpop.f32.mrb[0].mxu0
    %v3206 = vadd.f32 0.0, %v3205
    %v3207 = vpop.f32.mrb[0].mxu0
    %3208 = vmatprep.mubr.bf16.mxu0 0
    %3209 = vmatmul.mubr.bf16.gmra.mrb[0].mxu0 %v1919
    %v3210 = vpop.f32.mrb[0].mxu0
    %v3211 = vadd.f32 0.0, %v3210
    %v3212 = vpop.f32.mrb[0].mxu0
    %v3213 = vpop.f32.mrb[0].mxu0
    %v3214 = vadd.f32 0.0, %v3213
    %v3215 = vpop.f32.mrb[0].mxu0
    %3216 = vmatprep.mubr.bf16.mxu0 0
    %3217 = vmatmul.mubr.bf16.gmra.mrb[0].mxu0 %v1922
    %v3218 = vpop.f32.mrb[0].mxu0
    %v3219 = vadd.f32 0.0, %v3218
    %v3220 = vpop.f32.mrb[0].mxu0
    %v3221 = vpop.f32.mrb[0].mxu0
    %v3222 = vadd.f32 0.0, %v3221
    %v3223 = vpop.f32.mrb[0].mxu0
    %3224 = vmatprep.mubr.bf16.mxu0 0
    %3225 = vmatmul.mubr.bf16.gmra.mrb[0].mxu0 %v1925
    %v3226 = vpop.f32.mrb[0].mxu0
    %v3227 = vadd.f32 0.0, %v3226
    %v3228 = vpop.f32.mrb[0].mxu0
    %v3229 = vpop.f32.mrb[0].mxu0
    %v3230 = vadd.f32 0.0, %v3229
    %v3231 = vpop.f32.mrb[0].mxu0
    %3232 = vmatprep.mubr.bf16.mxu0 0
    %3233 = vmatmul.mubr.bf16.gmra.mrb[0].mxu0 %v1928
    %v3234 = vpop.f32.mrb[0].mxu0
    %v3235 = vadd.f32 0.0, %v3234
    %v3236 = vpop.f32.mrb[0].mxu0
    %v3237 = vpop.f32.mrb[0].mxu0
    %v3238 = vadd.f32 0.0, %v3237
    %v3239 = vpop.f32.mrb[0].mxu0
    %3240 = vmatprep.mubr.bf16.mxu0 0
    %3241 = vmatmul.mubr.bf16.gmra.mrb[0].mxu0 %v1931
    %v3242 = vpop.f32.mrb[0].mxu0
    %v3243 = vadd.f32 0.0, %v3242
    %v3244 = vpop.f32.mrb[0].mxu0
    %v3245 = vpop.f32.mrb[0].mxu0
    %v3246 = vadd.f32 0.0, %v3245
    %v3247 = vpop.f32.mrb[0].mxu0
    %3248 = vmatprep.mubr.bf16.mxu0 0
    %3249 = vmatmul.mubr.bf16.gmra.mrb[0].mxu0 %v1934
    %v3250 = vpop.f32.mrb[0].mxu0
    %v3251 = vadd.f32 0.0, %v3250
    %v3252 = vpop.f32.mrb[0].mxu0
    %v3253 = vpop.f32.mrb[0].mxu0
    %v3254 = vadd.f32 0.0, %v3253
    %v3255 = vpop.f32.mrb[0].mxu0
    %3256 = vmatprep.mubr.bf16.mxu0 0
    %3257 = vmatmul.mubr.bf16.gmra.mrb[0].mxu0 %v1937
    %v3258 = vpop.f32.mrb[0].mxu0
    %v3259 = vadd.f32 0.0, %v3258
    %v3260 = vpop.f32.mrb[0].mxu0
    %v3261 = vpop.f32.mrb[0].mxu0
    %v3262 = vadd.f32 0.0, %v3261
    %v3263 = vpop.f32.mrb[0].mxu0
    %3264 = vmatprep.mubr.bf16.mxu0 0
    %3265 = vmatmul.mubr.bf16.gmra.mrb[0].mxu0 %v3104
    %v3266 = vpop.f32.mrb[0].mxu0
    %v3267 = vadd.f32 0.0, %v3266
    %v3268 = vpop.f32.mrb[0].mxu0
    %v3269 = vpop.f32.mrb[0].mxu0
    %v3270 = vadd.f32 0.0, %v3269
    %v3271 = vpop.f32.mrb[0].mxu0
    %3272 = vmatprep.mubr.bf16.mxu0 0
    %3273 = vmatmul.mubr.bf16.gmra.mrb[0].mxu0 %v1943
    %v3274 = vpop.f32.mrb[0].mxu0
    %v3275 = vadd.f32 0.0, %v3274
    %v3276 = vpop.f32.mrb[0].mxu0
    %v3277 = vpop.f32.mrb[0].mxu0
    %v3278 = vadd.f32 0.0, %v3277
    %v3279 = vpop.f32.mrb[0].mxu0
    %3280 = vmatprep.mubr.bf16.mxu0 0
    %3281 = vmatmul.mubr.bf16.gmra.mrb[0].mxu0 %v1946
    %v3282 = vpop.f32.mrb[0].mxu0
    %v3283 = vadd.f32 0.0, %v3282
    %v3284 = vpop.f32.mrb[0].mxu0
    %v3285 = vpop.f32.mrb[0].mxu0
    %v3286 = vadd.f32 0.0, %v3285
    %v3287 = vpop.f32.mrb[0].mxu0
    %3288 = vmatprep.mubr.bf16.mxu0 0
    %3289 = vmatmul.mubr.bf16.gmra.mrb[0].mxu0 %v1949
    %v3290 = vpop.f32.mrb[0].mxu0
    %v3291 = vadd.f32 0.0, %v3290
    %v3292 = vpop.f32.mrb[0].mxu0
    %v3293 = vpop.f32.mrb[0].mxu0
    %v3294 = vadd.f32 0.0, %v3293
    %v3295 = vpop.f32.mrb[0].mxu0
    %3296 = vmatprep.mubr.bf16.mxu0 0
    %3297 = vmatmul.mubr.bf16.gmra.mrb[0].mxu0 %v1952
    %v3298 = vpop.f32.mrb[0].mxu0
    %v3299 = vadd.f32 0.0, %v3298
    %v3300 = vpop.f32.mrb[0].mxu0
    %v3301 = vpop.f32.mrb[0].mxu0
    %v3302 = vadd.f32 0.0, %v3301
    %v3303 = vpop.f32.mrb[0].mxu0
    %3304 = vmatprep.mubr.bf16.mxu0 0
    %3305 = vmatmul.mubr.bf16.gmra.mrb[0].mxu0 %v1955
    %v3306 = vpop.f32.mrb[0].mxu0
    %v3307 = vadd.f32 0.0, %v3306
    %v3308 = vpop.f32.mrb[0].mxu0
    %v3309 = vpop.f32.mrb[0].mxu0
    %v3310 = vadd.f32 0.0, %v3309
    %v3311 = vpop.f32.mrb[0].mxu0
    %3312 = vmatprep.mubr.bf16.mxu0 0
    %3313 = vmatmul.mubr.bf16.gmra.mrb[0].mxu0 %v1958
    %v3314 = vpop.f32.mrb[0].mxu0
    %v3315 = vadd.f32 0.0, %v3314
    %v3316 = vpop.f32.mrb[0].mxu0
    %v3317 = vpop.f32.mrb[0].mxu0
    %v3318 = vadd.f32 0.0, %v3317
    %v3319 = vpop.f32.mrb[0].mxu0
    %3320 = vmatprep.mubr.bf16.mxu0 0
    %3321 = vmatmul.mubr.bf16.gmra.mrb[0].mxu0 %v1961
    %v3322 = vpop.f32.mrb[0].mxu0
    %v3323 = vadd.f32 0.0, %v3322
    %v3324 = vpop.f32.mrb[0].mxu0
    %v3325 = vpop.f32.mrb[0].mxu0
    %v3326 = vadd.f32 0.0, %v3325
    %v3327 = vpop.f32.mrb[0].mxu0
    %3328 = vmatprep.mubr.bf16.mxu0 0
    %3329 = vmatmul.mubr.bf16.gmra.mrb[0].mxu0 %v1964
    %v3330 = vpop.f32.mrb[0].mxu0
    %v3331 = vadd.f32 0.0, %v3330
    %v3332 = vpop.f32.mrb[0].mxu0
    %v3333 = vpop.f32.mrb[0].mxu0
    %v3334 = vadd.f32 0.0, %v3333
    %v3335 = vpop.f32.mrb[0].mxu0
    %3336 = vmatprep.mubr.bf16.mxu0 0
    %3337 = vmatmul.mubr.bf16.gmra.mrb[0].mxu0 %v1967
    %v3338 = vpop.f32.mrb[0].mxu0
    %v3339 = vadd.f32 0.0, %v3338
    %v3340 = vpop.f32.mrb[0].mxu0
    %v3341 = vpop.f32.mrb[0].mxu0
    %v3342 = vadd.f32 0.0, %v3341
    %v3343 = vpop.f32.mrb[0].mxu0
    %3344 = vmatprep.mubr.bf16.mxu0 0
    %3345 = vmatmul.mubr.bf16.gmra.mrb[0].mxu0 %v1970
    %v3346 = vpop.f32.mrb[0].mxu0
    %v3347 = vadd.f32 0.0, %v3346
    %v3348 = vpop.f32.mrb[0].mxu0
    %v3349 = vpop.f32.mrb[0].mxu0
    %v3350 = vadd.f32 0.0, %v3349
    %v3351 = vpop.f32.mrb[0].mxu0
    %3352 = vmatprep.mubr.bf16.mxu0 0
    %3353 = vmatmul.mubr.bf16.gmra.mrb[0].mxu0 %v1973
    %v3354 = vpop.f32.mrb[0].mxu0
    %v3355 = vadd.f32 0.0, %v3354
    %v3356 = vpop.f32.mrb[0].mxu0
    %v3357 = vpop.f32.mrb[0].mxu0
    %v3358 = vadd.f32 0.0, %v3357
    %v3359 = vpop.f32.mrb[0].mxu0
    %3360 = vmatprep.mubr.bf16.mxu0 0
    %3361 = vmatmul.mubr.bf16.gmra.mrb[0].mxu0 %v1976
    %v3362 = vpop.f32.mrb[0].mxu0
    %v3363 = vadd.f32 0.0, %v3362
    %v3364 = vpop.f32.mrb[0].mxu0
    %v3365 = vpop.f32.mrb[0].mxu0
    %v3366 = vadd.f32 0.0, %v3365
    %v3367 = vpop.f32.mrb[0].mxu0
    %3368 = vmatprep.mubr.bf16.mxu0 0
    %3369 = vmatmul.mubr.bf16.gmra.mrb[0].mxu0 %v1979
    %v3370 = vpop.f32.mrb[0].mxu0
    %v3371 = vadd.f32 0.0, %v3370
    %v3372 = vpop.f32.mrb[0].mxu0
    %v3373 = vpop.f32.mrb[0].mxu0
    %v3374 = vadd.f32 0.0, %v3373
    %v3375 = vpop.f32.mrb[0].mxu0
    %3376 = vmatprep.mubr.bf16.mxu0 0
    %3377 = vmatmul.mubr.bf16.gmra.mrb[0].mxu0 %v1982
    %v3378 = vpop.f32.mrb[0].mxu0
    %v3379 = vadd.f32 0.0, %v3378
    %v3380 = vpop.f32.mrb[0].mxu0
    %v3381 = vpop.f32.mrb[0].mxu0
    %v3382 = vadd.f32 0.0, %v3381
    %v3383 = vpop.f32.mrb[0].mxu0
    %3384 = vmatprep.mubr.bf16.mxu0 0
    %3385 = vmatmul.mubr.bf16.gmra.mrb[0].mxu0 %v1985
    %v3386 = vpop.f32.mrb[0].mxu0
    %v3387 = vadd.f32 0.0, %v3386
    %v3388 = vpop.f32.mrb[0].mxu0
    %v3389 = vpop.f32.mrb[0].mxu0
    %v3390 = vadd.f32 0.0, %v3389
    %v3391 = vpop.f32.mrb[0].mxu0
    %3392 = vmatprep.mubr.bf16.mxu0 0
    %3393 = vmatmul.mubr.bf16.gmra.mrb[0].mxu0 %v3107
    %v3394 = vpop.f32.mrb[0].mxu0
    %v3395 = vadd.f32 0.0, %v3394
    %v3396 = vpop.f32.mrb[0].mxu0
    %v3397 = vpop.f32.mrb[0].mxu0
    %v3398 = vadd.f32 0.0, %v3397
    %v3399 = vpop.f32.mrb[0].mxu0
    %3400 = vdwg.mxu0
    %v3401 = vadd.f32 %v3025, %v3147
    %v3402 = vadd.f32 %v3026, %v3150
    %v3403 = vadd.f32 %v3027, %v3155
    %v3404 = vadd.f32 %v3028, %v3158
    %v3405 = vadd.f32 %v3029, %v3163
    %v3406 = vadd.f32 %v3030, %v3166
    %v3407 = vadd.f32 %v3031, %v3171
    %v3408 = vadd.f32 %v3032, %v3174
    %v3409 = vadd.f32 %v3033, %v3179
    %v3410 = vadd.f32 %v3034, %v3182
    %v3411 = vadd.f32 %v3035, %v3187
    %v3412 = vadd.f32 %v3036, %v3190
    %v3413 = vadd.f32 %v3037, %v3195
    %v3414 = vadd.f32 %v3038, %v3198
    %v3415 = vadd.f32 %v3039, %v3203
    %v3416 = vadd.f32 %v3040, %v3206
    %v3417 = vadd.f32 %v3041, %v3211
    %v3418 = vadd.f32 %v3042, %v3214
    %v3419 = vadd.f32 %v3043, %v3219
    %v3420 = vadd.f32 %v3044, %v3222
    %v3421 = vadd.f32 %v3045, %v3227
    %v3422 = vadd.f32 %v3046, %v3230
    %v3423 = vadd.f32 %v3047, %v3235
    %v3424 = vadd.f32 %v3048, %v3238
    %v3425 = vadd.f32 %v3049, %v3243
    %v3426 = vadd.f32 %v3050, %v3246
    %v3427 = vadd.f32 %v3051, %v3251
    %v3428 = vadd.f32 %v3052, %v3254
    %v3429 = vadd.f32 %v3053, %v3259
    %v3430 = vadd.f32 %v3054, %v3262
    %v3431 = vadd.f32 %v3055, %v3267
    %v3432 = vadd.f32 %v3056, %v3270
    %v3433 = vadd.f32 %v3057, %v3275
    %v3434 = vadd.f32 %v3058, %v3278
    %v3435 = vadd.f32 %v3059, %v3283
    %v3436 = vadd.f32 %v3060, %v3286
    %v3437 = vadd.f32 %v3061, %v3291
    %v3438 = vadd.f32 %v3062, %v3294
    %v3439 = vadd.f32 %v3063, %v3299
    %v3440 = vadd.f32 %v3064, %v3302
    %v3441 = vadd.f32 %v3065, %v3307
    %v3442 = vadd.f32 %v3066, %v3310
    %v3443 = vadd.f32 %v3067, %v3315
    %v3444 = vadd.f32 %v3068, %v3318
    %v3445 = vadd.f32 %v3069, %v3323
    %v3446 = vadd.f32 %v3070, %v3326
    %v3447 = vadd.f32 %v3071, %v3331
    %v3448 = vadd.f32 %v3072, %v3334
    %v3449 = vadd.f32 %v3073, %v3339
    %v3450 = vadd.f32 %v3074, %v3342
    %v3451 = vadd.f32 %v3075, %v3347
    %v3452 = vadd.f32 %v3076, %v3350
    %v3453 = vadd.f32 %v3077, %v3355
    %v3454 = vadd.f32 %v3078, %v3358
    %v3455 = vadd.f32 %v3079, %v3363
    %v3456 = vadd.f32 %v3080, %v3366
    %v3457 = vadd.f32 %v3081, %v3371
    %v3458 = vadd.f32 %v3082, %v3374
    %v3459 = vadd.f32 %v3083, %v3379
    %v3460 = vadd.f32 %v3084, %v3382
    %v3461 = vadd.f32 %v3085, %v3387
    %v3462 = vadd.f32 %v3086, %v3390
    %v3463 = vadd.f32 %v3087, %v3395
    %v3464 = vadd.f32 %v3088, %v3398
    %v3466 = vshrl.u32 %v462, 16
    %v3468 = vrot.slane %v3466, 7
    %v3470 = vshrl.u32 %v463, 16
    %v3472 = vrot.slane %v3470, 7
    %v3473 = vshll.u32 %v463, 16
    %v3475 = vor.u32 %v3472, %v3473
    %v3476 = vsel %vm536, %v3468, %v3475
    %v3478 = vshrl.u32 %v498, 16
    %v3480 = vrot.slane %v3478, 7
    %v3482 = vshrl.u32 %v499, 16
    %v3484 = vrot.slane %v3482, 7
    %v3485 = vshll.u32 %v499, 16
    %v3487 = vor.u32 %v3484, %v3485
    %v3488 = vsel %vm536, %v3480, %v3487
    %v3490 = vsel %vm108, %v3476, 0
    %v3493 = vsel %vm108, %v3488, 0
    %v3496 = vsel %vm985, %v425, 0
    %3498 = vmatprep.subr.bf16.mxu0 0
    %3499 = vmatpush1.bf16.msra.mxu0 %v3496
    %3500 = vmatprep.subr.bf16.mxu0 0
    %3501 = vmatpush1.bf16.msra.mxu0 0
    %3502 = vmatprep.subr.bf16.mxu0 0
    %3503 = vmatpush1.bf16.msra.mxu0 0
    %3504 = vmatprep.subr.bf16.mxu0 0
    %3505 = vmatpush1.bf16.msra.mxu0 0
    %3506 = vmatprep.subr.bf16.mxu0 0
    %3507 = vmatpush1.bf16.msra.mxu0 0
    %3508 = vmatprep.subr.bf16.mxu0 0
    %3509 = vmatpush1.bf16.msra.mxu0 0
    %3510 = vmatprep.subr.bf16.mxu0 0
    %3511 = vmatpush1.bf16.msra.mxu0 0
    %3512 = vmatprep.subr.bf16.mxu0 0
    %3513 = vmatpush1.bf16.msra.mxu0 0
    %3514 = vmatprep.subr.bf16.mxu0 0
    %3515 = vmatpush1.bf16.msra.mxu0 0
    %3516 = vmatprep.subr.bf16.mxu0 0
    %3517 = vmatpush1.bf16.msra.mxu0 0
    %3518 = vmatprep.subr.bf16.mxu0 0
    %3519 = vmatpush1.bf16.msra.mxu0 0
    %3520 = vmatprep.subr.bf16.mxu0 0
    %3521 = vmatpush1.bf16.msra.mxu0 0
    %3522 = vmatprep.subr.bf16.mxu0 0
    %3523 = vmatpush1.bf16.msra.mxu0 0
    %3524 = vmatprep.subr.bf16.mxu0 0
    %3525 = vmatpush1.bf16.msra.mxu0 0
    %3526 = vmatprep.subr.bf16.mxu0 0
    %3527 = vmatpush1.bf16.msra.mxu0 0
    %3528 = vmatprep.subr.bf16.mxu0 0
    %3529 = vmatpush1.bf16.msra.mxu0 0
    %3530 = vmatprep.mubr.bf16.mxu0 0
    %3531 = vmatmul.mubr.bf16.gmra.mrb[0].mxu0 %v1285
    %v3532 = vpop.f32.mrb[0].mxu0
    %v3533 = vadd.f32 0.0, %v3532
    %v3534 = vpop.f32.mrb[0].mxu0
    %v3535 = vpop.f32.mrb[0].mxu0
    %v3536 = vadd.f32 0.0, %v3535
    %v3537 = vpop.f32.mrb[0].mxu0
    %3538 = vmatprep.mubr.bf16.mxu0 0
    %3539 = vmatmul.mubr.bf16.gmra.mrb[0].mxu0 %v1288
    %v3540 = vpop.f32.mrb[0].mxu0
    %v3541 = vadd.f32 0.0, %v3540
    %v3542 = vpop.f32.mrb[0].mxu0
    %v3543 = vpop.f32.mrb[0].mxu0
    %v3544 = vadd.f32 0.0, %v3543
    %v3545 = vpop.f32.mrb[0].mxu0
    %3546 = vmatprep.mubr.bf16.mxu0 0
    %3547 = vmatmul.mubr.bf16.gmra.mrb[0].mxu0 %v1291
    %v3548 = vpop.f32.mrb[0].mxu0
    %v3549 = vadd.f32 0.0, %v3548
    %v3550 = vpop.f32.mrb[0].mxu0
    %v3551 = vpop.f32.mrb[0].mxu0
    %v3552 = vadd.f32 0.0, %v3551
    %v3553 = vpop.f32.mrb[0].mxu0
    %3554 = vmatprep.mubr.bf16.mxu0 0
    %3555 = vmatmul.mubr.bf16.gmra.mrb[0].mxu0 %v1294
    %v3556 = vpop.f32.mrb[0].mxu0
    %v3557 = vadd.f32 0.0, %v3556
    %v3558 = vpop.f32.mrb[0].mxu0
    %v3559 = vpop.f32.mrb[0].mxu0
    %v3560 = vadd.f32 0.0, %v3559
    %v3561 = vpop.f32.mrb[0].mxu0
    %3562 = vmatprep.mubr.bf16.mxu0 0
    %3563 = vmatmul.mubr.bf16.gmra.mrb[0].mxu0 %v1297
    %v3564 = vpop.f32.mrb[0].mxu0
    %v3565 = vadd.f32 0.0, %v3564
    %v3566 = vpop.f32.mrb[0].mxu0
    %v3567 = vpop.f32.mrb[0].mxu0
    %v3568 = vadd.f32 0.0, %v3567
    %v3569 = vpop.f32.mrb[0].mxu0
    %3570 = vmatprep.mubr.bf16.mxu0 0
    %3571 = vmatmul.mubr.bf16.gmra.mrb[0].mxu0 %v1300
    %v3572 = vpop.f32.mrb[0].mxu0
    %v3573 = vadd.f32 0.0, %v3572
    %v3574 = vpop.f32.mrb[0].mxu0
    %v3575 = vpop.f32.mrb[0].mxu0
    %v3576 = vadd.f32 0.0, %v3575
    %v3577 = vpop.f32.mrb[0].mxu0
    %3578 = vmatprep.mubr.bf16.mxu0 0
    %3579 = vmatmul.mubr.bf16.gmra.mrb[0].mxu0 %v1303
    %v3580 = vpop.f32.mrb[0].mxu0
    %v3581 = vadd.f32 0.0, %v3580
    %v3582 = vpop.f32.mrb[0].mxu0
    %v3583 = vpop.f32.mrb[0].mxu0
    %v3584 = vadd.f32 0.0, %v3583
    %v3585 = vpop.f32.mrb[0].mxu0
    %3586 = vmatprep.mubr.bf16.mxu0 0
    %3587 = vmatmul.mubr.bf16.gmra.mrb[0].mxu0 %v1306
    %v3588 = vpop.f32.mrb[0].mxu0
    %v3589 = vadd.f32 0.0, %v3588
    %v3590 = vpop.f32.mrb[0].mxu0
    %v3591 = vpop.f32.mrb[0].mxu0
    %v3592 = vadd.f32 0.0, %v3591
    %v3593 = vpop.f32.mrb[0].mxu0
    %3594 = vmatprep.mubr.bf16.mxu0 0
    %3595 = vmatmul.mubr.bf16.gmra.mrb[0].mxu0 %v1309
    %v3596 = vpop.f32.mrb[0].mxu0
    %v3597 = vadd.f32 0.0, %v3596
    %v3598 = vpop.f32.mrb[0].mxu0
    %v3599 = vpop.f32.mrb[0].mxu0
    %v3600 = vadd.f32 0.0, %v3599
    %v3601 = vpop.f32.mrb[0].mxu0
    %3602 = vmatprep.mubr.bf16.mxu0 0
    %3603 = vmatmul.mubr.bf16.gmra.mrb[0].mxu0 %v1312
    %v3604 = vpop.f32.mrb[0].mxu0
    %v3605 = vadd.f32 0.0, %v3604
    %v3606 = vpop.f32.mrb[0].mxu0
    %v3607 = vpop.f32.mrb[0].mxu0
    %v3608 = vadd.f32 0.0, %v3607
    %v3609 = vpop.f32.mrb[0].mxu0
    %3610 = vmatprep.mubr.bf16.mxu0 0
    %3611 = vmatmul.mubr.bf16.gmra.mrb[0].mxu0 %v1315
    %v3612 = vpop.f32.mrb[0].mxu0
    %v3613 = vadd.f32 0.0, %v3612
    %v3614 = vpop.f32.mrb[0].mxu0
    %v3615 = vpop.f32.mrb[0].mxu0
    %v3616 = vadd.f32 0.0, %v3615
    %v3617 = vpop.f32.mrb[0].mxu0
    %3618 = vmatprep.mubr.bf16.mxu0 0
    %3619 = vmatmul.mubr.bf16.gmra.mrb[0].mxu0 %v1318
    %v3620 = vpop.f32.mrb[0].mxu0
    %v3621 = vadd.f32 0.0, %v3620
    %v3622 = vpop.f32.mrb[0].mxu0
    %v3623 = vpop.f32.mrb[0].mxu0
    %v3624 = vadd.f32 0.0, %v3623
    %v3625 = vpop.f32.mrb[0].mxu0
    %3626 = vmatprep.mubr.bf16.mxu0 0
    %3627 = vmatmul.mubr.bf16.gmra.mrb[0].mxu0 %v1321
    %v3628 = vpop.f32.mrb[0].mxu0
    %v3629 = vadd.f32 0.0, %v3628
    %v3630 = vpop.f32.mrb[0].mxu0
    %v3631 = vpop.f32.mrb[0].mxu0
    %v3632 = vadd.f32 0.0, %v3631
    %v3633 = vpop.f32.mrb[0].mxu0
    %3634 = vmatprep.mubr.bf16.mxu0 0
    %3635 = vmatmul.mubr.bf16.gmra.mrb[0].mxu0 %v1324
    %v3636 = vpop.f32.mrb[0].mxu0
    %v3637 = vadd.f32 0.0, %v3636
    %v3638 = vpop.f32.mrb[0].mxu0
    %v3639 = vpop.f32.mrb[0].mxu0
    %v3640 = vadd.f32 0.0, %v3639
    %v3641 = vpop.f32.mrb[0].mxu0
    %3642 = vmatprep.mubr.bf16.mxu0 0
    %3643 = vmatmul.mubr.bf16.gmra.mrb[0].mxu0 %v2368
    %v3644 = vpop.f32.mrb[0].mxu0
    %v3645 = vadd.f32 0.0, %v3644
    %v3646 = vpop.f32.mrb[0].mxu0
    %v3647 = vpop.f32.mrb[0].mxu0
    %v3648 = vadd.f32 0.0, %v3647
    %v3649 = vpop.f32.mrb[0].mxu0
    %3650 = vmatprep.mubr.bf16.mxu0 0
    %3651 = vmatmul.mubr.bf16.gmra.mrb[0].mxu0 %v3490
    %v3652 = vpop.f32.mrb[0].mxu0
    %v3653 = vadd.f32 0.0, %v3652
    %v3654 = vpop.f32.mrb[0].mxu0
    %v3655 = vpop.f32.mrb[0].mxu0
    %v3656 = vadd.f32 0.0, %v3655
    %v3657 = vpop.f32.mrb[0].mxu0
    %3658 = vmatprep.mubr.bf16.mxu0 0
    %3659 = vmatmul.mubr.bf16.gmra.mrb[0].mxu0 %v1333
    %v3660 = vpop.f32.mrb[0].mxu0
    %v3661 = vadd.f32 0.0, %v3660
    %v3662 = vpop.f32.mrb[0].mxu0
    %v3663 = vpop.f32.mrb[0].mxu0
    %v3664 = vadd.f32 0.0, %v3663
    %v3665 = vpop.f32.mrb[0].mxu0
    %3666 = vmatprep.mubr.bf16.mxu0 0
    %3667 = vmatmul.mubr.bf16.gmra.mrb[0].mxu0 %v1336
    %v3668 = vpop.f32.mrb[0].mxu0
    %v3669 = vadd.f32 0.0, %v3668
    %v3670 = vpop.f32.mrb[0].mxu0
    %v3671 = vpop.f32.mrb[0].mxu0
    %v3672 = vadd.f32 0.0, %v3671
    %v3673 = vpop.f32.mrb[0].mxu0
    %3674 = vmatprep.mubr.bf16.mxu0 0
    %3675 = vmatmul.mubr.bf16.gmra.mrb[0].mxu0 %v1339
    %v3676 = vpop.f32.mrb[0].mxu0
    %v3677 = vadd.f32 0.0, %v3676
    %v3678 = vpop.f32.mrb[0].mxu0
    %v3679 = vpop.f32.mrb[0].mxu0
    %v3680 = vadd.f32 0.0, %v3679
    %v3681 = vpop.f32.mrb[0].mxu0
    %3682 = vmatprep.mubr.bf16.mxu0 0
    %3683 = vmatmul.mubr.bf16.gmra.mrb[0].mxu0 %v1342
    %v3684 = vpop.f32.mrb[0].mxu0
    %v3685 = vadd.f32 0.0, %v3684
    %v3686 = vpop.f32.mrb[0].mxu0
    %v3687 = vpop.f32.mrb[0].mxu0
    %v3688 = vadd.f32 0.0, %v3687
    %v3689 = vpop.f32.mrb[0].mxu0
    %3690 = vmatprep.mubr.bf16.mxu0 0
    %3691 = vmatmul.mubr.bf16.gmra.mrb[0].mxu0 %v1345
    %v3692 = vpop.f32.mrb[0].mxu0
    %v3693 = vadd.f32 0.0, %v3692
    %v3694 = vpop.f32.mrb[0].mxu0
    %v3695 = vpop.f32.mrb[0].mxu0
    %v3696 = vadd.f32 0.0, %v3695
    %v3697 = vpop.f32.mrb[0].mxu0
    %3698 = vmatprep.mubr.bf16.mxu0 0
    %3699 = vmatmul.mubr.bf16.gmra.mrb[0].mxu0 %v1348
    %v3700 = vpop.f32.mrb[0].mxu0
    %v3701 = vadd.f32 0.0, %v3700
    %v3702 = vpop.f32.mrb[0].mxu0
    %v3703 = vpop.f32.mrb[0].mxu0
    %v3704 = vadd.f32 0.0, %v3703
    %v3705 = vpop.f32.mrb[0].mxu0
    %3706 = vmatprep.mubr.bf16.mxu0 0
    %3707 = vmatmul.mubr.bf16.gmra.mrb[0].mxu0 %v1351
    %v3708 = vpop.f32.mrb[0].mxu0
    %v3709 = vadd.f32 0.0, %v3708
    %v3710 = vpop.f32.mrb[0].mxu0
    %v3711 = vpop.f32.mrb[0].mxu0
    %v3712 = vadd.f32 0.0, %v3711
    %v3713 = vpop.f32.mrb[0].mxu0
    %3714 = vmatprep.mubr.bf16.mxu0 0
    %3715 = vmatmul.mubr.bf16.gmra.mrb[0].mxu0 %v1354
    %v3716 = vpop.f32.mrb[0].mxu0
    %v3717 = vadd.f32 0.0, %v3716
    %v3718 = vpop.f32.mrb[0].mxu0
    %v3719 = vpop.f32.mrb[0].mxu0
    %v3720 = vadd.f32 0.0, %v3719
    %v3721 = vpop.f32.mrb[0].mxu0
    %3722 = vmatprep.mubr.bf16.mxu0 0
    %3723 = vmatmul.mubr.bf16.gmra.mrb[0].mxu0 %v1357
    %v3724 = vpop.f32.mrb[0].mxu0
    %v3725 = vadd.f32 0.0, %v3724
    %v3726 = vpop.f32.mrb[0].mxu0
    %v3727 = vpop.f32.mrb[0].mxu0
    %v3728 = vadd.f32 0.0, %v3727
    %v3729 = vpop.f32.mrb[0].mxu0
    %3730 = vmatprep.mubr.bf16.mxu0 0
    %3731 = vmatmul.mubr.bf16.gmra.mrb[0].mxu0 %v1360
    %v3732 = vpop.f32.mrb[0].mxu0
    %v3733 = vadd.f32 0.0, %v3732
    %v3734 = vpop.f32.mrb[0].mxu0
    %v3735 = vpop.f32.mrb[0].mxu0
    %v3736 = vadd.f32 0.0, %v3735
    %v3737 = vpop.f32.mrb[0].mxu0
    %3738 = vmatprep.mubr.bf16.mxu0 0
    %3739 = vmatmul.mubr.bf16.gmra.mrb[0].mxu0 %v1363
    %v3740 = vpop.f32.mrb[0].mxu0
    %v3741 = vadd.f32 0.0, %v3740
    %v3742 = vpop.f32.mrb[0].mxu0
    %v3743 = vpop.f32.mrb[0].mxu0
    %v3744 = vadd.f32 0.0, %v3743
    %v3745 = vpop.f32.mrb[0].mxu0
    %3746 = vmatprep.mubr.bf16.mxu0 0
    %3747 = vmatmul.mubr.bf16.gmra.mrb[0].mxu0 %v1366
    %v3748 = vpop.f32.mrb[0].mxu0
    %v3749 = vadd.f32 0.0, %v3748
    %v3750 = vpop.f32.mrb[0].mxu0
    %v3751 = vpop.f32.mrb[0].mxu0
    %v3752 = vadd.f32 0.0, %v3751
    %v3753 = vpop.f32.mrb[0].mxu0
    %3754 = vmatprep.mubr.bf16.mxu0 0
    %3755 = vmatmul.mubr.bf16.gmra.mrb[0].mxu0 %v1369
    %v3756 = vpop.f32.mrb[0].mxu0
    %v3757 = vadd.f32 0.0, %v3756
    %v3758 = vpop.f32.mrb[0].mxu0
    %v3759 = vpop.f32.mrb[0].mxu0
    %v3760 = vadd.f32 0.0, %v3759
    %v3761 = vpop.f32.mrb[0].mxu0
    %3762 = vmatprep.mubr.bf16.mxu0 0
    %3763 = vmatmul.mubr.bf16.gmra.mrb[0].mxu0 %v1372
    %v3764 = vpop.f32.mrb[0].mxu0
    %v3765 = vadd.f32 0.0, %v3764
    %v3766 = vpop.f32.mrb[0].mxu0
    %v3767 = vpop.f32.mrb[0].mxu0
    %v3768 = vadd.f32 0.0, %v3767
    %v3769 = vpop.f32.mrb[0].mxu0
    %3770 = vmatprep.mubr.bf16.mxu0 0
    %3771 = vmatmul.mubr.bf16.gmra.mrb[0].mxu0 %v2371
    %v3772 = vpop.f32.mrb[0].mxu0
    %v3773 = vadd.f32 0.0, %v3772
    %v3774 = vpop.f32.mrb[0].mxu0
    %v3775 = vpop.f32.mrb[0].mxu0
    %v3776 = vadd.f32 0.0, %v3775
    %v3777 = vpop.f32.mrb[0].mxu0
    %3778 = vmatprep.mubr.bf16.mxu0 0
    %3779 = vmatmul.mubr.bf16.gmra.mrb[0].mxu0 %v3493
    %v3780 = vpop.f32.mrb[0].mxu0
    %v3781 = vadd.f32 0.0, %v3780
    %v3782 = vpop.f32.mrb[0].mxu0
    %v3783 = vpop.f32.mrb[0].mxu0
    %v3784 = vadd.f32 0.0, %v3783
    %v3785 = vpop.f32.mrb[0].mxu0
    %3786 = vdwg.mxu0
    %v3787 = vadd.f32 %v3401, %v3533
    %v3788 = vadd.f32 %v3402, %v3536
    %v3789 = vadd.f32 %v3403, %v3541
    %v3790 = vadd.f32 %v3404, %v3544
    %v3791 = vadd.f32 %v3405, %v3549
    %v3792 = vadd.f32 %v3406, %v3552
    %v3793 = vadd.f32 %v3407, %v3557
    %v3794 = vadd.f32 %v3408, %v3560
    %v3795 = vadd.f32 %v3409, %v3565
    %v3796 = vadd.f32 %v3410, %v3568
    %v3797 = vadd.f32 %v3411, %v3573
    %v3798 = vadd.f32 %v3412, %v3576
    %v3799 = vadd.f32 %v3413, %v3581
    %v3800 = vadd.f32 %v3414, %v3584
    %v3801 = vadd.f32 %v3415, %v3589
    %v3802 = vadd.f32 %v3416, %v3592
    %v3803 = vadd.f32 %v3417, %v3597
    %v3804 = vadd.f32 %v3418, %v3600
    %v3805 = vadd.f32 %v3419, %v3605
    %v3806 = vadd.f32 %v3420, %v3608
    %v3807 = vadd.f32 %v3421, %v3613
    %v3808 = vadd.f32 %v3422, %v3616
    %v3809 = vadd.f32 %v3423, %v3621
    %v3810 = vadd.f32 %v3424, %v3624
    %v3811 = vadd.f32 %v3425, %v3629
    %v3812 = vadd.f32 %v3426, %v3632
    %v3813 = vadd.f32 %v3427, %v3637
    %v3814 = vadd.f32 %v3428, %v3640
    %v3815 = vadd.f32 %v3429, %v3645
    %v3816 = vadd.f32 %v3430, %v3648
    %v3817 = vadd.f32 %v3431, %v3653
    %v3818 = vadd.f32 %v3432, %v3656
    %v3819 = vadd.f32 %v3433, %v3661
    %v3820 = vadd.f32 %v3434, %v3664
    %v3821 = vadd.f32 %v3435, %v3669
    %v3822 = vadd.f32 %v3436, %v3672
    %v3823 = vadd.f32 %v3437, %v3677
    %v3824 = vadd.f32 %v3438, %v3680
    %v3825 = vadd.f32 %v3439, %v3685
    %v3826 = vadd.f32 %v3440, %v3688
    %v3827 = vadd.f32 %v3441, %v3693
    %v3828 = vadd.f32 %v3442, %v3696
    %v3829 = vadd.f32 %v3443, %v3701
    %v3830 = vadd.f32 %v3444, %v3704
    %v3831 = vadd.f32 %v3445, %v3709
    %v3832 = vadd.f32 %v3446, %v3712
    %v3833 = vadd.f32 %v3447, %v3717
    %v3834 = vadd.f32 %v3448, %v3720
    %v3835 = vadd.f32 %v3449, %v3725
    %v3836 = vadd.f32 %v3450, %v3728
    %v3837 = vadd.f32 %v3451, %v3733
    %v3838 = vadd.f32 %v3452, %v3736
    %v3839 = vadd.f32 %v3453, %v3741
    %v3840 = vadd.f32 %v3454, %v3744
    %v3841 = vadd.f32 %v3455, %v3749
    %v3842 = vadd.f32 %v3456, %v3752
    %v3843 = vadd.f32 %v3457, %v3757
    %v3844 = vadd.f32 %v3458, %v3760
    %v3845 = vadd.f32 %v3459, %v3765
    %v3846 = vadd.f32 %v3460, %v3768
    %v3847 = vadd.f32 %v3461, %v3773
    %v3848 = vadd.f32 %v3462, %v3776
    %v3849 = vadd.f32 %v3463, %v3781
    %v3850 = vadd.f32 %v3464, %v3784
    %v3851 = vsel %vm108, %v463, 0
    %v3853 = vsel %vm108, %v499, 0
    %v3856 = vsel %vm985, %v426, 0
    %3858 = vmatprep.subr.bf16.mxu0 0
    %3859 = vmatpush1.bf16.msra.mxu0 %v3856
    %3860 = vmatprep.subr.bf16.mxu0 0
    %3861 = vmatpush1.bf16.msra.mxu0 0
    %3862 = vmatprep.subr.bf16.mxu0 0
    %3863 = vmatpush1.bf16.msra.mxu0 0
    %3864 = vmatprep.subr.bf16.mxu0 0
    %3865 = vmatpush1.bf16.msra.mxu0 0
    %3866 = vmatprep.subr.bf16.mxu0 0
    %3867 = vmatpush1.bf16.msra.mxu0 0
    %3868 = vmatprep.subr.bf16.mxu0 0
    %3869 = vmatpush1.bf16.msra.mxu0 0
    %3870 = vmatprep.subr.bf16.mxu0 0
    %3871 = vmatpush1.bf16.msra.mxu0 0
    %3872 = vmatprep.subr.bf16.mxu0 0
    %3873 = vmatpush1.bf16.msra.mxu0 0
    %3874 = vmatprep.subr.bf16.mxu0 0
    %3875 = vmatpush1.bf16.msra.mxu0 0
    %3876 = vmatprep.subr.bf16.mxu0 0
    %3877 = vmatpush1.bf16.msra.mxu0 0
    %3878 = vmatprep.subr.bf16.mxu0 0
    %3879 = vmatpush1.bf16.msra.mxu0 0
    %3880 = vmatprep.subr.bf16.mxu0 0
    %3881 = vmatpush1.bf16.msra.mxu0 0
    %3882 = vmatprep.subr.bf16.mxu0 0
    %3883 = vmatpush1.bf16.msra.mxu0 0
    %3884 = vmatprep.subr.bf16.mxu0 0
    %3885 = vmatpush1.bf16.msra.mxu0 0
    %3886 = vmatprep.subr.bf16.mxu0 0
    %3887 = vmatpush1.bf16.msra.mxu0 0
    %3888 = vmatprep.subr.bf16.mxu0 0
    %3889 = vmatpush1.bf16.msra.mxu0 0
    %3890 = vmatprep.mubr.bf16.mxu0 0
    %3891 = vmatmul.mubr.bf16.gmra.mrb[0].mxu0 %v925
    %v3892 = vpop.f32.mrb[0].mxu0
    %v3893 = vadd.f32 0.0, %v3892
    %v3894 = vpop.f32.mrb[0].mxu0
    %v3895 = vpop.f32.mrb[0].mxu0
    %v3896 = vadd.f32 0.0, %v3895
    %v3897 = vpop.f32.mrb[0].mxu0
    %3898 = vmatprep.mubr.bf16.mxu0 0
    %3899 = vmatmul.mubr.bf16.gmra.mrb[0].mxu0 %v927
    %v3900 = vpop.f32.mrb[0].mxu0
    %v3901 = vadd.f32 0.0, %v3900
    %v3902 = vpop.f32.mrb[0].mxu0
    %v3903 = vpop.f32.mrb[0].mxu0
    %v3904 = vadd.f32 0.0, %v3903
    %v3905 = vpop.f32.mrb[0].mxu0
    %3906 = vmatprep.mubr.bf16.mxu0 0
    %3907 = vmatmul.mubr.bf16.gmra.mrb[0].mxu0 %v929
    %v3908 = vpop.f32.mrb[0].mxu0
    %v3909 = vadd.f32 0.0, %v3908
    %v3910 = vpop.f32.mrb[0].mxu0
    %v3911 = vpop.f32.mrb[0].mxu0
    %v3912 = vadd.f32 0.0, %v3911
    %v3913 = vpop.f32.mrb[0].mxu0
    %3914 = vmatprep.mubr.bf16.mxu0 0
    %3915 = vmatmul.mubr.bf16.gmra.mrb[0].mxu0 %v931
    %v3916 = vpop.f32.mrb[0].mxu0
    %v3917 = vadd.f32 0.0, %v3916
    %v3918 = vpop.f32.mrb[0].mxu0
    %v3919 = vpop.f32.mrb[0].mxu0
    %v3920 = vadd.f32 0.0, %v3919
    %v3921 = vpop.f32.mrb[0].mxu0
    %3922 = vmatprep.mubr.bf16.mxu0 0
    %3923 = vmatmul.mubr.bf16.gmra.mrb[0].mxu0 %v933
    %v3924 = vpop.f32.mrb[0].mxu0
    %v3925 = vadd.f32 0.0, %v3924
    %v3926 = vpop.f32.mrb[0].mxu0
    %v3927 = vpop.f32.mrb[0].mxu0
    %v3928 = vadd.f32 0.0, %v3927
    %v3929 = vpop.f32.mrb[0].mxu0
    %3930 = vmatprep.mubr.bf16.mxu0 0
    %3931 = vmatmul.mubr.bf16.gmra.mrb[0].mxu0 %v935
    %v3932 = vpop.f32.mrb[0].mxu0
    %v3933 = vadd.f32 0.0, %v3932
    %v3934 = vpop.f32.mrb[0].mxu0
    %v3935 = vpop.f32.mrb[0].mxu0
    %v3936 = vadd.f32 0.0, %v3935
    %v3937 = vpop.f32.mrb[0].mxu0
    %3938 = vmatprep.mubr.bf16.mxu0 0
    %3939 = vmatmul.mubr.bf16.gmra.mrb[0].mxu0 %v937
    %v3940 = vpop.f32.mrb[0].mxu0
    %v3941 = vadd.f32 0.0, %v3940
    %v3942 = vpop.f32.mrb[0].mxu0
    %v3943 = vpop.f32.mrb[0].mxu0
    %v3944 = vadd.f32 0.0, %v3943
    %v3945 = vpop.f32.mrb[0].mxu0
    %3946 = vmatprep.mubr.bf16.mxu0 0
    %3947 = vmatmul.mubr.bf16.gmra.mrb[0].mxu0 %v939
    %v3948 = vpop.f32.mrb[0].mxu0
    %v3949 = vadd.f32 0.0, %v3948
    %v3950 = vpop.f32.mrb[0].mxu0
    %v3951 = vpop.f32.mrb[0].mxu0
    %v3952 = vadd.f32 0.0, %v3951
    %v3953 = vpop.f32.mrb[0].mxu0
    %3954 = vmatprep.mubr.bf16.mxu0 0
    %3955 = vmatmul.mubr.bf16.gmra.mrb[0].mxu0 %v941
    %v3956 = vpop.f32.mrb[0].mxu0
    %v3957 = vadd.f32 0.0, %v3956
    %v3958 = vpop.f32.mrb[0].mxu0
    %v3959 = vpop.f32.mrb[0].mxu0
    %v3960 = vadd.f32 0.0, %v3959
    %v3961 = vpop.f32.mrb[0].mxu0
    %3962 = vmatprep.mubr.bf16.mxu0 0
    %3963 = vmatmul.mubr.bf16.gmra.mrb[0].mxu0 %v943
    %v3964 = vpop.f32.mrb[0].mxu0
    %v3965 = vadd.f32 0.0, %v3964
    %v3966 = vpop.f32.mrb[0].mxu0
    %v3967 = vpop.f32.mrb[0].mxu0
    %v3968 = vadd.f32 0.0, %v3967
    %v3969 = vpop.f32.mrb[0].mxu0
    %3970 = vmatprep.mubr.bf16.mxu0 0
    %3971 = vmatmul.mubr.bf16.gmra.mrb[0].mxu0 %v945
    %v3972 = vpop.f32.mrb[0].mxu0
    %v3973 = vadd.f32 0.0, %v3972
    %v3974 = vpop.f32.mrb[0].mxu0
    %v3975 = vpop.f32.mrb[0].mxu0
    %v3976 = vadd.f32 0.0, %v3975
    %v3977 = vpop.f32.mrb[0].mxu0
    %3978 = vmatprep.mubr.bf16.mxu0 0
    %3979 = vmatmul.mubr.bf16.gmra.mrb[0].mxu0 %v947
    %v3980 = vpop.f32.mrb[0].mxu0
    %v3981 = vadd.f32 0.0, %v3980
    %v3982 = vpop.f32.mrb[0].mxu0
    %v3983 = vpop.f32.mrb[0].mxu0
    %v3984 = vadd.f32 0.0, %v3983
    %v3985 = vpop.f32.mrb[0].mxu0
    %3986 = vmatprep.mubr.bf16.mxu0 0
    %3987 = vmatmul.mubr.bf16.gmra.mrb[0].mxu0 %v949
    %v3988 = vpop.f32.mrb[0].mxu0
    %v3989 = vadd.f32 0.0, %v3988
    %v3990 = vpop.f32.mrb[0].mxu0
    %v3991 = vpop.f32.mrb[0].mxu0
    %v3992 = vadd.f32 0.0, %v3991
    %v3993 = vpop.f32.mrb[0].mxu0
    %3994 = vmatprep.mubr.bf16.mxu0 0
    %3995 = vmatmul.mubr.bf16.gmra.mrb[0].mxu0 %v951
    %v3996 = vpop.f32.mrb[0].mxu0
    %v3997 = vadd.f32 0.0, %v3996
    %v3998 = vpop.f32.mrb[0].mxu0
    %v3999 = vpop.f32.mrb[0].mxu0
    %v4000 = vadd.f32 0.0, %v3999
    %v4001 = vpop.f32.mrb[0].mxu0
    %4002 = vmatprep.mubr.bf16.mxu0 0
    %4003 = vmatmul.mubr.bf16.gmra.mrb[0].mxu0 %v2729
    %v4004 = vpop.f32.mrb[0].mxu0
    %v4005 = vadd.f32 0.0, %v4004
    %v4006 = vpop.f32.mrb[0].mxu0
    %v4007 = vpop.f32.mrb[0].mxu0
    %v4008 = vadd.f32 0.0, %v4007
    %v4009 = vpop.f32.mrb[0].mxu0
    %4010 = vmatprep.mubr.bf16.mxu0 0
    %4011 = vmatmul.mubr.bf16.gmra.mrb[0].mxu0 %v3851
    %v4012 = vpop.f32.mrb[0].mxu0
    %v4013 = vadd.f32 0.0, %v4012
    %v4014 = vpop.f32.mrb[0].mxu0
    %v4015 = vpop.f32.mrb[0].mxu0
    %v4016 = vadd.f32 0.0, %v4015
    %v4017 = vpop.f32.mrb[0].mxu0
    %4018 = vmatprep.mubr.bf16.mxu0 0
    %4019 = vmatmul.mubr.bf16.gmra.mrb[0].mxu0 %v957
    %v4020 = vpop.f32.mrb[0].mxu0
    %v4021 = vadd.f32 0.0, %v4020
    %v4022 = vpop.f32.mrb[0].mxu0
    %v4023 = vpop.f32.mrb[0].mxu0
    %v4024 = vadd.f32 0.0, %v4023
    %v4025 = vpop.f32.mrb[0].mxu0
    %4026 = vmatprep.mubr.bf16.mxu0 0
    %4027 = vmatmul.mubr.bf16.gmra.mrb[0].mxu0 %v959
    %v4028 = vpop.f32.mrb[0].mxu0
    %v4029 = vadd.f32 0.0, %v4028
    %v4030 = vpop.f32.mrb[0].mxu0
    %v4031 = vpop.f32.mrb[0].mxu0
    %v4032 = vadd.f32 0.0, %v4031
    %v4033 = vpop.f32.mrb[0].mxu0
    %4034 = vmatprep.mubr.bf16.mxu0 0
    %4035 = vmatmul.mubr.bf16.gmra.mrb[0].mxu0 %v961
    %v4036 = vpop.f32.mrb[0].mxu0
    %v4037 = vadd.f32 0.0, %v4036
    %v4038 = vpop.f32.mrb[0].mxu0
    %v4039 = vpop.f32.mrb[0].mxu0
    %v4040 = vadd.f32 0.0, %v4039
    %v4041 = vpop.f32.mrb[0].mxu0
    %4042 = vmatprep.mubr.bf16.mxu0 0
    %4043 = vmatmul.mubr.bf16.gmra.mrb[0].mxu0 %v963
    %v4044 = vpop.f32.mrb[0].mxu0
    %v4045 = vadd.f32 0.0, %v4044
    %v4046 = vpop.f32.mrb[0].mxu0
    %v4047 = vpop.f32.mrb[0].mxu0
    %v4048 = vadd.f32 0.0, %v4047
    %v4049 = vpop.f32.mrb[0].mxu0
    %4050 = vmatprep.mubr.bf16.mxu0 0
    %4051 = vmatmul.mubr.bf16.gmra.mrb[0].mxu0 %v965
    %v4052 = vpop.f32.mrb[0].mxu0
    %v4053 = vadd.f32 0.0, %v4052
    %v4054 = vpop.f32.mrb[0].mxu0
    %v4055 = vpop.f32.mrb[0].mxu0
    %v4056 = vadd.f32 0.0, %v4055
    %v4057 = vpop.f32.mrb[0].mxu0
    %4058 = vmatprep.mubr.bf16.mxu0 0
    %4059 = vmatmul.mubr.bf16.gmra.mrb[0].mxu0 %v967
    %v4060 = vpop.f32.mrb[0].mxu0
    %v4061 = vadd.f32 0.0, %v4060
    %v4062 = vpop.f32.mrb[0].mxu0
    %v4063 = vpop.f32.mrb[0].mxu0
    %v4064 = vadd.f32 0.0, %v4063
    %v4065 = vpop.f32.mrb[0].mxu0
    %4066 = vmatprep.mubr.bf16.mxu0 0
    %4067 = vmatmul.mubr.bf16.gmra.mrb[0].mxu0 %v969
    %v4068 = vpop.f32.mrb[0].mxu0
    %v4069 = vadd.f32 0.0, %v4068
    %v4070 = vpop.f32.mrb[0].mxu0
    %v4071 = vpop.f32.mrb[0].mxu0
    %v4072 = vadd.f32 0.0, %v4071
    %v4073 = vpop.f32.mrb[0].mxu0
    %4074 = vmatprep.mubr.bf16.mxu0 0
    %4075 = vmatmul.mubr.bf16.gmra.mrb[0].mxu0 %v971
    %v4076 = vpop.f32.mrb[0].mxu0
    %v4077 = vadd.f32 0.0, %v4076
    %v4078 = vpop.f32.mrb[0].mxu0
    %v4079 = vpop.f32.mrb[0].mxu0
    %v4080 = vadd.f32 0.0, %v4079
    %v4081 = vpop.f32.mrb[0].mxu0
    %4082 = vmatprep.mubr.bf16.mxu0 0
    %4083 = vmatmul.mubr.bf16.gmra.mrb[0].mxu0 %v973
    %v4084 = vpop.f32.mrb[0].mxu0
    %v4085 = vadd.f32 0.0, %v4084
    %v4086 = vpop.f32.mrb[0].mxu0
    %v4087 = vpop.f32.mrb[0].mxu0
    %v4088 = vadd.f32 0.0, %v4087
    %v4089 = vpop.f32.mrb[0].mxu0
    %4090 = vmatprep.mubr.bf16.mxu0 0
    %4091 = vmatmul.mubr.bf16.gmra.mrb[0].mxu0 %v975
    %v4092 = vpop.f32.mrb[0].mxu0
    %v4093 = vadd.f32 0.0, %v4092
    %v4094 = vpop.f32.mrb[0].mxu0
    %v4095 = vpop.f32.mrb[0].mxu0
    %v4096 = vadd.f32 0.0, %v4095
    %v4097 = vpop.f32.mrb[0].mxu0
    %4098 = vmatprep.mubr.bf16.mxu0 0
    %4099 = vmatmul.mubr.bf16.gmra.mrb[0].mxu0 %v977
    %v4100 = vpop.f32.mrb[0].mxu0
    %v4101 = vadd.f32 0.0, %v4100
    %v4102 = vpop.f32.mrb[0].mxu0
    %v4103 = vpop.f32.mrb[0].mxu0
    %v4104 = vadd.f32 0.0, %v4103
    %v4105 = vpop.f32.mrb[0].mxu0
    %4106 = vmatprep.mubr.bf16.mxu0 0
    %4107 = vmatmul.mubr.bf16.gmra.mrb[0].mxu0 %v979
    %v4108 = vpop.f32.mrb[0].mxu0
    %v4109 = vadd.f32 0.0, %v4108
    %v4110 = vpop.f32.mrb[0].mxu0
    %v4111 = vpop.f32.mrb[0].mxu0
    %v4112 = vadd.f32 0.0, %v4111
    %v4113 = vpop.f32.mrb[0].mxu0
    %4114 = vmatprep.mubr.bf16.mxu0 0
    %4115 = vmatmul.mubr.bf16.gmra.mrb[0].mxu0 %v981
    %v4116 = vpop.f32.mrb[0].mxu0
    %v4117 = vadd.f32 0.0, %v4116
    %v4118 = vpop.f32.mrb[0].mxu0
    %v4119 = vpop.f32.mrb[0].mxu0
    %v4120 = vadd.f32 0.0, %v4119
    %v4121 = vpop.f32.mrb[0].mxu0
    %4122 = vmatprep.mubr.bf16.mxu0 0
    %4123 = vmatmul.mubr.bf16.gmra.mrb[0].mxu0 %v983
    %v4124 = vpop.f32.mrb[0].mxu0
    %v4125 = vadd.f32 0.0, %v4124
    %v4126 = vpop.f32.mrb[0].mxu0
    %v4127 = vpop.f32.mrb[0].mxu0
    %v4128 = vadd.f32 0.0, %v4127
    %v4129 = vpop.f32.mrb[0].mxu0
    %4130 = vmatprep.mubr.bf16.mxu0 0
    %4131 = vmatmul.mubr.bf16.gmra.mrb[0].mxu0 %v2731
    %v4132 = vpop.f32.mrb[0].mxu0
    %v4133 = vadd.f32 0.0, %v4132
    %v4134 = vpop.f32.mrb[0].mxu0
    %v4135 = vpop.f32.mrb[0].mxu0
    %v4136 = vadd.f32 0.0, %v4135
    %v4137 = vpop.f32.mrb[0].mxu0
    %4138 = vmatprep.mubr.bf16.mxu0 0
    %4139 = vmatmul.mubr.bf16.gmra.mrb[0].mxu0 %v3853
    %v4140 = vpop.f32.mrb[0].mxu0
    %v4141 = vadd.f32 0.0, %v4140
    %v4142 = vpop.f32.mrb[0].mxu0
    %v4143 = vpop.f32.mrb[0].mxu0
    %v4144 = vadd.f32 0.0, %v4143
    %v4145 = vpop.f32.mrb[0].mxu0
    %4146 = vdwg.mxu0
    %v4147 = vadd.f32 %v3787, %v3893
    %v4148 = vadd.f32 %v3788, %v3896
    %v4149 = vadd.f32 %v3789, %v3901
    %v4150 = vadd.f32 %v3790, %v3904
    %v4151 = vadd.f32 %v3791, %v3909
    %v4152 = vadd.f32 %v3792, %v3912
    %v4153 = vadd.f32 %v3793, %v3917
    %v4154 = vadd.f32 %v3794, %v3920
    %v4155 = vadd.f32 %v3795, %v3925
    %v4156 = vadd.f32 %v3796, %v3928
    %v4157 = vadd.f32 %v3797, %v3933
    %v4158 = vadd.f32 %v3798, %v3936
    %v4159 = vadd.f32 %v3799, %v3941
    %v4160 = vadd.f32 %v3800, %v3944
    %v4161 = vadd.f32 %v3801, %v3949
    %v4162 = vadd.f32 %v3802, %v3952
    %v4163 = vadd.f32 %v3803, %v3957
    %v4164 = vadd.f32 %v3804, %v3960
    %v4165 = vadd.f32 %v3805, %v3965
    %v4166 = vadd.f32 %v3806, %v3968
    %v4167 = vadd.f32 %v3807, %v3973
    %v4168 = vadd.f32 %v3808, %v3976
    %v4169 = vadd.f32 %v3809, %v3981
    %v4170 = vadd.f32 %v3810, %v3984
    %v4171 = vadd.f32 %v3811, %v3989
    %v4172 = vadd.f32 %v3812, %v3992
    %v4173 = vadd.f32 %v3813, %v3997
    %v4174 = vadd.f32 %v3814, %v4000
    %v4175 = vadd.f32 %v3815, %v4005
    %v4176 = vadd.f32 %v3816, %v4008
    %v4177 = vadd.f32 %v3817, %v4013
    %v4178 = vadd.f32 %v3818, %v4016
    %v4179 = vadd.f32 %v3819, %v4021
    %v4180 = vadd.f32 %v3820, %v4024
    %v4181 = vadd.f32 %v3821, %v4029
    %v4182 = vadd.f32 %v3822, %v4032
    %v4183 = vadd.f32 %v3823, %v4037
    %v4184 = vadd.f32 %v3824, %v4040
    %v4185 = vadd.f32 %v3825, %v4045
    %v4186 = vadd.f32 %v3826, %v4048
    %v4187 = vadd.f32 %v3827, %v4053
    %v4188 = vadd.f32 %v3828, %v4056
    %v4189 = vadd.f32 %v3829, %v4061
    %v4190 = vadd.f32 %v3830, %v4064
    %v4191 = vadd.f32 %v3831, %v4069
    %v4192 = vadd.f32 %v3832, %v4072
    %v4193 = vadd.f32 %v3833, %v4077
    %v4194 = vadd.f32 %v3834, %v4080
    %v4195 = vadd.f32 %v3835, %v4085
    %v4196 = vadd.f32 %v3836, %v4088
    %v4197 = vadd.f32 %v3837, %v4093
    %v4198 = vadd.f32 %v3838, %v4096
    %v4199 = vadd.f32 %v3839, %v4101
    %v4200 = vadd.f32 %v3840, %v4104
    %v4201 = vadd.f32 %v3841, %v4109
    %v4202 = vadd.f32 %v3842, %v4112
    %v4203 = vadd.f32 %v3843, %v4117
    %v4204 = vadd.f32 %v3844, %v4120
    %v4205 = vadd.f32 %v3845, %v4125
    %v4206 = vadd.f32 %v3846, %v4128
    %v4207 = vadd.f32 %v3847, %v4133
    %v4208 = vadd.f32 %v3848, %v4136
    %v4209 = vadd.f32 %v3849, %v4141
    %v4210 = vadd.f32 %v3850, %v4144
    %v4211 = vrot.slane %v3473, 1
    %v4212 = vor.u32 %v3470, %v4211
    %v4214 = vshll.u32 %v517, 16
    %v4216 = vrot.slane %v4214, 1
    %v4217 = vsel %vm1666, %v4212, %v4216
    %v4218 = vrot.slane %v3485, 1
    %v4219 = vor.u32 %v3482, %v4218
    %v4221 = vshll.u32 %v535, 16
    %v4223 = vrot.slane %v4221, 1
    %v4224 = vsel %vm1666, %v4219, %v4223
    %v4226 = vsel %vm108, %v4217, 0
    %v4229 = vsel %vm108, %v4224, 0
    %v4232 = vsel %vm985, %v427, 0
    %4234 = vmatprep.subr.bf16.mxu0 0
    %4235 = vmatpush1.bf16.msra.mxu0 %v4232
    %4236 = vmatprep.subr.bf16.mxu0 0
    %4237 = vmatpush1.bf16.msra.mxu0 0
    %4238 = vmatprep.subr.bf16.mxu0 0
    %4239 = vmatpush1.bf16.msra.mxu0 0
    %4240 = vmatprep.subr.bf16.mxu0 0
    %4241 = vmatpush1.bf16.msra.mxu0 0
    %4242 = vmatprep.subr.bf16.mxu0 0
    %4243 = vmatpush1.bf16.msra.mxu0 0
    %4244 = vmatprep.subr.bf16.mxu0 0
    %4245 = vmatpush1.bf16.msra.mxu0 0
    %4246 = vmatprep.subr.bf16.mxu0 0
    %4247 = vmatpush1.bf16.msra.mxu0 0
    %4248 = vmatprep.subr.bf16.mxu0 0
    %4249 = vmatpush1.bf16.msra.mxu0 0
    %4250 = vmatprep.subr.bf16.mxu0 0
    %4251 = vmatpush1.bf16.msra.mxu0 0
    %4252 = vmatprep.subr.bf16.mxu0 0
    %4253 = vmatpush1.bf16.msra.mxu0 0
    %4254 = vmatprep.subr.bf16.mxu0 0
    %4255 = vmatpush1.bf16.msra.mxu0 0
    %4256 = vmatprep.subr.bf16.mxu0 0
    %4257 = vmatpush1.bf16.msra.mxu0 0
    %4258 = vmatprep.subr.bf16.mxu0 0
    %4259 = vmatpush1.bf16.msra.mxu0 0
    %4260 = vmatprep.subr.bf16.mxu0 0
    %4261 = vmatpush1.bf16.msra.mxu0 0
    %4262 = vmatprep.subr.bf16.mxu0 0
    %4263 = vmatpush1.bf16.msra.mxu0 0
    %4264 = vmatprep.subr.bf16.mxu0 0
    %4265 = vmatpush1.bf16.msra.mxu0 0
    %4266 = vmatprep.mubr.bf16.mxu0 0
    %4267 = vmatmul.mubr.bf16.gmra.mrb[0].mxu0 %v1898
    %v4268 = vpop.f32.mrb[0].mxu0
    %v4269 = vadd.f32 0.0, %v4268
    %v4270 = vpop.f32.mrb[0].mxu0
    %v4271 = vpop.f32.mrb[0].mxu0
    %v4272 = vadd.f32 0.0, %v4271
    %v4273 = vpop.f32.mrb[0].mxu0
    %4274 = vmatprep.mubr.bf16.mxu0 0
    %4275 = vmatmul.mubr.bf16.gmra.mrb[0].mxu0 %v1901
    %v4276 = vpop.f32.mrb[0].mxu0
    %v4277 = vadd.f32 0.0, %v4276
    %v4278 = vpop.f32.mrb[0].mxu0
    %v4279 = vpop.f32.mrb[0].mxu0
    %v4280 = vadd.f32 0.0, %v4279
    %v4281 = vpop.f32.mrb[0].mxu0
    %4282 = vmatprep.mubr.bf16.mxu0 0
    %4283 = vmatmul.mubr.bf16.gmra.mrb[0].mxu0 %v1904
    %v4284 = vpop.f32.mrb[0].mxu0
    %v4285 = vadd.f32 0.0, %v4284
    %v4286 = vpop.f32.mrb[0].mxu0
    %v4287 = vpop.f32.mrb[0].mxu0
    %v4288 = vadd.f32 0.0, %v4287
    %v4289 = vpop.f32.mrb[0].mxu0
    %4290 = vmatprep.mubr.bf16.mxu0 0
    %4291 = vmatmul.mubr.bf16.gmra.mrb[0].mxu0 %v1907
    %v4292 = vpop.f32.mrb[0].mxu0
    %v4293 = vadd.f32 0.0, %v4292
    %v4294 = vpop.f32.mrb[0].mxu0
    %v4295 = vpop.f32.mrb[0].mxu0
    %v4296 = vadd.f32 0.0, %v4295
    %v4297 = vpop.f32.mrb[0].mxu0
    %4298 = vmatprep.mubr.bf16.mxu0 0
    %4299 = vmatmul.mubr.bf16.gmra.mrb[0].mxu0 %v1910
    %v4300 = vpop.f32.mrb[0].mxu0
    %v4301 = vadd.f32 0.0, %v4300
    %v4302 = vpop.f32.mrb[0].mxu0
    %v4303 = vpop.f32.mrb[0].mxu0
    %v4304 = vadd.f32 0.0, %v4303
    %v4305 = vpop.f32.mrb[0].mxu0
    %4306 = vmatprep.mubr.bf16.mxu0 0
    %4307 = vmatmul.mubr.bf16.gmra.mrb[0].mxu0 %v1913
    %v4308 = vpop.f32.mrb[0].mxu0
    %v4309 = vadd.f32 0.0, %v4308
    %v4310 = vpop.f32.mrb[0].mxu0
    %v4311 = vpop.f32.mrb[0].mxu0
    %v4312 = vadd.f32 0.0, %v4311
    %v4313 = vpop.f32.mrb[0].mxu0
    %4314 = vmatprep.mubr.bf16.mxu0 0
    %4315 = vmatmul.mubr.bf16.gmra.mrb[0].mxu0 %v1916
    %v4316 = vpop.f32.mrb[0].mxu0
    %v4317 = vadd.f32 0.0, %v4316
    %v4318 = vpop.f32.mrb[0].mxu0
    %v4319 = vpop.f32.mrb[0].mxu0
    %v4320 = vadd.f32 0.0, %v4319
    %v4321 = vpop.f32.mrb[0].mxu0
    %4322 = vmatprep.mubr.bf16.mxu0 0
    %4323 = vmatmul.mubr.bf16.gmra.mrb[0].mxu0 %v1919
    %v4324 = vpop.f32.mrb[0].mxu0
    %v4325 = vadd.f32 0.0, %v4324
    %v4326 = vpop.f32.mrb[0].mxu0
    %v4327 = vpop.f32.mrb[0].mxu0
    %v4328 = vadd.f32 0.0, %v4327
    %v4329 = vpop.f32.mrb[0].mxu0
    %4330 = vmatprep.mubr.bf16.mxu0 0
    %4331 = vmatmul.mubr.bf16.gmra.mrb[0].mxu0 %v1922
    %v4332 = vpop.f32.mrb[0].mxu0
    %v4333 = vadd.f32 0.0, %v4332
    %v4334 = vpop.f32.mrb[0].mxu0
    %v4335 = vpop.f32.mrb[0].mxu0
    %v4336 = vadd.f32 0.0, %v4335
    %v4337 = vpop.f32.mrb[0].mxu0
    %4338 = vmatprep.mubr.bf16.mxu0 0
    %4339 = vmatmul.mubr.bf16.gmra.mrb[0].mxu0 %v1925
    %v4340 = vpop.f32.mrb[0].mxu0
    %v4341 = vadd.f32 0.0, %v4340
    %v4342 = vpop.f32.mrb[0].mxu0
    %v4343 = vpop.f32.mrb[0].mxu0
    %v4344 = vadd.f32 0.0, %v4343
    %v4345 = vpop.f32.mrb[0].mxu0
    %4346 = vmatprep.mubr.bf16.mxu0 0
    %4347 = vmatmul.mubr.bf16.gmra.mrb[0].mxu0 %v1928
    %v4348 = vpop.f32.mrb[0].mxu0
    %v4349 = vadd.f32 0.0, %v4348
    %v4350 = vpop.f32.mrb[0].mxu0
    %v4351 = vpop.f32.mrb[0].mxu0
    %v4352 = vadd.f32 0.0, %v4351
    %v4353 = vpop.f32.mrb[0].mxu0
    %4354 = vmatprep.mubr.bf16.mxu0 0
    %4355 = vmatmul.mubr.bf16.gmra.mrb[0].mxu0 %v1931
    %v4356 = vpop.f32.mrb[0].mxu0
    %v4357 = vadd.f32 0.0, %v4356
    %v4358 = vpop.f32.mrb[0].mxu0
    %v4359 = vpop.f32.mrb[0].mxu0
    %v4360 = vadd.f32 0.0, %v4359
    %v4361 = vpop.f32.mrb[0].mxu0
    %4362 = vmatprep.mubr.bf16.mxu0 0
    %4363 = vmatmul.mubr.bf16.gmra.mrb[0].mxu0 %v1934
    %v4364 = vpop.f32.mrb[0].mxu0
    %v4365 = vadd.f32 0.0, %v4364
    %v4366 = vpop.f32.mrb[0].mxu0
    %v4367 = vpop.f32.mrb[0].mxu0
    %v4368 = vadd.f32 0.0, %v4367
    %v4369 = vpop.f32.mrb[0].mxu0
    %4370 = vmatprep.mubr.bf16.mxu0 0
    %4371 = vmatmul.mubr.bf16.gmra.mrb[0].mxu0 %v1937
    %v4372 = vpop.f32.mrb[0].mxu0
    %v4373 = vadd.f32 0.0, %v4372
    %v4374 = vpop.f32.mrb[0].mxu0
    %v4375 = vpop.f32.mrb[0].mxu0
    %v4376 = vadd.f32 0.0, %v4375
    %v4377 = vpop.f32.mrb[0].mxu0
    %4378 = vmatprep.mubr.bf16.mxu0 0
    %4379 = vmatmul.mubr.bf16.gmra.mrb[0].mxu0 %v3104
    %v4380 = vpop.f32.mrb[0].mxu0
    %v4381 = vadd.f32 0.0, %v4380
    %v4382 = vpop.f32.mrb[0].mxu0
    %v4383 = vpop.f32.mrb[0].mxu0
    %v4384 = vadd.f32 0.0, %v4383
    %v4385 = vpop.f32.mrb[0].mxu0
    %4386 = vmatprep.mubr.bf16.mxu0 0
    %4387 = vmatmul.mubr.bf16.gmra.mrb[0].mxu0 %v4226
    %v4388 = vpop.f32.mrb[0].mxu0
    %v4389 = vadd.f32 0.0, %v4388
    %v4390 = vpop.f32.mrb[0].mxu0
    %v4391 = vpop.f32.mrb[0].mxu0
    %v4392 = vadd.f32 0.0, %v4391
    %v4393 = vpop.f32.mrb[0].mxu0
    %4394 = vmatprep.mubr.bf16.mxu0 0
    %4395 = vmatmul.mubr.bf16.gmra.mrb[0].mxu0 %v1946
    %v4396 = vpop.f32.mrb[0].mxu0
    %v4397 = vadd.f32 0.0, %v4396
    %v4398 = vpop.f32.mrb[0].mxu0
    %v4399 = vpop.f32.mrb[0].mxu0
    %v4400 = vadd.f32 0.0, %v4399
    %v4401 = vpop.f32.mrb[0].mxu0
    %4402 = vmatprep.mubr.bf16.mxu0 0
    %4403 = vmatmul.mubr.bf16.gmra.mrb[0].mxu0 %v1949
    %v4404 = vpop.f32.mrb[0].mxu0
    %v4405 = vadd.f32 0.0, %v4404
    %v4406 = vpop.f32.mrb[0].mxu0
    %v4407 = vpop.f32.mrb[0].mxu0
    %v4408 = vadd.f32 0.0, %v4407
    %v4409 = vpop.f32.mrb[0].mxu0
    %4410 = vmatprep.mubr.bf16.mxu0 0
    %4411 = vmatmul.mubr.bf16.gmra.mrb[0].mxu0 %v1952
    %v4412 = vpop.f32.mrb[0].mxu0
    %v4413 = vadd.f32 0.0, %v4412
    %v4414 = vpop.f32.mrb[0].mxu0
    %v4415 = vpop.f32.mrb[0].mxu0
    %v4416 = vadd.f32 0.0, %v4415
    %v4417 = vpop.f32.mrb[0].mxu0
    %4418 = vmatprep.mubr.bf16.mxu0 0
    %4419 = vmatmul.mubr.bf16.gmra.mrb[0].mxu0 %v1955
    %v4420 = vpop.f32.mrb[0].mxu0
    %v4421 = vadd.f32 0.0, %v4420
    %v4422 = vpop.f32.mrb[0].mxu0
    %v4423 = vpop.f32.mrb[0].mxu0
    %v4424 = vadd.f32 0.0, %v4423
    %v4425 = vpop.f32.mrb[0].mxu0
    %4426 = vmatprep.mubr.bf16.mxu0 0
    %4427 = vmatmul.mubr.bf16.gmra.mrb[0].mxu0 %v1958
    %v4428 = vpop.f32.mrb[0].mxu0
    %v4429 = vadd.f32 0.0, %v4428
    %v4430 = vpop.f32.mrb[0].mxu0
    %v4431 = vpop.f32.mrb[0].mxu0
    %v4432 = vadd.f32 0.0, %v4431
    %v4433 = vpop.f32.mrb[0].mxu0
    %4434 = vmatprep.mubr.bf16.mxu0 0
    %4435 = vmatmul.mubr.bf16.gmra.mrb[0].mxu0 %v1961
    %v4436 = vpop.f32.mrb[0].mxu0
    %v4437 = vadd.f32 0.0, %v4436
    %v4438 = vpop.f32.mrb[0].mxu0
    %v4439 = vpop.f32.mrb[0].mxu0
    %v4440 = vadd.f32 0.0, %v4439
    %v4441 = vpop.f32.mrb[0].mxu0
    %4442 = vmatprep.mubr.bf16.mxu0 0
    %4443 = vmatmul.mubr.bf16.gmra.mrb[0].mxu0 %v1964
    %v4444 = vpop.f32.mrb[0].mxu0
    %v4445 = vadd.f32 0.0, %v4444
    %v4446 = vpop.f32.mrb[0].mxu0
    %v4447 = vpop.f32.mrb[0].mxu0
    %v4448 = vadd.f32 0.0, %v4447
    %v4449 = vpop.f32.mrb[0].mxu0
    %4450 = vmatprep.mubr.bf16.mxu0 0
    %4451 = vmatmul.mubr.bf16.gmra.mrb[0].mxu0 %v1967
    %v4452 = vpop.f32.mrb[0].mxu0
    %v4453 = vadd.f32 0.0, %v4452
    %v4454 = vpop.f32.mrb[0].mxu0
    %v4455 = vpop.f32.mrb[0].mxu0
    %v4456 = vadd.f32 0.0, %v4455
    %v4457 = vpop.f32.mrb[0].mxu0
    %4458 = vmatprep.mubr.bf16.mxu0 0
    %4459 = vmatmul.mubr.bf16.gmra.mrb[0].mxu0 %v1970
    %v4460 = vpop.f32.mrb[0].mxu0
    %v4461 = vadd.f32 0.0, %v4460
    %v4462 = vpop.f32.mrb[0].mxu0
    %v4463 = vpop.f32.mrb[0].mxu0
    %v4464 = vadd.f32 0.0, %v4463
    %v4465 = vpop.f32.mrb[0].mxu0
    %4466 = vmatprep.mubr.bf16.mxu0 0
    %4467 = vmatmul.mubr.bf16.gmra.mrb[0].mxu0 %v1973
    %v4468 = vpop.f32.mrb[0].mxu0
    %v4469 = vadd.f32 0.0, %v4468
    %v4470 = vpop.f32.mrb[0].mxu0
    %v4471 = vpop.f32.mrb[0].mxu0
    %v4472 = vadd.f32 0.0, %v4471
    %v4473 = vpop.f32.mrb[0].mxu0
    %4474 = vmatprep.mubr.bf16.mxu0 0
    %4475 = vmatmul.mubr.bf16.gmra.mrb[0].mxu0 %v1976
    %v4476 = vpop.f32.mrb[0].mxu0
    %v4477 = vadd.f32 0.0, %v4476
    %v4478 = vpop.f32.mrb[0].mxu0
    %v4479 = vpop.f32.mrb[0].mxu0
    %v4480 = vadd.f32 0.0, %v4479
    %v4481 = vpop.f32.mrb[0].mxu0
    %4482 = vmatprep.mubr.bf16.mxu0 0
    %4483 = vmatmul.mubr.bf16.gmra.mrb[0].mxu0 %v1979
    %v4484 = vpop.f32.mrb[0].mxu0
    %v4485 = vadd.f32 0.0, %v4484
    %v4486 = vpop.f32.mrb[0].mxu0
    %v4487 = vpop.f32.mrb[0].mxu0
    %v4488 = vadd.f32 0.0, %v4487
    %v4489 = vpop.f32.mrb[0].mxu0
    %4490 = vmatprep.mubr.bf16.mxu0 0
    %4491 = vmatmul.mubr.bf16.gmra.mrb[0].mxu0 %v1982
    %v4492 = vpop.f32.mrb[0].mxu0
    %v4493 = vadd.f32 0.0, %v4492
    %v4494 = vpop.f32.mrb[0].mxu0
    %v4495 = vpop.f32.mrb[0].mxu0
    %v4496 = vadd.f32 0.0, %v4495
    %v4497 = vpop.f32.mrb[0].mxu0
    %4498 = vmatprep.mubr.bf16.mxu0 0
    %4499 = vmatmul.mubr.bf16.gmra.mrb[0].mxu0 %v1985
    %v4500 = vpop.f32.mrb[0].mxu0
    %v4501 = vadd.f32 0.0, %v4500
    %v4502 = vpop.f32.mrb[0].mxu0
    %v4503 = vpop.f32.mrb[0].mxu0
    %v4504 = vadd.f32 0.0, %v4503
    %v4505 = vpop.f32.mrb[0].mxu0
    %4506 = vmatprep.mubr.bf16.mxu0 0
    %4507 = vmatmul.mubr.bf16.gmra.mrb[0].mxu0 %v3107
    %v4508 = vpop.f32.mrb[0].mxu0
    %v4509 = vadd.f32 0.0, %v4508
    %v4510 = vpop.f32.mrb[0].mxu0
    %v4511 = vpop.f32.mrb[0].mxu0
    %v4512 = vadd.f32 0.0, %v4511
    %v4513 = vpop.f32.mrb[0].mxu0
    %4514 = vmatprep.mubr.bf16.mxu0 0
    %4515 = vmatmul.mubr.bf16.gmra.mrb[0].mxu0 %v4229
    %v4516 = vpop.f32.mrb[0].mxu0
    %v4517 = vadd.f32 0.0, %v4516
    %v4518 = vpop.f32.mrb[0].mxu0
    %v4519 = vpop.f32.mrb[0].mxu0
    %v4520 = vadd.f32 0.0, %v4519
    %v4521 = vpop.f32.mrb[0].mxu0
    %4522 = vdwg.mxu0
    %v4523 = vadd.f32 %v4147, %v4269
    %v4524 = vadd.f32 %v4148, %v4272
    %v4525 = vadd.f32 %v4149, %v4277
    %v4526 = vadd.f32 %v4150, %v4280
    %v4527 = vadd.f32 %v4151, %v4285
    %v4528 = vadd.f32 %v4152, %v4288
    %v4529 = vadd.f32 %v4153, %v4293
    %v4530 = vadd.f32 %v4154, %v4296
    %v4531 = vadd.f32 %v4155, %v4301
    %v4532 = vadd.f32 %v4156, %v4304
    %v4533 = vadd.f32 %v4157, %v4309
    %v4534 = vadd.f32 %v4158, %v4312
    %v4535 = vadd.f32 %v4159, %v4317
    %v4536 = vadd.f32 %v4160, %v4320
    %v4537 = vadd.f32 %v4161, %v4325
    %v4538 = vadd.f32 %v4162, %v4328
    %v4539 = vadd.f32 %v4163, %v4333
    %v4540 = vadd.f32 %v4164, %v4336
    %v4541 = vadd.f32 %v4165, %v4341
    %v4542 = vadd.f32 %v4166, %v4344
    %v4543 = vadd.f32 %v4167, %v4349
    %v4544 = vadd.f32 %v4168, %v4352
    %v4545 = vadd.f32 %v4169, %v4357
    %v4546 = vadd.f32 %v4170, %v4360
    %v4547 = vadd.f32 %v4171, %v4365
    %v4548 = vadd.f32 %v4172, %v4368
    %v4549 = vadd.f32 %v4173, %v4373
    %v4550 = vadd.f32 %v4174, %v4376
    %v4551 = vadd.f32 %v4175, %v4381
    %v4552 = vadd.f32 %v4176, %v4384
    %v4553 = vadd.f32 %v4177, %v4389
    %v4554 = vadd.f32 %v4178, %v4392
    %v4555 = vadd.f32 %v4179, %v4397
    %v4556 = vadd.f32 %v4180, %v4400
    %v4557 = vadd.f32 %v4181, %v4405
    %v4558 = vadd.f32 %v4182, %v4408
    %v4559 = vadd.f32 %v4183, %v4413
    %v4560 = vadd.f32 %v4184, %v4416
    %v4561 = vadd.f32 %v4185, %v4421
    %v4562 = vadd.f32 %v4186, %v4424
    %v4563 = vadd.f32 %v4187, %v4429
    %v4564 = vadd.f32 %v4188, %v4432
    %v4565 = vadd.f32 %v4189, %v4437
    %v4566 = vadd.f32 %v4190, %v4440
    %v4567 = vadd.f32 %v4191, %v4445
    %v4568 = vadd.f32 %v4192, %v4448
    %v4569 = vadd.f32 %v4193, %v4453
    %v4570 = vadd.f32 %v4194, %v4456
    %v4571 = vadd.f32 %v4195, %v4461
    %v4572 = vadd.f32 %v4196, %v4464
    %v4573 = vadd.f32 %v4197, %v4469
    %v4574 = vadd.f32 %v4198, %v4472
    %v4575 = vadd.f32 %v4199, %v4477
    %v4576 = vadd.f32 %v4200, %v4480
    %v4577 = vadd.f32 %v4201, %v4485
    %v4578 = vadd.f32 %v4202, %v4488
    %v4579 = vadd.f32 %v4203, %v4493
    %v4580 = vadd.f32 %v4204, %v4496
    %v4581 = vadd.f32 %v4205, %v4501
    %v4582 = vadd.f32 %v4206, %v4504
    %v4583 = vadd.f32 %v4207, %v4509
    %v4584 = vadd.f32 %v4208, %v4512
    %v4585 = vadd.f32 %v4209, %v4517
    %v4586 = vadd.f32 %v4210, %v4520
    %v4587 = vsel %vm108, %v4523, 0.0
    %v4588 = vsel %vm108, %v4524, 0.0
    %v4589 = vadd.f32 %v4587, %v4588
    %v4590 = vsel %vm108, %v4525, 0.0
    %v4591 = vadd.f32 %v4589, %v4590
    %v4592 = vsel %vm108, %v4526, 0.0
    %v4593 = vadd.f32 %v4591, %v4592
    %v4594 = vsel %vm108, %v4527, 0.0
    %v4595 = vadd.f32 %v4593, %v4594
    %v4596 = vsel %vm108, %v4528, 0.0
    %v4597 = vadd.f32 %v4595, %v4596
    %v4598 = vsel %vm108, %v4529, 0.0
    %v4599 = vadd.f32 %v4597, %v4598
    %v4600 = vsel %vm108, %v4530, 0.0
    %v4601 = vadd.f32 %v4599, %v4600
    %v4602 = vsel %vm108, %v4531, 0.0
    %v4603 = vadd.f32 %v4601, %v4602
    %v4604 = vsel %vm108, %v4532, 0.0
    %v4605 = vadd.f32 %v4603, %v4604
    %v4606 = vsel %vm108, %v4533, 0.0
    %v4607 = vadd.f32 %v4605, %v4606
    %v4608 = vsel %vm108, %v4534, 0.0
    %v4609 = vadd.f32 %v4607, %v4608
    %v4610 = vsel %vm108, %v4535, 0.0
    %v4611 = vadd.f32 %v4609, %v4610
    %v4612 = vsel %vm108, %v4536, 0.0
    %v4613 = vadd.f32 %v4611, %v4612
    %v4614 = vsel %vm108, %v4537, 0.0
    %v4615 = vadd.f32 %v4613, %v4614
    %v4616 = vsel %vm108, %v4538, 0.0
    %v4617 = vadd.f32 %v4615, %v4616
    %v4618 = vsel %vm108, %v4539, 0.0
    %v4619 = vadd.f32 %v4617, %v4618
    %v4620 = vsel %vm108, %v4540, 0.0
    %v4621 = vadd.f32 %v4619, %v4620
    %v4622 = vsel %vm108, %v4541, 0.0
    %v4623 = vadd.f32 %v4621, %v4622
    %v4624 = vsel %vm108, %v4542, 0.0
    %v4625 = vadd.f32 %v4623, %v4624
    %v4626 = vsel %vm108, %v4543, 0.0
    %v4627 = vadd.f32 %v4625, %v4626
    %v4628 = vsel %vm108, %v4544, 0.0
    %v4629 = vadd.f32 %v4627, %v4628
    %v4630 = vsel %vm108, %v4545, 0.0
    %v4631 = vadd.f32 %v4629, %v4630
    %v4632 = vsel %vm108, %v4546, 0.0
    %v4633 = vadd.f32 %v4631, %v4632
    %v4634 = vsel %vm108, %v4547, 0.0
    %v4635 = vadd.f32 %v4633, %v4634
    %v4636 = vsel %vm108, %v4548, 0.0
    %v4637 = vadd.f32 %v4635, %v4636
    %v4638 = vsel %vm108, %v4549, 0.0
    %v4639 = vadd.f32 %v4637, %v4638
    %v4640 = vsel %vm108, %v4550, 0.0
    %v4641 = vadd.f32 %v4639, %v4640
    %v4642 = vsel %vm108, %v4551, 0.0
    %v4643 = vadd.f32 %v4641, %v4642
    %v4644 = vsel %vm108, %v4552, 0.0
    %v4645 = vadd.f32 %v4643, %v4644
    %v4646 = vsel %vm108, %v4553, 0.0
    %v4647 = vadd.f32 %v4645, %v4646
    %v4648 = vsel %vm108, %v4554, 0.0
    %v4649 = vadd.f32 %v4647, %v4648
    %v4650 = vsel %vm108, %v4555, 0.0
    %v4651 = vadd.f32 %v4649, %v4650
    %v4652 = vsel %vm108, %v4556, 0.0
    %v4653 = vadd.f32 %v4651, %v4652
    %v4654 = vsel %vm108, %v4557, 0.0
    %v4655 = vadd.f32 %v4653, %v4654
    %v4656 = vsel %vm108, %v4558, 0.0
    %v4657 = vadd.f32 %v4655, %v4656
    %v4658 = vsel %vm108, %v4559, 0.0
    %v4659 = vadd.f32 %v4657, %v4658
    %v4660 = vsel %vm108, %v4560, 0.0
    %v4661 = vadd.f32 %v4659, %v4660
    %v4662 = vsel %vm108, %v4561, 0.0
    %v4663 = vadd.f32 %v4661, %v4662
    %v4664 = vsel %vm108, %v4562, 0.0
    %v4665 = vadd.f32 %v4663, %v4664
    %v4666 = vsel %vm108, %v4563, 0.0
    %v4667 = vadd.f32 %v4665, %v4666
    %v4668 = vsel %vm108, %v4564, 0.0
    %v4669 = vadd.f32 %v4667, %v4668
    %v4670 = vsel %vm108, %v4565, 0.0
    %v4671 = vadd.f32 %v4669, %v4670
    %v4672 = vsel %vm108, %v4566, 0.0
    %v4673 = vadd.f32 %v4671, %v4672
    %v4674 = vsel %vm108, %v4567, 0.0
    %v4675 = vadd.f32 %v4673, %v4674
    %v4676 = vsel %vm108, %v4568, 0.0
    %v4677 = vadd.f32 %v4675, %v4676
    %v4678 = vsel %vm108, %v4569, 0.0
    %v4679 = vadd.f32 %v4677, %v4678
    %v4680 = vsel %vm108, %v4570, 0.0
    %v4681 = vadd.f32 %v4679, %v4680
    %v4682 = vsel %vm108, %v4571, 0.0
    %v4683 = vadd.f32 %v4681, %v4682
    %v4684 = vsel %vm108, %v4572, 0.0
    %v4685 = vadd.f32 %v4683, %v4684
    %v4686 = vsel %vm108, %v4573, 0.0
    %v4687 = vadd.f32 %v4685, %v4686
    %v4688 = vsel %vm108, %v4574, 0.0
    %v4689 = vadd.f32 %v4687, %v4688
    %v4690 = vsel %vm108, %v4575, 0.0
    %v4691 = vadd.f32 %v4689, %v4690
    %v4692 = vsel %vm108, %v4576, 0.0
    %v4693 = vadd.f32 %v4691, %v4692
    %v4694 = vsel %vm108, %v4577, 0.0
    %v4695 = vadd.f32 %v4693, %v4694
    %v4696 = vsel %vm108, %v4578, 0.0
    %v4697 = vadd.f32 %v4695, %v4696
    %v4698 = vsel %vm108, %v4579, 0.0
    %v4699 = vadd.f32 %v4697, %v4698
    %v4700 = vsel %vm108, %v4580, 0.0
    %v4701 = vadd.f32 %v4699, %v4700
    %v4702 = vsel %vm108, %v4581, 0.0
    %v4703 = vadd.f32 %v4701, %v4702
    %v4704 = vsel %vm108, %v4582, 0.0
    %v4705 = vadd.f32 %v4703, %v4704
    %v4706 = vsel %vm108, %v4583, 0.0
    %v4707 = vadd.f32 %v4705, %v4706
    %v4708 = vsel %vm108, %v4584, 0.0
    %v4709 = vadd.f32 %v4707, %v4708
    %v4710 = vsel %vm108, %v4585, 0.0
    %v4711 = vadd.f32 %v4709, %v4710
    %v4712 = vsel %vm108, %v4586, 0.0
    %v4713 = vadd.f32 %v4711, %v4712
    %v4714 = vrot.slane %v4713, 4
    %v4715 = vadd.f32 %v4713, %v4714
    %v4716 = vrot.slane %v4715, 2
    %v4717 = vadd.f32 %v4715, %v4716
    %v4718 = vrot.slane %v4717, 1
    %v4719 = vadd.f32 %v4717, %v4718
    %v4720 = vmul.f32 %v4523, %v4523
    %v4721 = vmul.f32 %v4524, %v4524
    %v4722 = vmul.f32 %v4525, %v4525
    %v4723 = vmul.f32 %v4526, %v4526
    %v4724 = vmul.f32 %v4527, %v4527
    %v4725 = vmul.f32 %v4528, %v4528
    %v4726 = vmul.f32 %v4529, %v4529
    %v4727 = vmul.f32 %v4530, %v4530
    %v4728 = vmul.f32 %v4531, %v4531
    %v4729 = vmul.f32 %v4532, %v4532
    %v4730 = vmul.f32 %v4533, %v4533
    %v4731 = vmul.f32 %v4534, %v4534
    %v4732 = vmul.f32 %v4535, %v4535
    %v4733 = vmul.f32 %v4536, %v4536
    %v4734 = vmul.f32 %v4537, %v4537
    %v4735 = vmul.f32 %v4538, %v4538
    %v4736 = vmul.f32 %v4539, %v4539
    %v4737 = vmul.f32 %v4540, %v4540
    %v4738 = vmul.f32 %v4541, %v4541
    %v4739 = vmul.f32 %v4542, %v4542
    %v4740 = vmul.f32 %v4543, %v4543
    %v4741 = vmul.f32 %v4544, %v4544
    %v4742 = vmul.f32 %v4545, %v4545
    %v4743 = vmul.f32 %v4546, %v4546
    %v4744 = vmul.f32 %v4547, %v4547
    %v4745 = vmul.f32 %v4548, %v4548
    %v4746 = vmul.f32 %v4549, %v4549
    %v4747 = vmul.f32 %v4550, %v4550
    %v4748 = vmul.f32 %v4551, %v4551
    %v4749 = vmul.f32 %v4552, %v4552
    %v4750 = vmul.f32 %v4553, %v4553
    %v4751 = vmul.f32 %v4554, %v4554
    %v4752 = vmul.f32 %v4555, %v4555
    %v4753 = vmul.f32 %v4556, %v4556
    %v4754 = vmul.f32 %v4557, %v4557
    %v4755 = vmul.f32 %v4558, %v4558
    %v4756 = vmul.f32 %v4559, %v4559
    %v4757 = vmul.f32 %v4560, %v4560
    %v4758 = vmul.f32 %v4561, %v4561
    %v4759 = vmul.f32 %v4562, %v4562
    %v4760 = vmul.f32 %v4563, %v4563
    %v4761 = vmul.f32 %v4564, %v4564
    %v4762 = vmul.f32 %v4565, %v4565
    %v4763 = vmul.f32 %v4566, %v4566
    %v4764 = vmul.f32 %v4567, %v4567
    %v4765 = vmul.f32 %v4568, %v4568
    %v4766 = vmul.f32 %v4569, %v4569
    %v4767 = vmul.f32 %v4570, %v4570
    %v4768 = vmul.f32 %v4571, %v4571
    %v4769 = vmul.f32 %v4572, %v4572
    %v4770 = vmul.f32 %v4573, %v4573
    %v4771 = vmul.f32 %v4574, %v4574
    %v4772 = vmul.f32 %v4575, %v4575
    %v4773 = vmul.f32 %v4576, %v4576
    %v4774 = vmul.f32 %v4577, %v4577
    %v4775 = vmul.f32 %v4578, %v4578
    %v4776 = vmul.f32 %v4579, %v4579
    %v4777 = vmul.f32 %v4580, %v4580
    %v4778 = vmul.f32 %v4581, %v4581
    %v4779 = vmul.f32 %v4582, %v4582
    %v4780 = vmul.f32 %v4583, %v4583
    %v4781 = vmul.f32 %v4584, %v4584
    %v4782 = vmul.f32 %v4585, %v4585
    %v4783 = vmul.f32 %v4586, %v4586
    %v4784 = vsel %vm108, %v4720, 0.0
    %v4785 = vsel %vm108, %v4721, 0.0
    %v4786 = vadd.f32 %v4784, %v4785
    %v4787 = vsel %vm108, %v4722, 0.0
    %v4788 = vadd.f32 %v4786, %v4787
    %v4789 = vsel %vm108, %v4723, 0.0
    %v4790 = vadd.f32 %v4788, %v4789
    %v4791 = vsel %vm108, %v4724, 0.0
    %v4792 = vadd.f32 %v4790, %v4791
    %v4793 = vsel %vm108, %v4725, 0.0
    %v4794 = vadd.f32 %v4792, %v4793
    %v4795 = vsel %vm108, %v4726, 0.0
    %v4796 = vadd.f32 %v4794, %v4795
    %v4797 = vsel %vm108, %v4727, 0.0
    %v4798 = vadd.f32 %v4796, %v4797
    %v4799 = vsel %vm108, %v4728, 0.0
    %v4800 = vadd.f32 %v4798, %v4799
    %v4801 = vsel %vm108, %v4729, 0.0
    %v4802 = vadd.f32 %v4800, %v4801
    %v4803 = vsel %vm108, %v4730, 0.0
    %v4804 = vadd.f32 %v4802, %v4803
    %v4805 = vsel %vm108, %v4731, 0.0
    %v4806 = vadd.f32 %v4804, %v4805
    %v4807 = vsel %vm108, %v4732, 0.0
    %v4808 = vadd.f32 %v4806, %v4807
    %v4809 = vsel %vm108, %v4733, 0.0
    %v4810 = vadd.f32 %v4808, %v4809
    %v4811 = vsel %vm108, %v4734, 0.0
    %v4812 = vadd.f32 %v4810, %v4811
    %v4813 = vsel %vm108, %v4735, 0.0
    %v4814 = vadd.f32 %v4812, %v4813
    %v4815 = vsel %vm108, %v4736, 0.0
    %v4816 = vadd.f32 %v4814, %v4815
    %v4817 = vsel %vm108, %v4737, 0.0
    %v4818 = vadd.f32 %v4816, %v4817
    %v4819 = vsel %vm108, %v4738, 0.0
    %v4820 = vadd.f32 %v4818, %v4819
    %v4821 = vsel %vm108, %v4739, 0.0
    %v4822 = vadd.f32 %v4820, %v4821
    %v4823 = vsel %vm108, %v4740, 0.0
    %v4824 = vadd.f32 %v4822, %v4823
    %v4825 = vsel %vm108, %v4741, 0.0
    %v4826 = vadd.f32 %v4824, %v4825
    %v4827 = vsel %vm108, %v4742, 0.0
    %v4828 = vadd.f32 %v4826, %v4827
    %v4829 = vsel %vm108, %v4743, 0.0
    %v4830 = vadd.f32 %v4828, %v4829
    %v4831 = vsel %vm108, %v4744, 0.0
    %v4832 = vadd.f32 %v4830, %v4831
    %v4833 = vsel %vm108, %v4745, 0.0
    %v4834 = vadd.f32 %v4832, %v4833
    %v4835 = vsel %vm108, %v4746, 0.0
    %v4836 = vadd.f32 %v4834, %v4835
    %v4837 = vsel %vm108, %v4747, 0.0
    %v4838 = vadd.f32 %v4836, %v4837
    %v4839 = vsel %vm108, %v4748, 0.0
    %v4840 = vadd.f32 %v4838, %v4839
    %v4841 = vsel %vm108, %v4749, 0.0
    %v4842 = vadd.f32 %v4840, %v4841
    %v4843 = vsel %vm108, %v4750, 0.0
    %v4844 = vadd.f32 %v4842, %v4843
    %v4845 = vsel %vm108, %v4751, 0.0
    %v4846 = vadd.f32 %v4844, %v4845
    %v4847 = vsel %vm108, %v4752, 0.0
    %v4848 = vadd.f32 %v4846, %v4847
    %v4849 = vsel %vm108, %v4753, 0.0
    %v4850 = vadd.f32 %v4848, %v4849
    %v4851 = vsel %vm108, %v4754, 0.0
    %v4852 = vadd.f32 %v4850, %v4851
    %v4853 = vsel %vm108, %v4755, 0.0
    %v4854 = vadd.f32 %v4852, %v4853
    %v4855 = vsel %vm108, %v4756, 0.0
    %v4856 = vadd.f32 %v4854, %v4855
    %v4857 = vsel %vm108, %v4757, 0.0
    %v4858 = vadd.f32 %v4856, %v4857
    %v4859 = vsel %vm108, %v4758, 0.0
    %v4860 = vadd.f32 %v4858, %v4859
    %v4861 = vsel %vm108, %v4759, 0.0
    %v4862 = vadd.f32 %v4860, %v4861
    %v4863 = vsel %vm108, %v4760, 0.0
    %v4864 = vadd.f32 %v4862, %v4863
    %v4865 = vsel %vm108, %v4761, 0.0
    %v4866 = vadd.f32 %v4864, %v4865
    %v4867 = vsel %vm108, %v4762, 0.0
    %v4868 = vadd.f32 %v4866, %v4867
    %v4869 = vsel %vm108, %v4763, 0.0
    %v4870 = vadd.f32 %v4868, %v4869
    %v4871 = vsel %vm108, %v4764, 0.0
    %v4872 = vadd.f32 %v4870, %v4871
    %v4873 = vsel %vm108, %v4765, 0.0
    %v4874 = vadd.f32 %v4872, %v4873
    %v4875 = vsel %vm108, %v4766, 0.0
    %v4876 = vadd.f32 %v4874, %v4875
    %v4877 = vsel %vm108, %v4767, 0.0
    %v4878 = vadd.f32 %v4876, %v4877
    %v4879 = vsel %vm108, %v4768, 0.0
    %v4880 = vadd.f32 %v4878, %v4879
    %v4881 = vsel %vm108, %v4769, 0.0
    %v4882 = vadd.f32 %v4880, %v4881
    %v4883 = vsel %vm108, %v4770, 0.0
    %v4884 = vadd.f32 %v4882, %v4883
    %v4885 = vsel %vm108, %v4771, 0.0
    %v4886 = vadd.f32 %v4884, %v4885
    %v4887 = vsel %vm108, %v4772, 0.0
    %v4888 = vadd.f32 %v4886, %v4887
    %v4889 = vsel %vm108, %v4773, 0.0
    %v4890 = vadd.f32 %v4888, %v4889
    %v4891 = vsel %vm108, %v4774, 0.0
    %v4892 = vadd.f32 %v4890, %v4891
    %v4893 = vsel %vm108, %v4775, 0.0
    %v4894 = vadd.f32 %v4892, %v4893
    %v4895 = vsel %vm108, %v4776, 0.0
    %v4896 = vadd.f32 %v4894, %v4895
    %v4897 = vsel %vm108, %v4777, 0.0
    %v4898 = vadd.f32 %v4896, %v4897
    %v4899 = vsel %vm108, %v4778, 0.0
    %v4900 = vadd.f32 %v4898, %v4899
    %v4901 = vsel %vm108, %v4779, 0.0
    %v4902 = vadd.f32 %v4900, %v4901
    %v4903 = vsel %vm108, %v4780, 0.0
    %v4904 = vadd.f32 %v4902, %v4903
    %v4905 = vsel %vm108, %v4781, 0.0
    %v4906 = vadd.f32 %v4904, %v4905
    %v4907 = vsel %vm108, %v4782, 0.0
    %v4908 = vadd.f32 %v4906, %v4907
    %v4909 = vsel %vm108, %v4783, 0.0
    %v4910 = vadd.f32 %v4908, %v4909
    %v4911 = vrot.slane %v4910, 4
    %v4912 = vadd.f32 %v4910, %v4911
    %v4913 = vrot.slane %v4912, 2
    %v4914 = vadd.f32 %v4912, %v4913
    %v4915 = vrot.slane %v4914, 1
    %v4916 = vadd.f32 %v4914, %v4915
    %4918 = vrot.lane.b32.xlu0 %v4916, 4
    %v4919 = vpop.permute.xlu0 %4918
    %v4921 = vsel %vm108, %v4719, %v4919
    %vm4922 = vcmask 57344
    %4923 = vst.msk [vmem:[#allocation9] sm:$0x1] %vm4922, %v4921
    %v4924 = vpack.c.bf16 %v4524, %v4523
    %v4925 = vpack.c.bf16 %v4526, %v4525
    %v4926 = vpack.c.bf16 %v4528, %v4527
    %v4927 = vpack.c.bf16 %v4530, %v4529
    %v4928 = vpack.c.bf16 %v4532, %v4531
    %v4929 = vpack.c.bf16 %v4534, %v4533
    %v4930 = vpack.c.bf16 %v4536, %v4535
    %v4931 = vpack.c.bf16 %v4538, %v4537
    %v4932 = vpack.c.bf16 %v4540, %v4539
    %v4933 = vpack.c.bf16 %v4542, %v4541
    %v4934 = vpack.c.bf16 %v4544, %v4543
    %v4935 = vpack.c.bf16 %v4546, %v4545
    %v4936 = vpack.c.bf16 %v4548, %v4547
    %v4937 = vpack.c.bf16 %v4550, %v4549
    %v4938 = vpack.c.bf16 %v4552, %v4551
    %v4939 = vpack.c.bf16 %v4554, %v4553
    %v4940 = vpack.c.bf16 %v4556, %v4555
    %v4941 = vpack.c.bf16 %v4558, %v4557
    %v4942 = vpack.c.bf16 %v4560, %v4559
    %v4943 = vpack.c.bf16 %v4562, %v4561
    %v4944 = vpack.c.bf16 %v4564, %v4563
    %v4945 = vpack.c.bf16 %v4566, %v4565
    %v4946 = vpack.c.bf16 %v4568, %v4567
    %v4947 = vpack.c.bf16 %v4570, %v4569
    %v4948 = vpack.c.bf16 %v4572, %v4571
    %v4949 = vpack.c.bf16 %v4574, %v4573
    %v4950 = vpack.c.bf16 %v4576, %v4575
    %v4951 = vpack.c.bf16 %v4578, %v4577
    %v4952 = vpack.c.bf16 %v4580, %v4579
    %v4953 = vpack.c.bf16 %v4582, %v4581
    %v4954 = vpack.c.bf16 %v4584, %v4583
    %v4955 = vpack.c.bf16 %v4586, %v4585
    %v4988 = vunpack.c.l.b16 %v4924
    %v4989 = vunpack.c.h.b16 %v4924
    %v4990 = vunpack.c.l.b16 %v4925
    %v4991 = vunpack.c.h.b16 %v4925
    %v4992 = vunpack.c.l.b16 %v4926
    %v4993 = vunpack.c.h.b16 %v4926
    %v4994 = vunpack.c.l.b16 %v4927
    %v4995 = vunpack.c.h.b16 %v4927
    %v4996 = vunpack.c.l.b16 %v4928
    %v4997 = vunpack.c.h.b16 %v4928
    %v4998 = vunpack.c.l.b16 %v4929
    %v4999 = vunpack.c.h.b16 %v4929
    %v5000 = vunpack.c.l.b16 %v4930
    %v5001 = vunpack.c.h.b16 %v4930
    %v5002 = vunpack.c.l.b16 %v4931
    %v5003 = vunpack.c.h.b16 %v4931
    %v5004 = vunpack.c.l.b16 %v4932
    %v5005 = vunpack.c.h.b16 %v4932
    %v5006 = vunpack.c.l.b16 %v4933
    %v5007 = vunpack.c.h.b16 %v4933
    %v5008 = vunpack.c.l.b16 %v4934
    %v5009 = vunpack.c.h.b16 %v4934
    %v5010 = vunpack.c.l.b16 %v4935
    %v5011 = vunpack.c.h.b16 %v4935
    %v5012 = vunpack.c.l.b16 %v4936
    %v5013 = vunpack.c.h.b16 %v4936
    %v5014 = vunpack.c.l.b16 %v4937
    %v5015 = vunpack.c.h.b16 %v4937
    %v5016 = vunpack.c.l.b16 %v4938
    %v5017 = vunpack.c.h.b16 %v4938
    %v5018 = vunpack.c.l.b16 %v4939
    %v5019 = vunpack.c.h.b16 %v4939
    %v5020 = vunpack.c.l.b16 %v4940
    %v5021 = vunpack.c.h.b16 %v4940
    %v5022 = vunpack.c.l.b16 %v4941
    %v5023 = vunpack.c.h.b16 %v4941
    %v5024 = vunpack.c.l.b16 %v4942
    %v5025 = vunpack.c.h.b16 %v4942
    %v5026 = vunpack.c.l.b16 %v4943
    %v5027 = vunpack.c.h.b16 %v4943
    %v5028 = vunpack.c.l.b16 %v4944
    %v5029 = vunpack.c.h.b16 %v4944
    %v5030 = vunpack.c.l.b16 %v4945
    %v5031 = vunpack.c.h.b16 %v4945
    %v5032 = vunpack.c.l.b16 %v4946
    %v5033 = vunpack.c.h.b16 %v4946
    %v5034 = vunpack.c.l.b16 %v4947
    %v5035 = vunpack.c.h.b16 %v4947
    %v5036 = vunpack.c.l.b16 %v4948
    %v5037 = vunpack.c.h.b16 %v4948
    %v5038 = vunpack.c.l.b16 %v4949
    %v5039 = vunpack.c.h.b16 %v4949
    %v5040 = vunpack.c.l.b16 %v4950
    %v5041 = vunpack.c.h.b16 %v4950
    %v5042 = vunpack.c.l.b16 %v4951
    %v5043 = vunpack.c.h.b16 %v4951
    %v5044 = vunpack.c.l.b16 %v4952
    %v5045 = vunpack.c.h.b16 %v4952
    %v5046 = vunpack.c.l.b16 %v4953
    %v5047 = vunpack.c.h.b16 %v4953
    %v5048 = vunpack.c.l.b16 %v4954
    %v5049 = vunpack.c.h.b16 %v4954
    %v5050 = vunpack.c.l.b16 %v4955
    %v5051 = vunpack.c.h.b16 %v4955
    %v5052 = vpack.c.b16 %v4988, %v4988
    %v5053 = vpack.c.b16 %v4989, %v4989
    %v5054 = vpack.c.b16 %v4990, %v4990
    %v5055 = vpack.c.b16 %v4991, %v4991
    %v5056 = vpack.c.b16 %v4992, %v4992
    %v5057 = vpack.c.b16 %v4993, %v4993
    %v5058 = vpack.c.b16 %v4994, %v4994
    %v5059 = vpack.c.b16 %v4995, %v4995
    %v5060 = vpack.c.b16 %v4996, %v4996
    %v5061 = vpack.c.b16 %v4997, %v4997
    %v5062 = vpack.c.b16 %v4998, %v4998
    %v5063 = vpack.c.b16 %v4999, %v4999
    %v5064 = vpack.c.b16 %v5000, %v5000
    %v5065 = vpack.c.b16 %v5001, %v5001
    %v5066 = vpack.c.b16 %v5002, %v5002
    %v5067 = vpack.c.b16 %v5003, %v5003
    %v5068 = vpack.c.b16 %v5004, %v5004
    %v5069 = vpack.c.b16 %v5005, %v5005
    %v5070 = vpack.c.b16 %v5006, %v5006
    %v5071 = vpack.c.b16 %v5007, %v5007
    %v5072 = vpack.c.b16 %v5008, %v5008
    %v5073 = vpack.c.b16 %v5009, %v5009
    %v5074 = vpack.c.b16 %v5010, %v5010
    %v5075 = vpack.c.b16 %v5011, %v5011
    %v5076 = vpack.c.b16 %v5012, %v5012
    %v5077 = vpack.c.b16 %v5013, %v5013
    %v5078 = vpack.c.b16 %v5014, %v5014
    %v5079 = vpack.c.b16 %v5015, %v5015
    %v5080 = vpack.c.b16 %v5016, %v5016
    %v5081 = vpack.c.b16 %v5017, %v5017
    %v5082 = vpack.c.b16 %v5018, %v5018
    %v5083 = vpack.c.b16 %v5019, %v5019
    %v5084 = vpack.c.b16 %v5020, %v5020
    %v5085 = vpack.c.b16 %v5021, %v5021
    %v5086 = vpack.c.b16 %v5022, %v5022
    %v5087 = vpack.c.b16 %v5023, %v5023
    %v5088 = vpack.c.b16 %v5024, %v5024
    %v5089 = vpack.c.b16 %v5025, %v5025
    %v5090 = vpack.c.b16 %v5026, %v5026
    %v5091 = vpack.c.b16 %v5027, %v5027
    %v5092 = vpack.c.b16 %v5028, %v5028
    %v5093 = vpack.c.b16 %v5029, %v5029
    %v5094 = vpack.c.b16 %v5030, %v5030
    %v5095 = vpack.c.b16 %v5031, %v5031
    %v5096 = vpack.c.b16 %v5032, %v5032
    %v5097 = vpack.c.b16 %v5033, %v5033
    %v5098 = vpack.c.b16 %v5034, %v5034
    %v5099 = vpack.c.b16 %v5035, %v5035
    %v5100 = vpack.c.b16 %v5036, %v5036
    %v5101 = vpack.c.b16 %v5037, %v5037
    %v5102 = vpack.c.b16 %v5038, %v5038
    %v5103 = vpack.c.b16 %v5039, %v5039
    %v5104 = vpack.c.b16 %v5040, %v5040
    %v5105 = vpack.c.b16 %v5041, %v5041
    %v5106 = vpack.c.b16 %v5042, %v5042
    %v5107 = vpack.c.b16 %v5043, %v5043
    %v5108 = vpack.c.b16 %v5044, %v5044
    %v5109 = vpack.c.b16 %v5045, %v5045
    %v5110 = vpack.c.b16 %v5046, %v5046
    %v5111 = vpack.c.b16 %v5047, %v5047
    %v5112 = vpack.c.b16 %v5048, %v5048
    %v5113 = vpack.c.b16 %v5049, %v5049
    %v5114 = vpack.c.b16 %v5050, %v5050
    %v5115 = vpack.c.b16 %v5051, %v5051
    %vm5180 = vcmask 27648
    %5181 = vst.msk [vmem:[#allocation8] sm:$0xf] %vm5180, %v5052
    %5182 = vst.msk [vmem:[#allocation8 + $0x4] sm:$0xf] %vm5180, %v5053
    %5183 = vst.msk [vmem:[#allocation8 + $0x8] sm:$0xf] %vm5180, %v5054
    %5184 = vst.msk [vmem:[#allocation8 + $0xc] sm:$0xf] %vm5180, %v5055
    %5185 = vst.msk [vmem:[#allocation8 + $0x10] sm:$0xf] %vm5180, %v5056
    %5186 = vst.msk [vmem:[#allocation8 + $0x14] sm:$0xf] %vm5180, %v5057
    %5187 = vst.msk [vmem:[#allocation8 + $0x18] sm:$0xf] %vm5180, %v5058
    %5188 = vst.msk [vmem:[#allocation8 + $0x1c] sm:$0xf] %vm5180, %v5059
    %5189 = vst.msk [vmem:[#allocation8 + $0x20] sm:$0xf] %vm5180, %v5060
    %5190 = vst.msk [vmem:[#allocation8 + $0x24] sm:$0xf] %vm5180, %v5061
    %5191 = vst.msk [vmem:[#allocation8 + $0x28] sm:$0xf] %vm5180, %v5062
    %5192 = vst.msk [vmem:[#allocation8 + $0x2c] sm:$0xf] %vm5180, %v5063
    %5193 = vst.msk [vmem:[#allocation8 + $0x30] sm:$0xf] %vm5180, %v5064
    %5194 = vst.msk [vmem:[#allocation8 + $0x34] sm:$0xf] %vm5180, %v5065
    %5195 = vst.msk [vmem:[#allocation8 + $0x38] sm:$0xf] %vm5180, %v5066
    %5196 = vst.msk [vmem:[#allocation8 + $0x3c] sm:$0xf] %vm5180, %v5067
    %5197 = vst.msk [vmem:[#allocation8 + $0x40] sm:$0xf] %vm5180, %v5068
    %5198 = vst.msk [vmem:[#allocation8 + $0x44] sm:$0xf] %vm5180, %v5069
    %5199 = vst.msk [vmem:[#allocation8 + $0x48] sm:$0xf] %vm5180, %v5070
    %5200 = vst.msk [vmem:[#allocation8 + $0x4c] sm:$0xf] %vm5180, %v5071
    %5201 = vst.msk [vmem:[#allocation8 + $0x50] sm:$0xf] %vm5180, %v5072
    %5202 = vst.msk [vmem:[#allocation8 + $0x54] sm:$0xf] %vm5180, %v5073
    %5203 = vst.msk [vmem:[#allocation8 + $0x58] sm:$0xf] %vm5180, %v5074
    %5204 = vst.msk [vmem:[#allocation8 + $0x5c] sm:$0xf] %vm5180, %v5075
    %5205 = vst.msk [vmem:[#allocation8 + $0x60] sm:$0xf] %vm5180, %v5076
    %5206 = vst.msk [vmem:[#allocation8 + $0x64] sm:$0xf] %vm5180, %v5077
    %5207 = vst.msk [vmem:[#allocation8 + $0x68] sm:$0xf] %vm5180, %v5078
    %5208 = vst.msk [vmem:[#allocation8 + $0x6c] sm:$0xf] %vm5180, %v5079
    %5209 = vst.msk [vmem:[#allocation8 + $0x70] sm:$0xf] %vm5180, %v5080
    %5210 = vst.msk [vmem:[#allocation8 + $0x74] sm:$0xf] %vm5180, %v5081
    %5211 = vst.msk [vmem:[#allocation8 + $0x78] sm:$0xf] %vm5180, %v5082
    %5212 = vst.msk [vmem:[#allocation8 + $0x7c] sm:$0xf] %vm5180, %v5083
    %5213 = vst.msk [vmem:[#allocation8 + $0x80] sm:$0xf] %vm5180, %v5084
    %5214 = vst.msk [vmem:[#allocation8 + $0x84] sm:$0xf] %vm5180, %v5085
    %5215 = vst.msk [vmem:[#allocation8 + $0x88] sm:$0xf] %vm5180, %v5086
    %5216 = vst.msk [vmem:[#allocation8 + $0x8c] sm:$0xf] %vm5180, %v5087
    %5217 = vst.msk [vmem:[#allocation8 + $0x90] sm:$0xf] %vm5180, %v5088
    %5218 = vst.msk [vmem:[#allocation8 + $0x94] sm:$0xf] %vm5180, %v5089
    %5219 = vst.msk [vmem:[#allocation8 + $0x98] sm:$0xf] %vm5180, %v5090
    %5220 = vst.msk [vmem:[#allocation8 + $0x9c] sm:$0xf] %vm5180, %v5091
    %5221 = vst.msk [vmem:[#allocation8 + $0xa0] sm:$0xf] %vm5180, %v5092
    %5222 = vst.msk [vmem:[#allocation8 + $0xa4] sm:$0xf] %vm5180, %v5093
    %5223 = vst.msk [vmem:[#allocation8 + $0xa8] sm:$0xf] %vm5180, %v5094
    %5224 = vst.msk [vmem:[#allocation8 + $0xac] sm:$0xf] %vm5180, %v5095
    %5225 = vst.msk [vmem:[#allocation8 + $0xb0] sm:$0xf] %vm5180, %v5096
    %5226 = vst.msk [vmem:[#allocation8 + $0xb4] sm:$0xf] %vm5180, %v5097
    %5227 = vst.msk [vmem:[#allocation8 + $0xb8] sm:$0xf] %vm5180, %v5098
    %5228 = vst.msk [vmem:[#allocation8 + $0xbc] sm:$0xf] %vm5180, %v5099
    %5229 = vst.msk [vmem:[#allocation8 + $0xc0] sm:$0xf] %vm5180, %v5100
    %5230 = vst.msk [vmem:[#allocation8 + $0xc4] sm:$0xf] %vm5180, %v5101
    %5231 = vst.msk [vmem:[#allocation8 + $0xc8] sm:$0xf] %vm5180, %v5102
    %5232 = vst.msk [vmem:[#allocation8 + $0xcc] sm:$0xf] %vm5180, %v5103
    %5233 = vst.msk [vmem:[#allocation8 + $0xd0] sm:$0xf] %vm5180, %v5104
    %5234 = vst.msk [vmem:[#allocation8 + $0xd4] sm:$0xf] %vm5180, %v5105
    %5235 = vst.msk [vmem:[#allocation8 + $0xd8] sm:$0xf] %vm5180, %v5106
    %5236 = vst.msk [vmem:[#allocation8 + $0xdc] sm:$0xf] %vm5180, %v5107
    %5237 = vst.msk [vmem:[#allocation8 + $0xe0] sm:$0xf] %vm5180, %v5108
    %5238 = vst.msk [vmem:[#allocation8 + $0xe4] sm:$0xf] %vm5180, %v5109
    %5239 = vst.msk [vmem:[#allocation8 + $0xe8] sm:$0xf] %vm5180, %v5110
    %5240 = vst.msk [vmem:[#allocation8 + $0xec] sm:$0xf] %vm5180, %v5111
    %5241 = vst.msk [vmem:[#allocation8 + $0xf0] sm:$0xf] %vm5180, %v5112
    %5242 = vst.msk [vmem:[#allocation8 + $0xf4] sm:$0xf] %vm5180, %v5113
    %5243 = vst.msk [vmem:[#allocation8 + $0xf8] sm:$0xf] %vm5180, %v5114
    %5244 = vst.msk [vmem:[#allocation8 + $0xfc] sm:$0xf] %vm5180, %v5115
    // Predicated region
    $region18: #{tpu_custom_call.1} parent=1 // pred_check
      _
    $region19: #{tpu_custom_call.1} parent=1 // pred_check_branch
      %5246 = sbr.rel (0) target = $region21
    $region20: #{tpu_custom_call.1} parent=1 // pred_region
      %s5248 = ssub.s32 4096, 4096
      %5249 = vsyncadd [#allocation5], %s5248
      %s5250 = sshll.u32 [#allocation8], 4
      %s5251 = int_to_ptr.vmem [resolvable:$true] %s5250
      %5256 = dma.vmem_to_hbm [thread:$0]  %s5251, 4096, %s2, [#allocation5], 64, 64, 4
    $region21: #{tpu_custom_call.1} parent=1 // pred_fallthru
      _
    // Predicated region
    $region22: #{tpu_custom_call.1} parent=1 // pred_check
      _
    $region23: #{tpu_custom_call.1} parent=1 // pred_check_branch
      %5258 = sbr.rel (0) target = $region25
    $region24: #{tpu_custom_call.1} parent=1 // pred_region
      %s5260 = ssub.s32 16, 16
      %5261 = vsyncadd [#allocation10], %s5260
      %s5263 = sshll.u32 [#allocation9], 4
      %s5264 = int_to_ptr.vmem [resolvable:$true] %s5263
      %5266 = dma.vmem_to_hbm [thread:$0]  %s5264, 16, %s3, [#allocation10]
    $region25: #{tpu_custom_call.1} parent=1 // pred_fallthru
      _
    // Predicated region
    $region26: #{tpu_custom_call.1} parent=1 // pred_check
      _
    $region27: #{tpu_custom_call.1} parent=1 // pred_check_branch
      %5268 = sbr.rel (0) target = $region29
    $region28: #{tpu_custom_call.1} parent=1 // pred_region
      %5269 = dma.done [#allocation5], 4096
    $region29: #{tpu_custom_call.1} parent=1 // pred_fallthru
      _
    // Predicated region
    $region30: #{tpu_custom_call.1} parent=1 // pred_check
      _
    $region31: #{tpu_custom_call.1} parent=1 // pred_check_branch
      %5271 = sbr.rel (0) target = $region33
    $region32: #{tpu_custom_call.1} parent=1 // pred_region
      %5272 = dma.done [#allocation10], 16
    $region33: #{tpu_custom_call.1} parent=1 // pred_fallthru
      _
    %5273 = vsyncpa [#allocation4], 1
    %5274 = vsyncpa [#allocation7], 1
    %5275 = vsyncpa [#allocation5], 1
    %5276 = vsyncpa [#allocation10], 1

</llo_original>
